<compile_context>
chip_gen: v5e
topology: v5e:2x2
jax: 0.10.0
libtpu: 0.0.40
codegen_flags: <defaults>
</compile_context>

<pallas_src>
import functools

import jax
import jax.numpy as jnp
from jax.experimental import pallas as pl
from jax.experimental.pallas import tpu as pltpu

NUM_NODES = 100
IN_FEATS = 373
HIDDEN = 2048
HSPLIT = 2             # hidden dim split -> leading "parallel" grid axis
MAX_BATCH_TILE = 16    # graphs per batch tile (bounds VMEM; 1600 rows / tile)


def _mlp_kernel(x_ref, pool_ref, w1_ref, b1_ref, w2t_ref, out_ref):
    """One (hidden-half, batch-tile) grid step.

    x_ref   : (bt*100, 384)  bf16  node features (contraction dim padded to 384)
    pool_ref: (bt, bt*100)   bf16  exact 0/1 block-diagonal graph membership
    w1_ref  : (384, COL)     bf16  hidden-layer weights (resident per half)
    b1_ref  : (1, COL)       f32   hidden-layer bias
    w2t_ref : (1, COL)       f32   output weights^T, pre-scaled by 1/num_nodes
    out_ref : (bt, 1)        f32   partial output for this hidden half
    """
    # Hidden layer: bf16 MXU matmul with f32 accumulation, bias, relu.
    h = jnp.dot(x_ref[...], w1_ref[...], preferred_element_type=jnp.float32)
    h = jnp.maximum(h + b1_ref[...], 0.0)

    # Per-graph readout as a bf16 MXU matmul against an exact 0/1 pool matrix
    # (the 1/num_nodes mean scale lives in the f32 w2t, not in bf16).
    hg = jnp.dot(pool_ref[...], h.astype(jnp.bfloat16),
                 preferred_element_type=jnp.float32)            # (bt, COL)

    # Output-layer partial: lane-dense VPU multiply + XLU lane reduction
    # (avoids a degenerate N=1 MXU matmul and a lane-width-1 weight tile).
    out_ref[...] = jnp.sum(hg * w2t_ref[...], axis=-1, keepdims=True)


def prepare_params(w1, b1, w2, b2, *, num_nodes=NUM_NODES):
    """One-time weight preprocessing, hoisted out of the per-call hot path."""
    in_feats, hidden = w1.shape
    in_feats_p = in_feats + (-in_feats % 128)         # 373 -> 384
    w1_p = jnp.pad(w1, ((0, in_feats_p - in_feats), (0, 0))).astype(jnp.bfloat16)
    b1_2d = b1.reshape(1, hidden).astype(jnp.float32)
    # Fold the 1/num_nodes mean scale into the f32 output weights so the
    # pooling matrix can stay exact 0/1 in bf16.
    w2t = (w2.reshape(1, hidden) / float(num_nodes)).astype(jnp.float32)
    b2_1d = b2.reshape(1).astype(jnp.float32)
    return w1_p, b1_2d, w2t, b2_1d


@functools.partial(jax.jit, static_argnames=("num_nodes",))
def mlp_forward(h, w1_p, b1_2d, w2t, b2_1d, *, num_nodes=NUM_NODES):
    n_rows, in_feats = h.shape
    assert n_rows % num_nodes == 0, "rows must be a multiple of num_nodes"
    batch = n_rows // num_nodes

    in_feats_p, hidden = w1_p.shape
    assert hidden % HSPLIT == 0
    col = hidden // HSPLIT
    assert col % 128 == 0

    # Batch tiling: single tile for small batches (block == full array, always
    # layout-legal); otherwise bounded 16-graph tiles with the batch padded up
    # so VMEM use is independent of batch size.
    if batch <= MAX_BATCH_TILE:
        bt = batch
    else:
        bt = MAX_BATCH_TILE
    batch_padded = pl.cdiv(batch, bt) * bt
    batch_tiles = batch_padded // bt
    rows_tile = bt * num_nodes

    # Activation prep: pad contraction dim to 384 and cast to bf16 (single
    # fused XLA pass).  Skipped entirely if the producer already supplies
    # bf16, 384-padded activations.
    pad_rows = batch_padded * num_nodes - n_rows
    pad_cols = in_feats_p - in_feats
    if h.dtype == jnp.bfloat16 and pad_cols == 0 and pad_rows == 0:
        x = h
    else:
        # TODO(synk): have the producer emit bf16, 384-padded node features to
        # remove this extra HBM pass over x.
        x = jnp.pad(h, ((0, pad_rows), (0, pad_cols))).astype(jnp.bfloat16)

    # Exact 0/1 block-diagonal graph-membership matrix for ONE batch tile
    # (identical for every tile -> constant index map, fetched once).
    node_graph = jnp.arange(rows_tile, dtype=jnp.int32) // num_nodes
    pool = (jnp.arange(bt, dtype=jnp.int32)[:, None] == node_graph[None, :])
    pool = pool.astype(jnp.bfloat16)

    grid = (HSPLIT, batch_tiles)
    partials = pl.pallas_call(
        _mlp_kernel,
        out_shape=jax.ShapeDtypeStruct((HSPLIT, batch_padded, 1), jnp.float32),
        grid_spec=pltpu.PrefetchScalarGridSpec(
            num_scalar_prefetch=0,
            grid=grid,
            in_specs=[
                pl.BlockSpec((rows_tile, in_feats_p),
                             lambda s, bi: (bi, 0)),            # x tile
                pl.BlockSpec((bt, rows_tile),
                             lambda s, bi: (0, 0)),             # pool (constant)
                pl.BlockSpec((in_feats_p, col),
                             lambda s, bi: (0, s)),             # W1 half (resident)
                pl.BlockSpec((1, col),
                             lambda s, bi: (0, s)),             # b1 half
                pl.BlockSpec((1, col),
                             lambda s, bi: (0, s)),             # W2^T half (scaled)
            ],
            out_specs=pl.BlockSpec((None, bt, 1),
                                   lambda s, bi: (s, bi, 0)),   # partial out
        ),
        compiler_params=pltpu.CompilerParams(
            dimension_semantics=("parallel", "parallel"),
            vmem_limit_bytes=32 * 1024 * 1024,
        ),
    )(x, pool, w1_p, b1_2d, w2t)

    # Combine the two hidden halves, add the output bias, drop batch padding.
    out = partials.sum(axis=0) + b2_1d
    return out[:batch]


def init_params(key):
    k1, k2, k3, k4 = jax.random.split(key, 4)
    # deterministic, PyTorch-Linear-like uniform init
    lim1 = 1.0 / (IN_FEATS ** 0.5)
    lim2 = 1.0 / (HIDDEN ** 0.5)
    w1 = jax.random.uniform(k1, (IN_FEATS, HIDDEN), jnp.float32, -lim1, lim1)
    b1 = jax.random.uniform(k2, (HIDDEN,), jnp.float32, -lim1, lim1)
    w2 = jax.random.uniform(k3, (HIDDEN, 1), jnp.float32, -lim2, lim2)
    b2 = jax.random.uniform(k4, (1,), jnp.float32, -lim2, lim2)
    return w1, b1, w2, b2


def reference_forward(h, w1, b1, w2, b2, num_nodes=NUM_NODES):
    batch = h.shape[0] // num_nodes
    hid = jnp.maximum(h @ w1 + b1, 0.0)
    hg = hid.reshape(batch, num_nodes, -1).mean(axis=1)
    return hg @ w2 + b2


if __name__ == "__main__":
    key = jax.random.PRNGKey(0)
    kx, kp = jax.random.split(key)

    batch = 2
    # node features: (batch * num_nodes, 373), matching the module's reshape
    h = jax.random.normal(kx, (batch * NUM_NODES, IN_FEATS), jnp.float32)
    w1, b1, w2, b2 = init_params(kp)

    params = prepare_params(w1, b1, w2, b2)   # one-time, out of the hot path
    out = mlp_forward(h, *params)
    out = jax.block_until_ready(out)

    ref = reference_forward(h, w1, b1, w2, b2)
    assert out.shape == (batch, 1)
    # tolerance reflects bf16 streaming of x / W1 / pooled h (f32 accumulation)
    assert bool(jnp.allclose(out, ref, atol=2e-2, rtol=2e-2))

    print("KERNEL_OK")
</pallas_src>

<mosaic_0001>
module attributes {stable_mosaic.version = 11 : i64} {
  func.func @_mlp_kernel(%arg0: i32, %arg1: i32, %arg2: memref<200x384xbf16, #tpu.memory_space<vmem>>, %arg3: memref<2x200xbf16, #tpu.memory_space<vmem>>, %arg4: memref<384x1024xbf16, #tpu.memory_space<vmem>>, %arg5: memref<1x1024xf32, #tpu.memory_space<vmem>>, %arg6: memref<1x1024xf32, #tpu.memory_space<vmem>>, %arg7: memref<1x2x1xf32, #tpu.memory_space<vmem>>) attributes {dimension_semantics = [#tpu.dimension_semantics<parallel>, #tpu.dimension_semantics<parallel>], iteration_bounds = array<i64: 2, 1>, scalar_prefetch = 0 : i64, scratch_operands = 0 : i64, tpu.core_type = #tpu.core_type<tc>, window_params = [{transform_indices = @transform_0, window_bounds = array<i64: 200, 384>}, {pipeline_mode = #tpu.pipeline_mode<synchronous>, transform_indices = @transform_1, window_bounds = array<i64: 2, 200>}, {transform_indices = @transform_2, window_bounds = array<i64: 384, 1024>}, {transform_indices = @transform_3, window_bounds = array<i64: 1, 1024>}, {transform_indices = @transform_4, window_bounds = array<i64: 1, 1024>}, {transform_indices = @transform_5, window_bounds = array<i64: 1, 2, 1>}]} {
    %c0 = arith.constant 0 : index
    %c0_0 = arith.constant 0 : index
    %0 = vector.load %arg2[%c0, %c0_0] : memref<200x384xbf16, #tpu.memory_space<vmem>>, vector<200x384xbf16>
    %c0_1 = arith.constant 0 : index
    %c0_2 = arith.constant 0 : index
    %1 = vector.load %arg4[%c0_1, %c0_2] : memref<384x1024xbf16, #tpu.memory_space<vmem>>, vector<384x1024xbf16>
    %cst = arith.constant dense<0.000000e+00> : vector<200x1024xf32>
    %2 = tpu.matmul %0, %1, %cst {dimension_numbers = #tpu.dot_dimension_numbers<[1], [0], [0], [1], [0, 0, 1, 1], [], []>} : vector<200x384xbf16>, vector<384x1024xbf16>, vector<200x1024xf32> -> vector<200x1024xf32>
    %c0_3 = arith.constant 0 : index
    %c0_4 = arith.constant 0 : index
    %3 = vector.load %arg5[%c0_3, %c0_4] : memref<1x1024xf32, #tpu.memory_space<vmem>>, vector<1x1024xf32>
    %4 = vector.broadcast %3 : vector<1x1024xf32> to vector<200x1024xf32>
    %5 = arith.addf %2, %4 : vector<200x1024xf32>
    %cst_5 = arith.constant 0.000000e+00 : f32
    %6 = vector.broadcast %cst_5 : f32 to vector<200x1024xf32>
    %7 = arith.maximumf %5, %6 : vector<200x1024xf32>
    %c0_6 = arith.constant 0 : index
    %c0_7 = arith.constant 0 : index
    %8 = vector.load %arg3[%c0_6, %c0_7] : memref<2x200xbf16, #tpu.memory_space<vmem>>, vector<2x200xbf16>
    %9 = arith.truncf %7 : vector<200x1024xf32> to vector<200x1024xbf16>
    %cst_8 = arith.constant dense<0.000000e+00> : vector<2x1024xf32>
    %10 = tpu.matmul %8, %9, %cst_8 {dimension_numbers = #tpu.dot_dimension_numbers<[1], [0], [0], [1], [0, 0, 1, 1], [], []>} : vector<2x200xbf16>, vector<200x1024xbf16>, vector<2x1024xf32> -> vector<2x1024xf32>
    %c0_9 = arith.constant 0 : index
    %c0_10 = arith.constant 0 : index
    %11 = vector.load %arg6[%c0_9, %c0_10] : memref<1x1024xf32, #tpu.memory_space<vmem>>, vector<1x1024xf32>
    %12 = vector.broadcast %11 : vector<1x1024xf32> to vector<2x1024xf32>
    %13 = arith.mulf %10, %12 : vector<2x1024xf32>
    %cst_11 = arith.constant dense<0.000000e+00> : vector<2xf32>
    %14 = vector.multi_reduction <add>, %13, %cst_11 [1] : vector<2x1024xf32> to vector<2xf32>
    %15 = vector.shape_cast %14 : vector<2xf32> to vector<2x1xf32>
    %c0_12 = arith.constant 0 : index
    %c0_13 = arith.constant 0 : index
    %c0_14 = arith.constant 0 : index
    %16 = vector.load %arg7[%c0_12, %c0_13, %c0_14] : memref<1x2x1xf32, #tpu.memory_space<vmem>>, vector<1x2x1xf32>
    %17 = vector.shape_cast %16 : vector<1x2x1xf32> to vector<2x1xf32>
    %18 = vector.shape_cast %15 : vector<2x1xf32> to vector<1x2x1xf32>
    tpu.vector_store %arg7[%c0_12, %c0_13, %c0_14], %18 {strides = array<i32>} : memref<1x2x1xf32, #tpu.memory_space<vmem>>, vector<1x2x1xf32>,
    return
  }
  func.func @transform_0(%arg0: i32, %arg1: i32) -> (i32, i32) {
    %c0_i32 = arith.constant 0 : i32
    %c0_i32_0 = arith.constant 0 : i32
    return %arg1, %c0_i32 : i32, i32
  }
  func.func @transform_1(%arg0: i32, %arg1: i32) -> (i32, i32) {
    %c0_i32 = arith.constant 0 : i32
    %c0_i32_0 = arith.constant 0 : i32
    %c0_i32_1 = arith.constant 0 : i32
    return %c0_i32, %c0_i32_0 : i32, i32
  }
  func.func @transform_2(%arg0: i32, %arg1: i32) -> (i32, i32) {
    %c0_i32 = arith.constant 0 : i32
    %c0_i32_0 = arith.constant 0 : i32
    return %c0_i32, %arg0 : i32, i32
  }
  func.func @transform_3(%arg0: i32, %arg1: i32) -> (i32, i32) {
    %c0_i32 = arith.constant 0 : i32
    %c0_i32_0 = arith.constant 0 : i32
    return %c0_i32, %arg0 : i32, i32
  }
  func.func @transform_4(%arg0: i32, %arg1: i32) -> (i32, i32) {
    %c0_i32 = arith.constant 0 : i32
    %c0_i32_0 = arith.constant 0 : i32
    return %c0_i32, %arg0 : i32, i32
  }
  func.func @transform_5(%arg0: i32, %arg1: i32) -> (i32, i32, i32) {
    %c0_i32 = arith.constant 0 : i32
    %c0_i32_0 = arith.constant 0 : i32
    return %arg0, %arg1, %c0_i32 : i32, i32, i32
  }
}

</mosaic_0001>

<llo_original>
// kernel: mlp_forward.1
$region0: #{mlp_forward.1}
  #allocation0 [shape = 'u32[]', space=smem, size = 0x4, offset = 0x4, fixed_abs, tag = 'smem constant byte address 0x4 - core index']
  #allocation1 [shape = 'u32[72,128]{1,0:T(1,128)}', space=vmem, size = 0x9000, scoped, tag = 'internal scratch']
  %s0 = inlined_call_operand.vmem [shape: bf16[200,384], index: 0, kind: input, shape index: {}]
  %s1 = inlined_call_operand.vmem [shape: bf16[2,200], index: 1, kind: input, shape index: {}]
  %s2 = inlined_call_operand.hbm [shape: bf16[384,2048], index: 2, kind: input, shape index: {}]
  %s3 = inlined_call_operand.hbm [shape: f32[1,2048], index: 3, kind: input, shape index: {}]
  %s4 = inlined_call_operand.hbm [shape: f32[1,2048], index: 4, kind: input, shape index: {}]
  %s5 = inlined_call_operand.vmem [shape: f32[2,2,1], index: 5, kind: output, shape index: {}]
  %s6 = sld [smem:[#allocation0]]
  $region65: #{mlp_forward.1} parent=0
    _
  %s8 = ssub.s32 1, %s6
  %s9 = scalar_select 0, %s8, %s6
  $region1: #{mlp_forward.1} parent=0
    #allocation2 [shape = 'u8[1572864]{0}', space=vmem, size = 0x180000, scoped, tag = 'input window, operand 2']
    #allocation3 [shape = 's32[2]{0}', space=sflag, size = 0x8, scoped, tag = 'scoped memory for mlp_forward.1']
    #allocation4 [shape = 'u8[8192]{0}', space=vmem, size = 0x2000, scoped, tag = 'input window, operand 3']
    #allocation5 [shape = 's32[2]{0}', space=sflag, size = 0x8, scoped, tag = 'scoped memory for mlp_forward.1']
    #allocation6 [shape = 'u8[8192]{0}', space=vmem, size = 0x2000, scoped, tag = 'input window, operand 4']
    %10 = vsyncpa [#allocation3], 0
    %s11 = scalar_lea.sflag [#allocation3], 1
    %12 = vsyncpa %s11, 0
    %13 = vsyncpa [#allocation5], 0
    %s14 = scalar_lea.sflag [#allocation5], 1
    %15 = vsyncpa %s14, 0
    loop: start=0, step=1, limit=4
    $region2: #{mlp_forward.1} parent=1 // loop_pre_header
      _
    $region3: #{mlp_forward.1} parent=1 // loop_header
      %s17 = sphi 0, %s21
      %p18 = scmp.ge.s32.totalorder %s17, 4
      %s24 = sphi 0, %s36
      %s25 = sphi 0, %s32
      %s26 = sphi 0, %s24
      %s27 = sphi 0, %s25
      %s28 = sphi 0, %s26
      %s29 = sphi 0, %s27
      %s39 = sphi 0, %s41
      %s42 = sphi 0, %s39
      %s43 = sphi 0, %s42
      %s59 = sphi 0, %s43
      %s63 = sphi 0, %s63
      %s65 = sphi 0, %s63
      %s66 = sphi 0, %s65
      %s80 = sphi 0, %s66
      %s86 = sphi 0, %s88
      %s89 = sphi 0, %s86
      %s90 = sphi 0, %s89
      %s106 = sphi 0, %s90
      %s112 = sphi 0, %s114
      %s115 = sphi 0, %s112
      %s116 = sphi 0, %s115
      %s132 = sphi 0, %s116
      %s138 = sphi 0, %s140
      %s141 = sphi 0, %s138
      %s142 = sphi 0, %s141
      %s158 = sphi 0, %s142
      %s166 = sphi 0, %s168
      %s169 = sphi 0, %s166
      %s170 = sphi 0, %s169
      %s186 = sphi 0, %s170
    $region4: #{mlp_forward.1} parent=1 // loop_header_branch
      %20 = sbr.rel (%p18) target = $region8
    $region5: #{mlp_forward.1} parent=1 // loop_body
      %s22 = ssub.s32 %s17, 1
      %s23 = ssub.s32 %s17, 2
      %s30 = sadd.s32 1, %s25
      %p31 = scmp.ge.s32.totalorder %s30, 1
      %s32 = scalar_select %p31, 0, %s30
      %s33 = sadd.s32 1, %s24
      %s34 = scalar_select %p31, %s33, %s24
      %p35 = scmp.ge.s32.totalorder %s34, 2
      %s36 = scalar_select %p35, 0, %s34
      %s37 = ssub.s32 %s25, %s32
      %p38 = scmp.eq.s32.totalorder %s37, 0
      %s40 = sadd.s32 %s39, 1
      %s41 = scalar_select %p38, %s39, %s40
      %p44 = pneg %p38
      %p45 = scmp.eq.s32.totalorder %s17, 1
      %p46 = por %p44, %p45
      %p47 = scmp.ne.s32.totalorder %s39, %s42
      %p48 = scmp.eq.s32.totalorder %s17, 0
      %p49 = por %p47, %p48
      %p50 = scmp.ne.s32.totalorder %s39, %s42
      %p51 = scmp.eq.s32.totalorder %s22, 1
      %p52 = por %p50, %p51
      %p53 = scmp.ne.s32.totalorder %s42, %s43
      %p54 = scmp.eq.s32.totalorder %s22, 0
      %p55 = por %p53, %p54
      %p56 = scmp.ne.s32.totalorder %s42, %s43
      %p57 = scmp.eq.s32.totalorder %s23, 1
      %p58 = por %p56, %p57
      %p60 = scmp.ne.s32.totalorder %s43, %s59
      %p61 = scmp.eq.s32.totalorder %s23, 0
      %p62 = por %p60, %p61
      %s64 = sadd.s32 %s63, 1
      %p67 = scmp.eq.s32.totalorder %s17, 1
      %p68 = scmp.ne.s32.totalorder %s63, %s65
      %p69 = scmp.eq.s32.totalorder %s17, 0
      %p70 = por %p68, %p69
      %p71 = scmp.ne.s32.totalorder %s63, %s65
      %p72 = scmp.eq.s32.totalorder %s22, 1
      %p73 = por %p71, %p72
      %p74 = scmp.ne.s32.totalorder %s65, %s66
      %p75 = scmp.eq.s32.totalorder %s22, 0
      %p76 = por %p74, %p75
      %p77 = scmp.ne.s32.totalorder %s65, %s66
      %p78 = scmp.eq.s32.totalorder %s23, 1
      %p79 = por %p77, %p78
      %p81 = scmp.ne.s32.totalorder %s66, %s80
      %p82 = scmp.eq.s32.totalorder %s23, 0
      %p83 = por %p81, %p82
      %s84 = ssub.s32 %s24, %s36
      %p85 = scmp.eq.s32.totalorder %s84, 0
      %s87 = sadd.s32 %s86, 1
      %s88 = scalar_select %p85, %s86, %s87
      %p91 = pneg %p85
      %p92 = scmp.eq.s32.totalorder %s17, 1
      %p93 = por %p91, %p92
      %p94 = scmp.ne.s32.totalorder %s86, %s89
      %p95 = scmp.eq.s32.totalorder %s17, 0
      %p96 = por %p94, %p95
      %p97 = scmp.ne.s32.totalorder %s86, %s89
      %p98 = scmp.eq.s32.totalorder %s22, 1
      %p99 = por %p97, %p98
      %p100 = scmp.ne.s32.totalorder %s89, %s90
      %p101 = scmp.eq.s32.totalorder %s22, 0
      %p102 = por %p100, %p101
      %p103 = scmp.ne.s32.totalorder %s89, %s90
      %p104 = scmp.eq.s32.totalorder %s23, 1
      %p105 = por %p103, %p104
      %p107 = scmp.ne.s32.totalorder %s90, %s106
      %p108 = scmp.eq.s32.totalorder %s23, 0
      %p109 = por %p107, %p108
      %s110 = ssub.s32 %s24, %s36
      %p111 = scmp.eq.s32.totalorder %s110, 0
      %s113 = sadd.s32 %s112, 1
      %s114 = scalar_select %p111, %s112, %s113
      %p117 = pneg %p111
      %p118 = scmp.eq.s32.totalorder %s17, 1
      %p119 = por %p117, %p118
      %p120 = scmp.ne.s32.totalorder %s112, %s115
      %p121 = scmp.eq.s32.totalorder %s17, 0
      %p122 = por %p120, %p121
      %p123 = scmp.ne.s32.totalorder %s112, %s115
      %p124 = scmp.eq.s32.totalorder %s22, 1
      %p125 = por %p123, %p124
      %p126 = scmp.ne.s32.totalorder %s115, %s116
      %p127 = scmp.eq.s32.totalorder %s22, 0
      %p128 = por %p126, %p127
      %p129 = scmp.ne.s32.totalorder %s115, %s116
      %p130 = scmp.eq.s32.totalorder %s23, 1
      %p131 = por %p129, %p130
      %p133 = scmp.ne.s32.totalorder %s116, %s132
      %p134 = scmp.eq.s32.totalorder %s23, 0
      %p135 = por %p133, %p134
      %s136 = ssub.s32 %s24, %s36
      %p137 = scmp.eq.s32.totalorder %s136, 0
      %s139 = sadd.s32 %s138, 1
      %s140 = scalar_select %p137, %s138, %s139
      %p143 = pneg %p137
      %p144 = scmp.eq.s32.totalorder %s17, 1
      %p145 = por %p143, %p144
      %p146 = scmp.ne.s32.totalorder %s138, %s141
      %p147 = scmp.eq.s32.totalorder %s17, 0
      %p148 = por %p146, %p147
      %p149 = scmp.ne.s32.totalorder %s138, %s141
      %p150 = scmp.eq.s32.totalorder %s22, 1
      %p151 = por %p149, %p150
      %p152 = scmp.ne.s32.totalorder %s141, %s142
      %p153 = scmp.eq.s32.totalorder %s22, 0
      %p154 = por %p152, %p153
      %p155 = scmp.ne.s32.totalorder %s141, %s142
      %p156 = scmp.eq.s32.totalorder %s23, 1
      %p157 = por %p155, %p156
      %p159 = scmp.ne.s32.totalorder %s142, %s158
      %p160 = scmp.eq.s32.totalorder %s23, 0
      %p161 = por %p159, %p160
      %s162 = ssub.s32 %s24, %s36
      %s163 = ssub.s32 %s25, %s32
      %s164 = sor.u32 %s162, %s163
      %p165 = scmp.eq.s32.totalorder %s164, 0
      %s167 = sadd.s32 %s166, 1
      %s168 = scalar_select %p165, %s166, %s167
      %p171 = pneg %p165
      %p172 = scmp.eq.s32.totalorder %s17, 1
      %p173 = por %p171, %p172
      %p174 = scmp.ne.s32.totalorder %s166, %s169
      %p175 = scmp.eq.s32.totalorder %s17, 0
      %p176 = por %p174, %p175
      %p177 = scmp.ne.s32.totalorder %s166, %s169
      %p178 = scmp.eq.s32.totalorder %s22, 1
      %p179 = por %p177, %p178
      %p180 = scmp.ne.s32.totalorder %s169, %s170
      %p181 = scmp.eq.s32.totalorder %s22, 0
      %p182 = por %p180, %p181
      %p183 = scmp.ne.s32.totalorder %s169, %s170
      %p184 = scmp.eq.s32.totalorder %s23, 1
      %p185 = por %p183, %p184
      %p187 = scmp.ne.s32.totalorder %s170, %s186
      %p188 = scmp.eq.s32.totalorder %s23, 0
      %p189 = por %p187, %p188
      %p190 = scmp.le.s32.totalorder 1, %s17
      %p191 = scmp.lt.s32.totalorder %s17, 3
      %p192 = pnand %p190, %p191
      %p193 = pneg %p192
      // Predicated region
      $region9: #{mlp_forward.1} parent=5 // pred_check
        _
      $region10: #{mlp_forward.1} parent=5 // pred_check_branch
        %195 = sbr.rel (%p192) target = $region12
      $region11: #{mlp_forward.1} parent=5 // pred_region
        %s196 = ssub.s32 %s17, 1
        // Predicated region
        $region13: #{mlp_forward.1} parent=11 // pred_check
          %p197 = pneg %p55
        $region14: #{mlp_forward.1} parent=11 // pred_check_branch
          %199 = sbr.rel (%p197) target = $region16
        $region15: #{mlp_forward.1} parent=11 // pred_region
          %s200 = smul.u32 25, %s27
          %p201 = scmp.lt.s32.totalorder %s200, 24
          %s202 = scalar_select %p201, %s200, 24
          %s203 = smul.addr %s202, 3
          %s204 = smul.addr %s203, 4
          %s205 = scalar_lea.vmem %s0, %s204
          %s206 = smul.u32 25, %s27
        $region16: #{mlp_forward.1} parent=11 // pred_fallthru
          _
        // Predicated region
        $region17: #{mlp_forward.1} parent=11 // pred_check
          %p207 = pneg %p76
        $region18: #{mlp_forward.1} parent=11 // pred_check_branch
          %209 = sbr.rel (%p207) target = $region20
        $region19: #{mlp_forward.1} parent=11 // pred_region
          _
        $region20: #{mlp_forward.1} parent=11 // pred_fallthru
          _
      $region12: #{mlp_forward.1} parent=5 // pred_fallthru
        _
      %p210 = scmp.lt.s32.totalorder %s17, 2
      // Predicated region
      $region21: #{mlp_forward.1} parent=5 // pred_check
        %p211 = pneg %p210
      $region22: #{mlp_forward.1} parent=5 // pred_check_branch
        %213 = sbr.rel (%p211) target = $region24
      $region23: #{mlp_forward.1} parent=5 // pred_region
        // Predicated region
        $region25: #{mlp_forward.1} parent=23 // pred_check
          %p214 = pneg %p96
        $region26: #{mlp_forward.1} parent=23 // pred_check_branch
          %216 = sbr.rel (%p214) target = $region28
        $region27: #{mlp_forward.1} parent=23 // pred_region
          %s217 = sand.u32 %s86, 1
          %s218 = scalar_lea.sflag [#allocation3], %s217
          %s219 = sand.u32 %s86, 1
          %s220 = smul.addr %s219, 1536
          %s221 = scalar_lea.vmem [#allocation2], %s220
          %s222 = smul.u32 8, %s24
          %224 = vsyncadd %s218, 0
          %s225 = smul.addr %s222, 4
          %s226 = scalar_lea.hbm %s2, %s225
          %s227 = sshll.u32 %s226, 4
          %s228 = int_to_ptr.hbm [resolvable:$true] %s227
          %s229 = sshll.u32 %s221, 4
          %s230 = int_to_ptr.vmem [resolvable:$true] %s229
          %235 = dma.hbm_to_vmem [thread:$0]  %s228, 24576, %s230, %s218, 1024, 512, 32
        $region28: #{mlp_forward.1} parent=23 // pred_fallthru
          _
        // Predicated region
        $region29: #{mlp_forward.1} parent=23 // pred_check
          %p236 = pneg %p122
        $region30: #{mlp_forward.1} parent=23 // pred_check_branch
          %238 = sbr.rel (%p236) target = $region32
        $region31: #{mlp_forward.1} parent=23 // pred_region
          %s239 = sand.u32 %s17, 1
          %s240 = scalar_lea.sflag [#allocation5], %s239
          %s241 = sand.u32 %s112, 1
          %s242 = smul.addr %s241, 8
          %s243 = scalar_lea.vmem [#allocation4], %s242
          %s244 = smul.u32 8, %s24
          %246 = vsyncadd %s240, 0
          %s247 = scalar_lea.hbm %s3, %s244
          %s249 = sshll.u32 %s247, 4
          %s250 = int_to_ptr.hbm [resolvable:$true] %s249
          %s251 = sshll.u32 %s243, 4
          %s252 = int_to_ptr.vmem [resolvable:$true] %s251
          %254 = dma.hbm_to_vmem [thread:$0]  %s250, 128, %s252, %s240
        $region32: #{mlp_forward.1} parent=23 // pred_fallthru
          _
        // Predicated region
        $region33: #{mlp_forward.1} parent=23 // pred_check
          %p255 = pneg %p148
        $region34: #{mlp_forward.1} parent=23 // pred_check_branch
          %257 = sbr.rel (%p255) target = $region36
        $region35: #{mlp_forward.1} parent=23 // pred_region
          %s258 = sand.u32 %s17, 1
          %s259 = scalar_lea.sflag [#allocation5], %s258
          %s260 = sand.u32 %s138, 1
          %s261 = smul.addr %s260, 8
          %s262 = scalar_lea.vmem [#allocation6], %s261
          %s263 = smul.u32 8, %s24
          %265 = vsyncadd %s259, 0
          %s266 = scalar_lea.hbm %s4, %s263
          %s268 = sshll.u32 %s266, 4
          %s269 = int_to_ptr.hbm [resolvable:$true] %s268
          %s270 = sshll.u32 %s262, 4
          %s271 = int_to_ptr.vmem [resolvable:$true] %s270
          %273 = dma.hbm_to_vmem [thread:$0]  %s269, 128, %s271, %s259
        $region36: #{mlp_forward.1} parent=23 // pred_fallthru
          _
      $region24: #{mlp_forward.1} parent=5 // pred_fallthru
        _
      %p274 = scmp.le.s32.totalorder 1, %s17
      %p275 = scmp.lt.s32.totalorder %s17, 3
      %p276 = pnand %p274, %p275
      %p277 = pneg %p276
      // Predicated region
      $region37: #{mlp_forward.1} parent=5 // pred_check
        _
      $region38: #{mlp_forward.1} parent=5 // pred_check_branch
        %279 = sbr.rel (%p276) target = $region40
      $region39: #{mlp_forward.1} parent=5 // pred_region
        %s280 = ssub.s32 %s17, 1
        %s281 = sand.u32 %s89, 1
        %s282 = scalar_lea.sflag [#allocation3], %s281
        %s283 = sand.u32 %s89, 1
        %s284 = smul.addr %s283, 1536
        %s285 = scalar_lea.vmem [#allocation2], %s284
        // Predicated region
        $region41: #{mlp_forward.1} parent=39 // pred_check
          %p286 = pneg %p102
        $region42: #{mlp_forward.1} parent=39 // pred_check_branch
          %288 = sbr.rel (%p286) target = $region44
        $region43: #{mlp_forward.1} parent=39 // pred_region
          %290 = dma.done %s282, 24576
        $region44: #{mlp_forward.1} parent=39 // pred_fallthru
          _
        %s291 = sand.u32 %s22, 1
        %s292 = scalar_lea.sflag [#allocation5], %s291
        %s293 = sand.u32 %s115, 1
        %s294 = smul.addr %s293, 8
        %s295 = scalar_lea.vmem [#allocation4], %s294
        // Predicated region
        $region45: #{mlp_forward.1} parent=39 // pred_check
          %p296 = pneg %p128
        $region46: #{mlp_forward.1} parent=39 // pred_check_branch
          %298 = sbr.rel (%p296) target = $region48
        $region47: #{mlp_forward.1} parent=39 // pred_region
          %300 = dma.done %s292, 128
        $region48: #{mlp_forward.1} parent=39 // pred_fallthru
          _
        %s301 = sand.u32 %s22, 1
        %s302 = scalar_lea.sflag [#allocation5], %s301
        %s303 = sand.u32 %s141, 1
        %s304 = smul.addr %s303, 8
        %s305 = scalar_lea.vmem [#allocation6], %s304
        // Predicated region
        $region49: #{mlp_forward.1} parent=39 // pred_check
          %p306 = pneg %p154
        $region50: #{mlp_forward.1} parent=39 // pred_check_branch
          %308 = sbr.rel (%p306) target = $region52
        $region51: #{mlp_forward.1} parent=39 // pred_region
          %310 = dma.done %s302, 128
        $region52: #{mlp_forward.1} parent=39 // pred_fallthru
          _
        %s311 = smul.u32 25, %s27
        %p312 = scmp.lt.s32.totalorder %s311, 24
        %s313 = scalar_select %p312, %s311, 24
        %s314 = smul.addr %s313, 3
        %s315 = smul.addr %s314, 4
        %s316 = scalar_lea.vmem %s0, %s315
        %p317 = pneg %p55
        %p318 = pneg %p52
        %p319 = pneg %p76
        %p320 = pneg %p73
        %s321 = sand.u32 %s89, 1
        %s322 = scalar_lea.sflag [#allocation3], %s321
        %s323 = sand.u32 %s89, 1
        %s324 = smul.addr %s323, 1536
        %s325 = scalar_lea.vmem [#allocation2], %s324
        %p326 = pneg %p102
        %p327 = pneg %p99
        %s328 = sand.u32 %s22, 1
        %s329 = scalar_lea.sflag [#allocation5], %s328
        %s330 = sand.u32 %s115, 1
        %s331 = smul.addr %s330, 8
        %s332 = scalar_lea.vmem [#allocation4], %s331
        %p333 = pneg %p128
        %p334 = pneg %p125
        %s335 = sand.u32 %s22, 1
        %s336 = scalar_lea.sflag [#allocation5], %s335
        %s337 = sand.u32 %s141, 1
        %s338 = smul.addr %s337, 8
        %s339 = scalar_lea.vmem [#allocation6], %s338
        %p340 = pneg %p154
        %p341 = pneg %p151
        %p342 = pneg %p182
        %p343 = pneg %p179
        %p344 = scmp.lt.s32.totalorder %s26, 1
        %s345 = scalar_select %p344, %s26, 1
        %p346 = scmp.lt.s32.totalorder %s27, 0
        %s347 = scalar_select %p346, %s27, 0
        %s348 = sadd.s32 %s347, %s345
        %s349 = smul.addr %s348, 2
        %s350 = scalar_lea.vmem %s5, %s349
        %s351 = smul.u32 25, %s27
        %p352 = scmp.lt.s32.totalorder %s351, 24
        %s353 = scalar_select %p352, %s351, 24
        %s354 = smul.addr %s353, 3
        %s355 = smul.addr %s354, 4
        %s356 = scalar_lea.vmem %s0, %s355
        %s357 = smul.u32 25, %s27
        %s358 = smul.u32 8, %s26
        %s359 = smul.u32 8, %s26
        %s360 = smul.u32 8, %s26
        %p361 = scmp.lt.s32.totalorder %s26, 1
        %s362 = scalar_select %p361, %s26, 1
        %p363 = scmp.lt.s32.totalorder %s27, 0
        %s364 = scalar_select %p363, %s27, 0
        %s365 = sadd.s32 %s364, %s362
        %s366 = smul.addr %s365, 2
        %s367 = scalar_lea.vmem %s5, %s366
        %v369 = vld [vmem:[%s356] sm:$0xff]
        %v370 = vld [vmem:[%s356 + $0x8] sm:$0xf]
        %v371 = vld [vmem:[%s356 + $0xc] sm:$0xff]
        %v372 = vld [vmem:[%s356 + $0x14] sm:$0xf]
        %v373 = vld [vmem:[%s356 + $0x18] sm:$0xff]
        %v374 = vld [vmem:[%s356 + $0x20] sm:$0xf]
        %v375 = vld [vmem:[%s356 + $0x24] sm:$0xff]
        %v376 = vld [vmem:[%s356 + $0x2c] sm:$0xf]
        %v377 = vld [vmem:[%s356 + $0x30] sm:$0xff]
        %v378 = vld [vmem:[%s356 + $0x38] sm:$0xf]
        %v379 = vld [vmem:[%s356 + $0x3c] sm:$0xff]
        %v380 = vld [vmem:[%s356 + $0x44] sm:$0xf]
        %v381 = vld [vmem:[%s356 + $0x48] sm:$0xff]
        %v382 = vld [vmem:[%s356 + $0x50] sm:$0xf]
        %v383 = vld [vmem:[%s356 + $0x54] sm:$0xff]
        %v384 = vld [vmem:[%s356 + $0x5c] sm:$0xf]
        %v385 = vld [vmem:[%s356 + $0x60] sm:$0xff]
        %v386 = vld [vmem:[%s356 + $0x68] sm:$0xf]
        %v387 = vld [vmem:[%s356 + $0x6c] sm:$0xff]
        %v388 = vld [vmem:[%s356 + $0x74] sm:$0xf]
        %v389 = vld [vmem:[%s356 + $0x78] sm:$0xff]
        %v390 = vld [vmem:[%s356 + $0x80] sm:$0xf]
        %v391 = vld [vmem:[%s356 + $0x84] sm:$0xff]
        %v392 = vld [vmem:[%s356 + $0x8c] sm:$0xf]
        %v393 = vld [vmem:[%s356 + $0x90] sm:$0xff]
        %v394 = vld [vmem:[%s356 + $0x98] sm:$0xf]
        %v395 = vld [vmem:[%s356 + $0x9c] sm:$0xff]
        %v396 = vld [vmem:[%s356 + $0xa4] sm:$0xf]
        %v397 = vld [vmem:[%s356 + $0xa8] sm:$0xff]
        %v398 = vld [vmem:[%s356 + $0xb0] sm:$0xf]
        %v399 = vld [vmem:[%s356 + $0xb4] sm:$0xff]
        %v400 = vld [vmem:[%s356 + $0xbc] sm:$0xf]
        %v401 = vld [vmem:[%s356 + $0xc0] sm:$0xff]
        %v402 = vld [vmem:[%s356 + $0xc8] sm:$0xf]
        %v403 = vld [vmem:[%s356 + $0xcc] sm:$0xff]
        %v404 = vld [vmem:[%s356 + $0xd4] sm:$0xf]
        %v405 = vld [vmem:[%s356 + $0xd8] sm:$0xff]
        %v406 = vld [vmem:[%s356 + $0xe0] sm:$0xf]
        %v407 = vld [vmem:[%s356 + $0xe4] sm:$0xff]
        %v408 = vld [vmem:[%s356 + $0xec] sm:$0xf]
        %v409 = vld [vmem:[%s356 + $0xf0] sm:$0xff]
        %v410 = vld [vmem:[%s356 + $0xf8] sm:$0xf]
        %v411 = vld [vmem:[%s356 + $0xfc] sm:$0xff]
        %v412 = vld [vmem:[%s356 + $0x104] sm:$0xf]
        %v413 = vld [vmem:[%s356 + $0x108] sm:$0xff]
        %v414 = vld [vmem:[%s356 + $0x110] sm:$0xf]
        %v415 = vld [vmem:[%s356 + $0x114] sm:$0xff]
        %v416 = vld [vmem:[%s356 + $0x11c] sm:$0xf]
        %v417 = vld [vmem:[%s356 + $0x120] sm:$0xff]
        %v418 = vld [vmem:[%s356 + $0x128] sm:$0xf]
        %v419 = vld [vmem:[%s285] sm:$0xff]
        %v420 = vld [vmem:[%s285 + $0x8] sm:$0xff]
        %v421 = vld [vmem:[%s285 + $0x10] sm:$0xff]
        %v422 = vld [vmem:[%s285 + $0x18] sm:$0xff]
        %v423 = vld [vmem:[%s285 + $0x20] sm:$0xff]
        %v424 = vld [vmem:[%s285 + $0x28] sm:$0xff]
        %v425 = vld [vmem:[%s285 + $0x30] sm:$0xff]
        %v426 = vld [vmem:[%s285 + $0x38] sm:$0xff]
        %v427 = vld [vmem:[%s285 + $0x40] sm:$0xff]
        %v428 = vld [vmem:[%s285 + $0x48] sm:$0xff]
        %v429 = vld [vmem:[%s285 + $0x50] sm:$0xff]
        %v430 = vld [vmem:[%s285 + $0x58] sm:$0xff]
        %v431 = vld [vmem:[%s285 + $0x60] sm:$0xff]
        %v432 = vld [vmem:[%s285 + $0x68] sm:$0xff]
        %v433 = vld [vmem:[%s285 + $0x70] sm:$0xff]
        %v434 = vld [vmem:[%s285 + $0x78] sm:$0xff]
        %v435 = vld [vmem:[%s285 + $0x80] sm:$0xff]
        %v436 = vld [vmem:[%s285 + $0x88] sm:$0xff]
        %v437 = vld [vmem:[%s285 + $0x90] sm:$0xff]
        %v438 = vld [vmem:[%s285 + $0x98] sm:$0xff]
        %v439 = vld [vmem:[%s285 + $0xa0] sm:$0xff]
        %v440 = vld [vmem:[%s285 + $0xa8] sm:$0xff]
        %v441 = vld [vmem:[%s285 + $0xb0] sm:$0xff]
        %v442 = vld [vmem:[%s285 + $0xb8] sm:$0xff]
        %v443 = vld [vmem:[%s285 + $0xc0] sm:$0xff]
        %v444 = vld [vmem:[%s285 + $0xc8] sm:$0xff]
        %v445 = vld [vmem:[%s285 + $0xd0] sm:$0xff]
        %v446 = vld [vmem:[%s285 + $0xd8] sm:$0xff]
        %v447 = vld [vmem:[%s285 + $0xe0] sm:$0xff]
        %v448 = vld [vmem:[%s285 + $0xe8] sm:$0xff]
        %v449 = vld [vmem:[%s285 + $0xf0] sm:$0xff]
        %v450 = vld [vmem:[%s285 + $0xf8] sm:$0xff]
        %v451 = vld [vmem:[%s285 + $0x100] sm:$0xff]
        %v452 = vld [vmem:[%s285 + $0x108] sm:$0xff]
        %v453 = vld [vmem:[%s285 + $0x110] sm:$0xff]
        %v454 = vld [vmem:[%s285 + $0x118] sm:$0xff]
        %v455 = vld [vmem:[%s285 + $0x120] sm:$0xff]
        %v456 = vld [vmem:[%s285 + $0x128] sm:$0xff]
        %v457 = vld [vmem:[%s285 + $0x130] sm:$0xff]
        %v458 = vld [vmem:[%s285 + $0x138] sm:$0xff]
        %v459 = vld [vmem:[%s285 + $0x140] sm:$0xff]
        %v460 = vld [vmem:[%s285 + $0x148] sm:$0xff]
        %v461 = vld [vmem:[%s285 + $0x150] sm:$0xff]
        %v462 = vld [vmem:[%s285 + $0x158] sm:$0xff]
        %v463 = vld [vmem:[%s285 + $0x160] sm:$0xff]
        %v464 = vld [vmem:[%s285 + $0x168] sm:$0xff]
        %v465 = vld [vmem:[%s285 + $0x170] sm:$0xff]
        %v466 = vld [vmem:[%s285 + $0x178] sm:$0xff]
        %v467 = vld [vmem:[%s285 + $0x180] sm:$0xff]
        %v468 = vld [vmem:[%s285 + $0x188] sm:$0xff]
        %v469 = vld [vmem:[%s285 + $0x190] sm:$0xff]
        %v470 = vld [vmem:[%s285 + $0x198] sm:$0xff]
        %v471 = vld [vmem:[%s285 + $0x1a0] sm:$0xff]
        %v472 = vld [vmem:[%s285 + $0x1a8] sm:$0xff]
        %v473 = vld [vmem:[%s285 + $0x1b0] sm:$0xff]
        %v474 = vld [vmem:[%s285 + $0x1b8] sm:$0xff]
        %v475 = vld [vmem:[%s285 + $0x1c0] sm:$0xff]
        %v476 = vld [vmem:[%s285 + $0x1c8] sm:$0xff]
        %v477 = vld [vmem:[%s285 + $0x1d0] sm:$0xff]
        %v478 = vld [vmem:[%s285 + $0x1d8] sm:$0xff]
        %v479 = vld [vmem:[%s285 + $0x1e0] sm:$0xff]
        %v480 = vld [vmem:[%s285 + $0x1e8] sm:$0xff]
        %v481 = vld [vmem:[%s285 + $0x1f0] sm:$0xff]
        %v482 = vld [vmem:[%s285 + $0x1f8] sm:$0xff]
        %v483 = vld [vmem:[%s285 + $0x200] sm:$0xff]
        %v484 = vld [vmem:[%s285 + $0x208] sm:$0xff]
        %v485 = vld [vmem:[%s285 + $0x210] sm:$0xff]
        %v486 = vld [vmem:[%s285 + $0x218] sm:$0xff]
        %v487 = vld [vmem:[%s285 + $0x220] sm:$0xff]
        %v488 = vld [vmem:[%s285 + $0x228] sm:$0xff]
        %v489 = vld [vmem:[%s285 + $0x230] sm:$0xff]
        %v490 = vld [vmem:[%s285 + $0x238] sm:$0xff]
        %v491 = vld [vmem:[%s285 + $0x240] sm:$0xff]
        %v492 = vld [vmem:[%s285 + $0x248] sm:$0xff]
        %v493 = vld [vmem:[%s285 + $0x250] sm:$0xff]
        %v494 = vld [vmem:[%s285 + $0x258] sm:$0xff]
        %v495 = vld [vmem:[%s285 + $0x260] sm:$0xff]
        %v496 = vld [vmem:[%s285 + $0x268] sm:$0xff]
        %v497 = vld [vmem:[%s285 + $0x270] sm:$0xff]
        %v498 = vld [vmem:[%s285 + $0x278] sm:$0xff]
        %v499 = vld [vmem:[%s285 + $0x280] sm:$0xff]
        %v500 = vld [vmem:[%s285 + $0x288] sm:$0xff]
        %v501 = vld [vmem:[%s285 + $0x290] sm:$0xff]
        %v502 = vld [vmem:[%s285 + $0x298] sm:$0xff]
        %v503 = vld [vmem:[%s285 + $0x2a0] sm:$0xff]
        %v504 = vld [vmem:[%s285 + $0x2a8] sm:$0xff]
        %v505 = vld [vmem:[%s285 + $0x2b0] sm:$0xff]
        %v506 = vld [vmem:[%s285 + $0x2b8] sm:$0xff]
        %v507 = vld [vmem:[%s285 + $0x2c0] sm:$0xff]
        %v508 = vld [vmem:[%s285 + $0x2c8] sm:$0xff]
        %v509 = vld [vmem:[%s285 + $0x2d0] sm:$0xff]
        %v510 = vld [vmem:[%s285 + $0x2d8] sm:$0xff]
        %v511 = vld [vmem:[%s285 + $0x2e0] sm:$0xff]
        %v512 = vld [vmem:[%s285 + $0x2e8] sm:$0xff]
        %v513 = vld [vmem:[%s285 + $0x2f0] sm:$0xff]
        %v514 = vld [vmem:[%s285 + $0x2f8] sm:$0xff]
        %v515 = vld [vmem:[%s285 + $0x300] sm:$0xff]
        %v516 = vld [vmem:[%s285 + $0x308] sm:$0xff]
        %v517 = vld [vmem:[%s285 + $0x310] sm:$0xff]
        %v518 = vld [vmem:[%s285 + $0x318] sm:$0xff]
        %v519 = vld [vmem:[%s285 + $0x320] sm:$0xff]
        %v520 = vld [vmem:[%s285 + $0x328] sm:$0xff]
        %v521 = vld [vmem:[%s285 + $0x330] sm:$0xff]
        %v522 = vld [vmem:[%s285 + $0x338] sm:$0xff]
        %v523 = vld [vmem:[%s285 + $0x340] sm:$0xff]
        %v524 = vld [vmem:[%s285 + $0x348] sm:$0xff]
        %v525 = vld [vmem:[%s285 + $0x350] sm:$0xff]
        %v526 = vld [vmem:[%s285 + $0x358] sm:$0xff]
        %v527 = vld [vmem:[%s285 + $0x360] sm:$0xff]
        %v528 = vld [vmem:[%s285 + $0x368] sm:$0xff]
        %v529 = vld [vmem:[%s285 + $0x370] sm:$0xff]
        %v530 = vld [vmem:[%s285 + $0x378] sm:$0xff]
        %v531 = vld [vmem:[%s285 + $0x380] sm:$0xff]
        %v532 = vld [vmem:[%s285 + $0x388] sm:$0xff]
        %v533 = vld [vmem:[%s285 + $0x390] sm:$0xff]
        %v534 = vld [vmem:[%s285 + $0x398] sm:$0xff]
        %v535 = vld [vmem:[%s285 + $0x3a0] sm:$0xff]
        %v536 = vld [vmem:[%s285 + $0x3a8] sm:$0xff]
        %v537 = vld [vmem:[%s285 + $0x3b0] sm:$0xff]
        %v538 = vld [vmem:[%s285 + $0x3b8] sm:$0xff]
        %v539 = vld [vmem:[%s285 + $0x3c0] sm:$0xff]
        %v540 = vld [vmem:[%s285 + $0x3c8] sm:$0xff]
        %v541 = vld [vmem:[%s285 + $0x3d0] sm:$0xff]
        %v542 = vld [vmem:[%s285 + $0x3d8] sm:$0xff]
        %v543 = vld [vmem:[%s285 + $0x3e0] sm:$0xff]
        %v544 = vld [vmem:[%s285 + $0x3e8] sm:$0xff]
        %v545 = vld [vmem:[%s285 + $0x3f0] sm:$0xff]
        %v546 = vld [vmem:[%s285 + $0x3f8] sm:$0xff]
        %v547 = vld [vmem:[%s285 + $0x400] sm:$0xff]
        %v548 = vld [vmem:[%s285 + $0x408] sm:$0xff]
        %v549 = vld [vmem:[%s285 + $0x410] sm:$0xff]
        %v550 = vld [vmem:[%s285 + $0x418] sm:$0xff]
        %v551 = vld [vmem:[%s285 + $0x420] sm:$0xff]
        %v552 = vld [vmem:[%s285 + $0x428] sm:$0xff]
        %v553 = vld [vmem:[%s285 + $0x430] sm:$0xff]
        %v554 = vld [vmem:[%s285 + $0x438] sm:$0xff]
        %v555 = vld [vmem:[%s285 + $0x440] sm:$0xff]
        %v556 = vld [vmem:[%s285 + $0x448] sm:$0xff]
        %v557 = vld [vmem:[%s285 + $0x450] sm:$0xff]
        %v558 = vld [vmem:[%s285 + $0x458] sm:$0xff]
        %v559 = vld [vmem:[%s285 + $0x460] sm:$0xff]
        %v560 = vld [vmem:[%s285 + $0x468] sm:$0xff]
        %v561 = vld [vmem:[%s285 + $0x470] sm:$0xff]
        %v562 = vld [vmem:[%s285 + $0x478] sm:$0xff]
        %v563 = vld [vmem:[%s285 + $0x480] sm:$0xff]
        %v564 = vld [vmem:[%s285 + $0x488] sm:$0xff]
        %v565 = vld [vmem:[%s285 + $0x490] sm:$0xff]
        %v566 = vld [vmem:[%s285 + $0x498] sm:$0xff]
        %v567 = vld [vmem:[%s285 + $0x4a0] sm:$0xff]
        %v568 = vld [vmem:[%s285 + $0x4a8] sm:$0xff]
        %v569 = vld [vmem:[%s285 + $0x4b0] sm:$0xff]
        %v570 = vld [vmem:[%s285 + $0x4b8] sm:$0xff]
        %v571 = vld [vmem:[%s285 + $0x4c0] sm:$0xff]
        %v572 = vld [vmem:[%s285 + $0x4c8] sm:$0xff]
        %v573 = vld [vmem:[%s285 + $0x4d0] sm:$0xff]
        %v574 = vld [vmem:[%s285 + $0x4d8] sm:$0xff]
        %v575 = vld [vmem:[%s285 + $0x4e0] sm:$0xff]
        %v576 = vld [vmem:[%s285 + $0x4e8] sm:$0xff]
        %v577 = vld [vmem:[%s285 + $0x4f0] sm:$0xff]
        %v578 = vld [vmem:[%s285 + $0x4f8] sm:$0xff]
        %v579 = vld [vmem:[%s285 + $0x500] sm:$0xff]
        %v580 = vld [vmem:[%s285 + $0x508] sm:$0xff]
        %v581 = vld [vmem:[%s285 + $0x510] sm:$0xff]
        %v582 = vld [vmem:[%s285 + $0x518] sm:$0xff]
        %v583 = vld [vmem:[%s285 + $0x520] sm:$0xff]
        %v584 = vld [vmem:[%s285 + $0x528] sm:$0xff]
        %v585 = vld [vmem:[%s285 + $0x530] sm:$0xff]
        %v586 = vld [vmem:[%s285 + $0x538] sm:$0xff]
        %v587 = vld [vmem:[%s285 + $0x540] sm:$0xff]
        %v588 = vld [vmem:[%s285 + $0x548] sm:$0xff]
        %v589 = vld [vmem:[%s285 + $0x550] sm:$0xff]
        %v590 = vld [vmem:[%s285 + $0x558] sm:$0xff]
        %v591 = vld [vmem:[%s285 + $0x560] sm:$0xff]
        %v592 = vld [vmem:[%s285 + $0x568] sm:$0xff]
        %v593 = vld [vmem:[%s285 + $0x570] sm:$0xff]
        %v594 = vld [vmem:[%s285 + $0x578] sm:$0xff]
        %v595 = vld [vmem:[%s285 + $0x580] sm:$0xff]
        %v596 = vld [vmem:[%s285 + $0x588] sm:$0xff]
        %v597 = vld [vmem:[%s285 + $0x590] sm:$0xff]
        %v598 = vld [vmem:[%s285 + $0x598] sm:$0xff]
        %v599 = vld [vmem:[%s285 + $0x5a0] sm:$0xff]
        %v600 = vld [vmem:[%s285 + $0x5a8] sm:$0xff]
        %v601 = vld [vmem:[%s285 + $0x5b0] sm:$0xff]
        %v602 = vld [vmem:[%s285 + $0x5b8] sm:$0xff]
        %v603 = vld [vmem:[%s285 + $0x5c0] sm:$0xff]
        %v604 = vld [vmem:[%s285 + $0x5c8] sm:$0xff]
        %v605 = vld [vmem:[%s285 + $0x5d0] sm:$0xff]
        %v606 = vld [vmem:[%s285 + $0x5d8] sm:$0xff]
        %v607 = vld [vmem:[%s285 + $0x5e0] sm:$0xff]
        %v608 = vld [vmem:[%s285 + $0x5e8] sm:$0xff]
        %v609 = vld [vmem:[%s285 + $0x5f0] sm:$0xff]
        %v610 = vld [vmem:[%s285 + $0x5f8] sm:$0xff]
        %v611 = vld [vmem:[%s295] sm:$0xff]
        %v613 = vperm.slane %v611, 0
        %v614 = vperm.slane %v611, 1
        %v615 = vperm.slane %v611, 2
        %v616 = vperm.slane %v611, 3
        %v617 = vperm.slane %v611, 4
        %v618 = vperm.slane %v611, 5
        %v619 = vperm.slane %v611, 6
        %v620 = vperm.slane %v611, 7
        %v679 = vunpack.c.l.b16 %v369
        %v680 = vunpack.c.h.b16 %v369
        %v681 = vunpack.c.l.b16 %v370
        %v682 = vunpack.c.l.b16 %v371
        %v683 = vunpack.c.h.b16 %v371
        %v684 = vunpack.c.l.b16 %v372
        %v685 = vunpack.c.l.b16 %v373
        %v686 = vunpack.c.h.b16 %v373
        %v687 = vunpack.c.l.b16 %v374
        %v688 = vunpack.c.l.b16 %v375
        %v689 = vunpack.c.h.b16 %v375
        %v690 = vunpack.c.l.b16 %v376
        %v691 = vunpack.c.l.b16 %v377
        %v692 = vunpack.c.h.b16 %v377
        %v693 = vunpack.c.l.b16 %v378
        %v694 = vunpack.c.l.b16 %v379
        %v695 = vunpack.c.h.b16 %v379
        %v696 = vunpack.c.l.b16 %v380
        %v697 = vunpack.c.l.b16 %v381
        %v698 = vunpack.c.h.b16 %v381
        %v699 = vunpack.c.l.b16 %v382
        %v700 = vunpack.c.l.b16 %v383
        %v701 = vunpack.c.h.b16 %v383
        %v702 = vunpack.c.l.b16 %v384
        %v703 = vunpack.c.l.b16 %v385
        %v704 = vunpack.c.h.b16 %v385
        %v705 = vunpack.c.l.b16 %v386
        %v706 = vunpack.c.l.b16 %v387
        %v707 = vunpack.c.h.b16 %v387
        %v708 = vunpack.c.l.b16 %v388
        %v709 = vunpack.c.l.b16 %v389
        %v710 = vunpack.c.h.b16 %v389
        %v711 = vunpack.c.l.b16 %v390
        %v712 = vunpack.c.l.b16 %v391
        %v713 = vunpack.c.h.b16 %v391
        %v714 = vunpack.c.l.b16 %v392
        %v715 = vunpack.c.l.b16 %v393
        %v716 = vunpack.c.h.b16 %v393
        %v717 = vunpack.c.l.b16 %v394
        %v718 = vunpack.c.l.b16 %v395
        %v719 = vunpack.c.h.b16 %v395
        %v720 = vunpack.c.l.b16 %v396
        %v721 = vunpack.c.l.b16 %v397
        %v722 = vunpack.c.h.b16 %v397
        %v723 = vunpack.c.l.b16 %v398
        %v724 = vunpack.c.l.b16 %v399
        %v725 = vunpack.c.h.b16 %v399
        %v726 = vunpack.c.l.b16 %v400
        %v727 = vunpack.c.l.b16 %v401
        %v728 = vunpack.c.h.b16 %v401
        %v729 = vunpack.c.l.b16 %v402
        %v730 = vunpack.c.l.b16 %v403
        %v731 = vunpack.c.h.b16 %v403
        %v732 = vunpack.c.l.b16 %v404
        %v733 = vunpack.c.l.b16 %v405
        %v734 = vunpack.c.h.b16 %v405
        %v735 = vunpack.c.l.b16 %v406
        %v736 = vunpack.c.l.b16 %v407
        %v737 = vunpack.c.h.b16 %v407
        %v738 = vunpack.c.l.b16 %v408
        %v739 = vunpack.c.l.b16 %v409
        %v740 = vunpack.c.h.b16 %v409
        %v741 = vunpack.c.l.b16 %v410
        %v742 = vunpack.c.l.b16 %v411
        %v743 = vunpack.c.h.b16 %v411
        %v744 = vunpack.c.l.b16 %v412
        %v745 = vunpack.c.l.b16 %v413
        %v746 = vunpack.c.h.b16 %v413
        %v747 = vunpack.c.l.b16 %v414
        %v748 = vunpack.c.l.b16 %v415
        %v749 = vunpack.c.h.b16 %v415
        %v750 = vunpack.c.l.b16 %v416
        %v751 = vunpack.c.l.b16 %v417
        %v752 = vunpack.c.h.b16 %v417
        %v753 = vunpack.c.l.b16 %v418
        %v754 = vpack.c.b16 %v682, %v679
        %v755 = vpack.c.b16 %v683, %v680
        %v756 = vpack.c.b16 %v684, %v681
        %v757 = vpack.c.b16 %v688, %v685
        %v758 = vpack.c.b16 %v689, %v686
        %v759 = vpack.c.b16 %v690, %v687
        %v760 = vpack.c.b16 %v694, %v691
        %v761 = vpack.c.b16 %v695, %v692
        %v762 = vpack.c.b16 %v696, %v693
        %v763 = vpack.c.b16 %v700, %v697
        %v764 = vpack.c.b16 %v701, %v698
        %v765 = vpack.c.b16 %v702, %v699
        %v766 = vpack.c.b16 %v706, %v703
        %v767 = vpack.c.b16 %v707, %v704
        %v768 = vpack.c.b16 %v708, %v705
        %v769 = vpack.c.b16 %v712, %v709
        %v770 = vpack.c.b16 %v713, %v710
        %v771 = vpack.c.b16 %v714, %v711
        %v772 = vpack.c.b16 %v718, %v715
        %v773 = vpack.c.b16 %v719, %v716
        %v774 = vpack.c.b16 %v720, %v717
        %v775 = vpack.c.b16 %v724, %v721
        %v776 = vpack.c.b16 %v725, %v722
        %v777 = vpack.c.b16 %v726, %v723
        %v778 = vpack.c.b16 %v730, %v727
        %v779 = vpack.c.b16 %v731, %v728
        %v780 = vpack.c.b16 %v732, %v729
        %v781 = vpack.c.b16 %v736, %v733
        %v782 = vpack.c.b16 %v737, %v734
        %v783 = vpack.c.b16 %v738, %v735
        %v784 = vpack.c.b16 %v742, %v739
        %v785 = vpack.c.b16 %v743, %v740
        %v786 = vpack.c.b16 %v744, %v741
        %v787 = vpack.c.b16 %v748, %v745
        %v788 = vpack.c.b16 %v749, %v746
        %v789 = vpack.c.b16 %v750, %v747
        %v790 = vpack.c.b16 %v751, %v751
        %v791 = vpack.c.b16 %v752, %v752
        %v792 = vpack.c.b16 %v753, %v753
        %v1024 = vunpack.c.l.b16 %v419
        %v1025 = vunpack.c.h.b16 %v419
        %v1026 = vunpack.c.l.b16 %v420
        %v1027 = vunpack.c.h.b16 %v420
        %v1028 = vunpack.c.l.b16 %v421
        %v1029 = vunpack.c.h.b16 %v421
        %v1030 = vunpack.c.l.b16 %v422
        %v1031 = vunpack.c.h.b16 %v422
        %v1032 = vunpack.c.l.b16 %v423
        %v1033 = vunpack.c.h.b16 %v423
        %v1034 = vunpack.c.l.b16 %v424
        %v1035 = vunpack.c.h.b16 %v424
        %v1036 = vunpack.c.l.b16 %v425
        %v1037 = vunpack.c.h.b16 %v425
        %v1038 = vunpack.c.l.b16 %v426
        %v1039 = vunpack.c.h.b16 %v426
        %v1040 = vunpack.c.l.b16 %v427
        %v1041 = vunpack.c.h.b16 %v427
        %v1042 = vunpack.c.l.b16 %v428
        %v1043 = vunpack.c.h.b16 %v428
        %v1044 = vunpack.c.l.b16 %v429
        %v1045 = vunpack.c.h.b16 %v429
        %v1046 = vunpack.c.l.b16 %v430
        %v1047 = vunpack.c.h.b16 %v430
        %v1048 = vunpack.c.l.b16 %v431
        %v1049 = vunpack.c.h.b16 %v431
        %v1050 = vunpack.c.l.b16 %v432
        %v1051 = vunpack.c.h.b16 %v432
        %v1052 = vunpack.c.l.b16 %v433
        %v1053 = vunpack.c.h.b16 %v433
        %v1054 = vunpack.c.l.b16 %v434
        %v1055 = vunpack.c.h.b16 %v434
        %v1056 = vunpack.c.l.b16 %v435
        %v1057 = vunpack.c.h.b16 %v435
        %v1058 = vunpack.c.l.b16 %v436
        %v1059 = vunpack.c.h.b16 %v436
        %v1060 = vunpack.c.l.b16 %v437
        %v1061 = vunpack.c.h.b16 %v437
        %v1062 = vunpack.c.l.b16 %v438
        %v1063 = vunpack.c.h.b16 %v438
        %v1064 = vunpack.c.l.b16 %v439
        %v1065 = vunpack.c.h.b16 %v439
        %v1066 = vunpack.c.l.b16 %v440
        %v1067 = vunpack.c.h.b16 %v440
        %v1068 = vunpack.c.l.b16 %v441
        %v1069 = vunpack.c.h.b16 %v441
        %v1070 = vunpack.c.l.b16 %v442
        %v1071 = vunpack.c.h.b16 %v442
        %v1072 = vunpack.c.l.b16 %v443
        %v1073 = vunpack.c.h.b16 %v443
        %v1074 = vunpack.c.l.b16 %v444
        %v1075 = vunpack.c.h.b16 %v444
        %v1076 = vunpack.c.l.b16 %v445
        %v1077 = vunpack.c.h.b16 %v445
        %v1078 = vunpack.c.l.b16 %v446
        %v1079 = vunpack.c.h.b16 %v446
        %v1080 = vunpack.c.l.b16 %v447
        %v1081 = vunpack.c.h.b16 %v447
        %v1082 = vunpack.c.l.b16 %v448
        %v1083 = vunpack.c.h.b16 %v448
        %v1084 = vunpack.c.l.b16 %v449
        %v1085 = vunpack.c.h.b16 %v449
        %v1086 = vunpack.c.l.b16 %v450
        %v1087 = vunpack.c.h.b16 %v450
        %v1088 = vunpack.c.l.b16 %v451
        %v1089 = vunpack.c.h.b16 %v451
        %v1090 = vunpack.c.l.b16 %v452
        %v1091 = vunpack.c.h.b16 %v452
        %v1092 = vunpack.c.l.b16 %v453
        %v1093 = vunpack.c.h.b16 %v453
        %v1094 = vunpack.c.l.b16 %v454
        %v1095 = vunpack.c.h.b16 %v454
        %v1096 = vunpack.c.l.b16 %v455
        %v1097 = vunpack.c.h.b16 %v455
        %v1098 = vunpack.c.l.b16 %v456
        %v1099 = vunpack.c.h.b16 %v456
        %v1100 = vunpack.c.l.b16 %v457
        %v1101 = vunpack.c.h.b16 %v457
        %v1102 = vunpack.c.l.b16 %v458
        %v1103 = vunpack.c.h.b16 %v458
        %v1104 = vunpack.c.l.b16 %v459
        %v1105 = vunpack.c.h.b16 %v459
        %v1106 = vunpack.c.l.b16 %v460
        %v1107 = vunpack.c.h.b16 %v460
        %v1108 = vunpack.c.l.b16 %v461
        %v1109 = vunpack.c.h.b16 %v461
        %v1110 = vunpack.c.l.b16 %v462
        %v1111 = vunpack.c.h.b16 %v462
        %v1112 = vunpack.c.l.b16 %v463
        %v1113 = vunpack.c.h.b16 %v463
        %v1114 = vunpack.c.l.b16 %v464
        %v1115 = vunpack.c.h.b16 %v464
        %v1116 = vunpack.c.l.b16 %v465
        %v1117 = vunpack.c.h.b16 %v465
        %v1118 = vunpack.c.l.b16 %v466
        %v1119 = vunpack.c.h.b16 %v466
        %v1120 = vunpack.c.l.b16 %v467
        %v1121 = vunpack.c.h.b16 %v467
        %v1122 = vunpack.c.l.b16 %v468
        %v1123 = vunpack.c.h.b16 %v468
        %v1124 = vunpack.c.l.b16 %v469
        %v1125 = vunpack.c.h.b16 %v469
        %v1126 = vunpack.c.l.b16 %v470
        %v1127 = vunpack.c.h.b16 %v470
        %v1128 = vunpack.c.l.b16 %v471
        %v1129 = vunpack.c.h.b16 %v471
        %v1130 = vunpack.c.l.b16 %v472
        %v1131 = vunpack.c.h.b16 %v472
        %v1132 = vunpack.c.l.b16 %v473
        %v1133 = vunpack.c.h.b16 %v473
        %v1134 = vunpack.c.l.b16 %v474
        %v1135 = vunpack.c.h.b16 %v474
        %v1136 = vunpack.c.l.b16 %v475
        %v1137 = vunpack.c.h.b16 %v475
        %v1138 = vunpack.c.l.b16 %v476
        %v1139 = vunpack.c.h.b16 %v476
        %v1140 = vunpack.c.l.b16 %v477
        %v1141 = vunpack.c.h.b16 %v477
        %v1142 = vunpack.c.l.b16 %v478
        %v1143 = vunpack.c.h.b16 %v478
        %v1144 = vunpack.c.l.b16 %v479
        %v1145 = vunpack.c.h.b16 %v479
        %v1146 = vunpack.c.l.b16 %v480
        %v1147 = vunpack.c.h.b16 %v480
        %v1148 = vunpack.c.l.b16 %v481
        %v1149 = vunpack.c.h.b16 %v481
        %v1150 = vunpack.c.l.b16 %v482
        %v1151 = vunpack.c.h.b16 %v482
        %v1152 = vunpack.c.l.b16 %v483
        %v1153 = vunpack.c.h.b16 %v483
        %v1154 = vunpack.c.l.b16 %v484
        %v1155 = vunpack.c.h.b16 %v484
        %v1156 = vunpack.c.l.b16 %v485
        %v1157 = vunpack.c.h.b16 %v485
        %v1158 = vunpack.c.l.b16 %v486
        %v1159 = vunpack.c.h.b16 %v486
        %v1160 = vunpack.c.l.b16 %v487
        %v1161 = vunpack.c.h.b16 %v487
        %v1162 = vunpack.c.l.b16 %v488
        %v1163 = vunpack.c.h.b16 %v488
        %v1164 = vunpack.c.l.b16 %v489
        %v1165 = vunpack.c.h.b16 %v489
        %v1166 = vunpack.c.l.b16 %v490
        %v1167 = vunpack.c.h.b16 %v490
        %v1168 = vunpack.c.l.b16 %v491
        %v1169 = vunpack.c.h.b16 %v491
        %v1170 = vunpack.c.l.b16 %v492
        %v1171 = vunpack.c.h.b16 %v492
        %v1172 = vunpack.c.l.b16 %v493
        %v1173 = vunpack.c.h.b16 %v493
        %v1174 = vunpack.c.l.b16 %v494
        %v1175 = vunpack.c.h.b16 %v494
        %v1176 = vunpack.c.l.b16 %v495
        %v1177 = vunpack.c.h.b16 %v495
        %v1178 = vunpack.c.l.b16 %v496
        %v1179 = vunpack.c.h.b16 %v496
        %v1180 = vunpack.c.l.b16 %v497
        %v1181 = vunpack.c.h.b16 %v497
        %v1182 = vunpack.c.l.b16 %v498
        %v1183 = vunpack.c.h.b16 %v498
        %v1184 = vunpack.c.l.b16 %v499
        %v1185 = vunpack.c.h.b16 %v499
        %v1186 = vunpack.c.l.b16 %v500
        %v1187 = vunpack.c.h.b16 %v500
        %v1188 = vunpack.c.l.b16 %v501
        %v1189 = vunpack.c.h.b16 %v501
        %v1190 = vunpack.c.l.b16 %v502
        %v1191 = vunpack.c.h.b16 %v502
        %v1192 = vunpack.c.l.b16 %v503
        %v1193 = vunpack.c.h.b16 %v503
        %v1194 = vunpack.c.l.b16 %v504
        %v1195 = vunpack.c.h.b16 %v504
        %v1196 = vunpack.c.l.b16 %v505
        %v1197 = vunpack.c.h.b16 %v505
        %v1198 = vunpack.c.l.b16 %v506
        %v1199 = vunpack.c.h.b16 %v506
        %v1200 = vunpack.c.l.b16 %v507
        %v1201 = vunpack.c.h.b16 %v507
        %v1202 = vunpack.c.l.b16 %v508
        %v1203 = vunpack.c.h.b16 %v508
        %v1204 = vunpack.c.l.b16 %v509
        %v1205 = vunpack.c.h.b16 %v509
        %v1206 = vunpack.c.l.b16 %v510
        %v1207 = vunpack.c.h.b16 %v510
        %v1208 = vunpack.c.l.b16 %v511
        %v1209 = vunpack.c.h.b16 %v511
        %v1210 = vunpack.c.l.b16 %v512
        %v1211 = vunpack.c.h.b16 %v512
        %v1212 = vunpack.c.l.b16 %v513
        %v1213 = vunpack.c.h.b16 %v513
        %v1214 = vunpack.c.l.b16 %v514
        %v1215 = vunpack.c.h.b16 %v514
        %v1216 = vunpack.c.l.b16 %v515
        %v1217 = vunpack.c.h.b16 %v515
        %v1218 = vunpack.c.l.b16 %v516
        %v1219 = vunpack.c.h.b16 %v516
        %v1220 = vunpack.c.l.b16 %v517
        %v1221 = vunpack.c.h.b16 %v517
        %v1222 = vunpack.c.l.b16 %v518
        %v1223 = vunpack.c.h.b16 %v518
        %v1224 = vunpack.c.l.b16 %v519
        %v1225 = vunpack.c.h.b16 %v519
        %v1226 = vunpack.c.l.b16 %v520
        %v1227 = vunpack.c.h.b16 %v520
        %v1228 = vunpack.c.l.b16 %v521
        %v1229 = vunpack.c.h.b16 %v521
        %v1230 = vunpack.c.l.b16 %v522
        %v1231 = vunpack.c.h.b16 %v522
        %v1232 = vunpack.c.l.b16 %v523
        %v1233 = vunpack.c.h.b16 %v523
        %v1234 = vunpack.c.l.b16 %v524
        %v1235 = vunpack.c.h.b16 %v524
        %v1236 = vunpack.c.l.b16 %v525
        %v1237 = vunpack.c.h.b16 %v525
        %v1238 = vunpack.c.l.b16 %v526
        %v1239 = vunpack.c.h.b16 %v526
        %v1240 = vunpack.c.l.b16 %v527
        %v1241 = vunpack.c.h.b16 %v527
        %v1242 = vunpack.c.l.b16 %v528
        %v1243 = vunpack.c.h.b16 %v528
        %v1244 = vunpack.c.l.b16 %v529
        %v1245 = vunpack.c.h.b16 %v529
        %v1246 = vunpack.c.l.b16 %v530
        %v1247 = vunpack.c.h.b16 %v530
        %v1248 = vunpack.c.l.b16 %v531
        %v1249 = vunpack.c.h.b16 %v531
        %v1250 = vunpack.c.l.b16 %v532
        %v1251 = vunpack.c.h.b16 %v532
        %v1252 = vunpack.c.l.b16 %v533
        %v1253 = vunpack.c.h.b16 %v533
        %v1254 = vunpack.c.l.b16 %v534
        %v1255 = vunpack.c.h.b16 %v534
        %v1256 = vunpack.c.l.b16 %v535
        %v1257 = vunpack.c.h.b16 %v535
        %v1258 = vunpack.c.l.b16 %v536
        %v1259 = vunpack.c.h.b16 %v536
        %v1260 = vunpack.c.l.b16 %v537
        %v1261 = vunpack.c.h.b16 %v537
        %v1262 = vunpack.c.l.b16 %v538
        %v1263 = vunpack.c.h.b16 %v538
        %v1264 = vunpack.c.l.b16 %v539
        %v1265 = vunpack.c.h.b16 %v539
        %v1266 = vunpack.c.l.b16 %v540
        %v1267 = vunpack.c.h.b16 %v540
        %v1268 = vunpack.c.l.b16 %v541
        %v1269 = vunpack.c.h.b16 %v541
        %v1270 = vunpack.c.l.b16 %v542
        %v1271 = vunpack.c.h.b16 %v542
        %v1272 = vunpack.c.l.b16 %v543
        %v1273 = vunpack.c.h.b16 %v543
        %v1274 = vunpack.c.l.b16 %v544
        %v1275 = vunpack.c.h.b16 %v544
        %v1276 = vunpack.c.l.b16 %v545
        %v1277 = vunpack.c.h.b16 %v545
        %v1278 = vunpack.c.l.b16 %v546
        %v1279 = vunpack.c.h.b16 %v546
        %v1280 = vunpack.c.l.b16 %v547
        %v1281 = vunpack.c.h.b16 %v547
        %v1282 = vunpack.c.l.b16 %v548
        %v1283 = vunpack.c.h.b16 %v548
        %v1284 = vunpack.c.l.b16 %v549
        %v1285 = vunpack.c.h.b16 %v549
        %v1286 = vunpack.c.l.b16 %v550
        %v1287 = vunpack.c.h.b16 %v550
        %v1288 = vunpack.c.l.b16 %v551
        %v1289 = vunpack.c.h.b16 %v551
        %v1290 = vunpack.c.l.b16 %v552
        %v1291 = vunpack.c.h.b16 %v552
        %v1292 = vunpack.c.l.b16 %v553
        %v1293 = vunpack.c.h.b16 %v553
        %v1294 = vunpack.c.l.b16 %v554
        %v1295 = vunpack.c.h.b16 %v554
        %v1296 = vunpack.c.l.b16 %v555
        %v1297 = vunpack.c.h.b16 %v555
        %v1298 = vunpack.c.l.b16 %v556
        %v1299 = vunpack.c.h.b16 %v556
        %v1300 = vunpack.c.l.b16 %v557
        %v1301 = vunpack.c.h.b16 %v557
        %v1302 = vunpack.c.l.b16 %v558
        %v1303 = vunpack.c.h.b16 %v558
        %v1304 = vunpack.c.l.b16 %v559
        %v1305 = vunpack.c.h.b16 %v559
        %v1306 = vunpack.c.l.b16 %v560
        %v1307 = vunpack.c.h.b16 %v560
        %v1308 = vunpack.c.l.b16 %v561
        %v1309 = vunpack.c.h.b16 %v561
        %v1310 = vunpack.c.l.b16 %v562
        %v1311 = vunpack.c.h.b16 %v562
        %v1312 = vunpack.c.l.b16 %v563
        %v1313 = vunpack.c.h.b16 %v563
        %v1314 = vunpack.c.l.b16 %v564
        %v1315 = vunpack.c.h.b16 %v564
        %v1316 = vunpack.c.l.b16 %v565
        %v1317 = vunpack.c.h.b16 %v565
        %v1318 = vunpack.c.l.b16 %v566
        %v1319 = vunpack.c.h.b16 %v566
        %v1320 = vunpack.c.l.b16 %v567
        %v1321 = vunpack.c.h.b16 %v567
        %v1322 = vunpack.c.l.b16 %v568
        %v1323 = vunpack.c.h.b16 %v568
        %v1324 = vunpack.c.l.b16 %v569
        %v1325 = vunpack.c.h.b16 %v569
        %v1326 = vunpack.c.l.b16 %v570
        %v1327 = vunpack.c.h.b16 %v570
        %v1328 = vunpack.c.l.b16 %v571
        %v1329 = vunpack.c.h.b16 %v571
        %v1330 = vunpack.c.l.b16 %v572
        %v1331 = vunpack.c.h.b16 %v572
        %v1332 = vunpack.c.l.b16 %v573
        %v1333 = vunpack.c.h.b16 %v573
        %v1334 = vunpack.c.l.b16 %v574
        %v1335 = vunpack.c.h.b16 %v574
        %v1336 = vunpack.c.l.b16 %v575
        %v1337 = vunpack.c.h.b16 %v575
        %v1338 = vunpack.c.l.b16 %v576
        %v1339 = vunpack.c.h.b16 %v576
        %v1340 = vunpack.c.l.b16 %v577
        %v1341 = vunpack.c.h.b16 %v577
        %v1342 = vunpack.c.l.b16 %v578
        %v1343 = vunpack.c.h.b16 %v578
        %v1344 = vunpack.c.l.b16 %v579
        %v1345 = vunpack.c.h.b16 %v579
        %v1346 = vunpack.c.l.b16 %v580
        %v1347 = vunpack.c.h.b16 %v580
        %v1348 = vunpack.c.l.b16 %v581
        %v1349 = vunpack.c.h.b16 %v581
        %v1350 = vunpack.c.l.b16 %v582
        %v1351 = vunpack.c.h.b16 %v582
        %v1352 = vunpack.c.l.b16 %v583
        %v1353 = vunpack.c.h.b16 %v583
        %v1354 = vunpack.c.l.b16 %v584
        %v1355 = vunpack.c.h.b16 %v584
        %v1356 = vunpack.c.l.b16 %v585
        %v1357 = vunpack.c.h.b16 %v585
        %v1358 = vunpack.c.l.b16 %v586
        %v1359 = vunpack.c.h.b16 %v586
        %v1360 = vunpack.c.l.b16 %v587
        %v1361 = vunpack.c.h.b16 %v587
        %v1362 = vunpack.c.l.b16 %v588
        %v1363 = vunpack.c.h.b16 %v588
        %v1364 = vunpack.c.l.b16 %v589
        %v1365 = vunpack.c.h.b16 %v589
        %v1366 = vunpack.c.l.b16 %v590
        %v1367 = vunpack.c.h.b16 %v590
        %v1368 = vunpack.c.l.b16 %v591
        %v1369 = vunpack.c.h.b16 %v591
        %v1370 = vunpack.c.l.b16 %v592
        %v1371 = vunpack.c.h.b16 %v592
        %v1372 = vunpack.c.l.b16 %v593
        %v1373 = vunpack.c.h.b16 %v593
        %v1374 = vunpack.c.l.b16 %v594
        %v1375 = vunpack.c.h.b16 %v594
        %v1376 = vunpack.c.l.b16 %v595
        %v1377 = vunpack.c.h.b16 %v595
        %v1378 = vunpack.c.l.b16 %v596
        %v1379 = vunpack.c.h.b16 %v596
        %v1380 = vunpack.c.l.b16 %v597
        %v1381 = vunpack.c.h.b16 %v597
        %v1382 = vunpack.c.l.b16 %v598
        %v1383 = vunpack.c.h.b16 %v598
        %v1384 = vunpack.c.l.b16 %v599
        %v1385 = vunpack.c.h.b16 %v599
        %v1386 = vunpack.c.l.b16 %v600
        %v1387 = vunpack.c.h.b16 %v600
        %v1388 = vunpack.c.l.b16 %v601
        %v1389 = vunpack.c.h.b16 %v601
        %v1390 = vunpack.c.l.b16 %v602
        %v1391 = vunpack.c.h.b16 %v602
        %v1392 = vunpack.c.l.b16 %v603
        %v1393 = vunpack.c.h.b16 %v603
        %v1394 = vunpack.c.l.b16 %v604
        %v1395 = vunpack.c.h.b16 %v604
        %v1396 = vunpack.c.l.b16 %v605
        %v1397 = vunpack.c.h.b16 %v605
        %v1398 = vunpack.c.l.b16 %v606
        %v1399 = vunpack.c.h.b16 %v606
        %v1400 = vunpack.c.l.b16 %v607
        %v1401 = vunpack.c.h.b16 %v607
        %v1402 = vunpack.c.l.b16 %v608
        %v1403 = vunpack.c.h.b16 %v608
        %v1404 = vunpack.c.l.b16 %v609
        %v1405 = vunpack.c.h.b16 %v609
        %v1406 = vunpack.c.l.b16 %v610
        %v1407 = vunpack.c.h.b16 %v610
        %v1408 = vpack.c.b16 %v1032, %v1024
        %v1409 = vpack.c.b16 %v1033, %v1025
        %v1410 = vpack.c.b16 %v1034, %v1026
        %v1411 = vpack.c.b16 %v1035, %v1027
        %v1412 = vpack.c.b16 %v1036, %v1028
        %v1413 = vpack.c.b16 %v1037, %v1029
        %v1414 = vpack.c.b16 %v1038, %v1030
        %v1415 = vpack.c.b16 %v1039, %v1031
        %v1416 = vpack.c.b16 %v1048, %v1040
        %v1417 = vpack.c.b16 %v1049, %v1041
        %v1418 = vpack.c.b16 %v1050, %v1042
        %v1419 = vpack.c.b16 %v1051, %v1043
        %v1420 = vpack.c.b16 %v1052, %v1044
        %v1421 = vpack.c.b16 %v1053, %v1045
        %v1422 = vpack.c.b16 %v1054, %v1046
        %v1423 = vpack.c.b16 %v1055, %v1047
        %v1424 = vpack.c.b16 %v1064, %v1056
        %v1425 = vpack.c.b16 %v1065, %v1057
        %v1426 = vpack.c.b16 %v1066, %v1058
        %v1427 = vpack.c.b16 %v1067, %v1059
        %v1428 = vpack.c.b16 %v1068, %v1060
        %v1429 = vpack.c.b16 %v1069, %v1061
        %v1430 = vpack.c.b16 %v1070, %v1062
        %v1431 = vpack.c.b16 %v1071, %v1063
        %v1432 = vpack.c.b16 %v1080, %v1072
        %v1433 = vpack.c.b16 %v1081, %v1073
        %v1434 = vpack.c.b16 %v1082, %v1074
        %v1435 = vpack.c.b16 %v1083, %v1075
        %v1436 = vpack.c.b16 %v1084, %v1076
        %v1437 = vpack.c.b16 %v1085, %v1077
        %v1438 = vpack.c.b16 %v1086, %v1078
        %v1439 = vpack.c.b16 %v1087, %v1079
        %v1440 = vpack.c.b16 %v1096, %v1088
        %v1441 = vpack.c.b16 %v1097, %v1089
        %v1442 = vpack.c.b16 %v1098, %v1090
        %v1443 = vpack.c.b16 %v1099, %v1091
        %v1444 = vpack.c.b16 %v1100, %v1092
        %v1445 = vpack.c.b16 %v1101, %v1093
        %v1446 = vpack.c.b16 %v1102, %v1094
        %v1447 = vpack.c.b16 %v1103, %v1095
        %v1448 = vpack.c.b16 %v1112, %v1104
        %v1449 = vpack.c.b16 %v1113, %v1105
        %v1450 = vpack.c.b16 %v1114, %v1106
        %v1451 = vpack.c.b16 %v1115, %v1107
        %v1452 = vpack.c.b16 %v1116, %v1108
        %v1453 = vpack.c.b16 %v1117, %v1109
        %v1454 = vpack.c.b16 %v1118, %v1110
        %v1455 = vpack.c.b16 %v1119, %v1111
        %v1456 = vpack.c.b16 %v1128, %v1120
        %v1457 = vpack.c.b16 %v1129, %v1121
        %v1458 = vpack.c.b16 %v1130, %v1122
        %v1459 = vpack.c.b16 %v1131, %v1123
        %v1460 = vpack.c.b16 %v1132, %v1124
        %v1461 = vpack.c.b16 %v1133, %v1125
        %v1462 = vpack.c.b16 %v1134, %v1126
        %v1463 = vpack.c.b16 %v1135, %v1127
        %v1464 = vpack.c.b16 %v1144, %v1136
        %v1465 = vpack.c.b16 %v1145, %v1137
        %v1466 = vpack.c.b16 %v1146, %v1138
        %v1467 = vpack.c.b16 %v1147, %v1139
        %v1468 = vpack.c.b16 %v1148, %v1140
        %v1469 = vpack.c.b16 %v1149, %v1141
        %v1470 = vpack.c.b16 %v1150, %v1142
        %v1471 = vpack.c.b16 %v1151, %v1143
        %v1472 = vpack.c.b16 %v1160, %v1152
        %v1473 = vpack.c.b16 %v1161, %v1153
        %v1474 = vpack.c.b16 %v1162, %v1154
        %v1475 = vpack.c.b16 %v1163, %v1155
        %v1476 = vpack.c.b16 %v1164, %v1156
        %v1477 = vpack.c.b16 %v1165, %v1157
        %v1478 = vpack.c.b16 %v1166, %v1158
        %v1479 = vpack.c.b16 %v1167, %v1159
        %v1480 = vpack.c.b16 %v1176, %v1168
        %v1481 = vpack.c.b16 %v1177, %v1169
        %v1482 = vpack.c.b16 %v1178, %v1170
        %v1483 = vpack.c.b16 %v1179, %v1171
        %v1484 = vpack.c.b16 %v1180, %v1172
        %v1485 = vpack.c.b16 %v1181, %v1173
        %v1486 = vpack.c.b16 %v1182, %v1174
        %v1487 = vpack.c.b16 %v1183, %v1175
        %v1488 = vpack.c.b16 %v1192, %v1184
        %v1489 = vpack.c.b16 %v1193, %v1185
        %v1490 = vpack.c.b16 %v1194, %v1186
        %v1491 = vpack.c.b16 %v1195, %v1187
        %v1492 = vpack.c.b16 %v1196, %v1188
        %v1493 = vpack.c.b16 %v1197, %v1189
        %v1494 = vpack.c.b16 %v1198, %v1190
        %v1495 = vpack.c.b16 %v1199, %v1191
        %v1496 = vpack.c.b16 %v1208, %v1200
        %v1497 = vpack.c.b16 %v1209, %v1201
        %v1498 = vpack.c.b16 %v1210, %v1202
        %v1499 = vpack.c.b16 %v1211, %v1203
        %v1500 = vpack.c.b16 %v1212, %v1204
        %v1501 = vpack.c.b16 %v1213, %v1205
        %v1502 = vpack.c.b16 %v1214, %v1206
        %v1503 = vpack.c.b16 %v1215, %v1207
        %v1504 = vpack.c.b16 %v1224, %v1216
        %v1505 = vpack.c.b16 %v1225, %v1217
        %v1506 = vpack.c.b16 %v1226, %v1218
        %v1507 = vpack.c.b16 %v1227, %v1219
        %v1508 = vpack.c.b16 %v1228, %v1220
        %v1509 = vpack.c.b16 %v1229, %v1221
        %v1510 = vpack.c.b16 %v1230, %v1222
        %v1511 = vpack.c.b16 %v1231, %v1223
        %v1512 = vpack.c.b16 %v1240, %v1232
        %v1513 = vpack.c.b16 %v1241, %v1233
        %v1514 = vpack.c.b16 %v1242, %v1234
        %v1515 = vpack.c.b16 %v1243, %v1235
        %v1516 = vpack.c.b16 %v1244, %v1236
        %v1517 = vpack.c.b16 %v1245, %v1237
        %v1518 = vpack.c.b16 %v1246, %v1238
        %v1519 = vpack.c.b16 %v1247, %v1239
        %v1520 = vpack.c.b16 %v1256, %v1248
        %v1521 = vpack.c.b16 %v1257, %v1249
        %v1522 = vpack.c.b16 %v1258, %v1250
        %v1523 = vpack.c.b16 %v1259, %v1251
        %v1524 = vpack.c.b16 %v1260, %v1252
        %v1525 = vpack.c.b16 %v1261, %v1253
        %v1526 = vpack.c.b16 %v1262, %v1254
        %v1527 = vpack.c.b16 %v1263, %v1255
        %v1528 = vpack.c.b16 %v1272, %v1264
        %v1529 = vpack.c.b16 %v1273, %v1265
        %v1530 = vpack.c.b16 %v1274, %v1266
        %v1531 = vpack.c.b16 %v1275, %v1267
        %v1532 = vpack.c.b16 %v1276, %v1268
        %v1533 = vpack.c.b16 %v1277, %v1269
        %v1534 = vpack.c.b16 %v1278, %v1270
        %v1535 = vpack.c.b16 %v1279, %v1271
        %v1536 = vpack.c.b16 %v1288, %v1280
        %v1537 = vpack.c.b16 %v1289, %v1281
        %v1538 = vpack.c.b16 %v1290, %v1282
        %v1539 = vpack.c.b16 %v1291, %v1283
        %v1540 = vpack.c.b16 %v1292, %v1284
        %v1541 = vpack.c.b16 %v1293, %v1285
        %v1542 = vpack.c.b16 %v1294, %v1286
        %v1543 = vpack.c.b16 %v1295, %v1287
        %v1544 = vpack.c.b16 %v1304, %v1296
        %v1545 = vpack.c.b16 %v1305, %v1297
        %v1546 = vpack.c.b16 %v1306, %v1298
        %v1547 = vpack.c.b16 %v1307, %v1299
        %v1548 = vpack.c.b16 %v1308, %v1300
        %v1549 = vpack.c.b16 %v1309, %v1301
        %v1550 = vpack.c.b16 %v1310, %v1302
        %v1551 = vpack.c.b16 %v1311, %v1303
        %v1552 = vpack.c.b16 %v1320, %v1312
        %v1553 = vpack.c.b16 %v1321, %v1313
        %v1554 = vpack.c.b16 %v1322, %v1314
        %v1555 = vpack.c.b16 %v1323, %v1315
        %v1556 = vpack.c.b16 %v1324, %v1316
        %v1557 = vpack.c.b16 %v1325, %v1317
        %v1558 = vpack.c.b16 %v1326, %v1318
        %v1559 = vpack.c.b16 %v1327, %v1319
        %v1560 = vpack.c.b16 %v1336, %v1328
        %v1561 = vpack.c.b16 %v1337, %v1329
        %v1562 = vpack.c.b16 %v1338, %v1330
        %v1563 = vpack.c.b16 %v1339, %v1331
        %v1564 = vpack.c.b16 %v1340, %v1332
        %v1565 = vpack.c.b16 %v1341, %v1333
        %v1566 = vpack.c.b16 %v1342, %v1334
        %v1567 = vpack.c.b16 %v1343, %v1335
        %v1568 = vpack.c.b16 %v1352, %v1344
        %v1569 = vpack.c.b16 %v1353, %v1345
        %v1570 = vpack.c.b16 %v1354, %v1346
        %v1571 = vpack.c.b16 %v1355, %v1347
        %v1572 = vpack.c.b16 %v1356, %v1348
        %v1573 = vpack.c.b16 %v1357, %v1349
        %v1574 = vpack.c.b16 %v1358, %v1350
        %v1575 = vpack.c.b16 %v1359, %v1351
        %v1576 = vpack.c.b16 %v1368, %v1360
        %v1577 = vpack.c.b16 %v1369, %v1361
        %v1578 = vpack.c.b16 %v1370, %v1362
        %v1579 = vpack.c.b16 %v1371, %v1363
        %v1580 = vpack.c.b16 %v1372, %v1364
        %v1581 = vpack.c.b16 %v1373, %v1365
        %v1582 = vpack.c.b16 %v1374, %v1366
        %v1583 = vpack.c.b16 %v1375, %v1367
        %v1584 = vpack.c.b16 %v1384, %v1376
        %v1585 = vpack.c.b16 %v1385, %v1377
        %v1586 = vpack.c.b16 %v1386, %v1378
        %v1587 = vpack.c.b16 %v1387, %v1379
        %v1588 = vpack.c.b16 %v1388, %v1380
        %v1589 = vpack.c.b16 %v1389, %v1381
        %v1590 = vpack.c.b16 %v1390, %v1382
        %v1591 = vpack.c.b16 %v1391, %v1383
        %v1592 = vpack.c.b16 %v1400, %v1392
        %v1593 = vpack.c.b16 %v1401, %v1393
        %v1594 = vpack.c.b16 %v1402, %v1394
        %v1595 = vpack.c.b16 %v1403, %v1395
        %v1596 = vpack.c.b16 %v1404, %v1396
        %v1597 = vpack.c.b16 %v1405, %v1397
        %v1598 = vpack.c.b16 %v1406, %v1398
        %v1599 = vpack.c.b16 %v1407, %v1399
        %1792 = vmatpush.bf16.msra.mxu0 %v1464
        %1793 = vmatpush.bf16.msra.mxu0 %v1456
        %1794 = vmatpush.bf16.msra.mxu0 %v1448
        %1795 = vmatpush.bf16.msra.mxu0 %v1440
        %1796 = vmatpush.bf16.msra.mxu0 %v1432
        %1797 = vmatpush.bf16.msra.mxu0 %v1424
        %1798 = vmatpush.bf16.msra.mxu0 %v1416
        %1799 = vmatpush.bf16.msra.mxu0 %v1408
        %1800 = vmatmul.bf16.gmra.mxu0 %v754
        %v1801 = vpop.f32.mrf.mxu0
        %v1802 = vadd.f32 %v613, %v1801
        %v1803 = vpop.f32.mrf.mxu0
        %v1804 = vadd.f32 %v613, %v1803
        %1805 = vmatmul.bf16.gmra.mxu0 %v757
        %v1806 = vpop.f32.mrf.mxu0
        %v1807 = vadd.f32 %v613, %v1806
        %v1808 = vpop.f32.mrf.mxu0
        %v1809 = vadd.f32 %v613, %v1808
        %1810 = vmatmul.bf16.gmra.mxu0 %v760
        %v1811 = vpop.f32.mrf.mxu0
        %v1812 = vadd.f32 %v613, %v1811
        %v1813 = vpop.f32.mrf.mxu0
        %v1814 = vadd.f32 %v613, %v1813
        %1815 = vmatmul.bf16.gmra.mxu0 %v763
        %v1816 = vpop.f32.mrf.mxu0
        %v1817 = vadd.f32 %v613, %v1816
        %v1818 = vpop.f32.mrf.mxu0
        %v1819 = vadd.f32 %v613, %v1818
        %1820 = vmatmul.bf16.gmra.mxu0 %v766
        %v1821 = vpop.f32.mrf.mxu0
        %v1822 = vadd.f32 %v613, %v1821
        %v1823 = vpop.f32.mrf.mxu0
        %v1824 = vadd.f32 %v613, %v1823
        %1825 = vmatmul.bf16.gmra.mxu0 %v769
        %v1826 = vpop.f32.mrf.mxu0
        %v1827 = vadd.f32 %v613, %v1826
        %v1828 = vpop.f32.mrf.mxu0
        %v1829 = vadd.f32 %v613, %v1828
        %1830 = vmatmul.bf16.gmra.mxu0 %v772
        %v1831 = vpop.f32.mrf.mxu0
        %v1832 = vadd.f32 %v613, %v1831
        %v1833 = vpop.f32.mrf.mxu0
        %v1834 = vadd.f32 %v613, %v1833
        %1835 = vmatmul.bf16.gmra.mxu0 %v775
        %v1836 = vpop.f32.mrf.mxu0
        %v1837 = vadd.f32 %v613, %v1836
        %v1838 = vpop.f32.mrf.mxu0
        %v1839 = vadd.f32 %v613, %v1838
        %1840 = vmatmul.bf16.gmra.mxu0 %v778
        %v1841 = vpop.f32.mrf.mxu0
        %v1842 = vadd.f32 %v613, %v1841
        %v1843 = vpop.f32.mrf.mxu0
        %v1844 = vadd.f32 %v613, %v1843
        %1845 = vmatmul.bf16.gmra.mxu0 %v781
        %v1846 = vpop.f32.mrf.mxu0
        %v1847 = vadd.f32 %v613, %v1846
        %v1848 = vpop.f32.mrf.mxu0
        %v1849 = vadd.f32 %v613, %v1848
        %1850 = vmatmul.bf16.gmra.mxu0 %v784
        %v1851 = vpop.f32.mrf.mxu0
        %v1852 = vadd.f32 %v613, %v1851
        %v1853 = vpop.f32.mrf.mxu0
        %v1854 = vadd.f32 %v613, %v1853
        %1855 = vmatmul.bf16.gmra.mxu0 %v787
        %v1856 = vpop.f32.mrf.mxu0
        %v1857 = vadd.f32 %v613, %v1856
        %v1858 = vpop.f32.mrf.mxu0
        %v1859 = vadd.f32 %v613, %v1858
        %1860 = vmatmul.bf16.gmra.mxu0 %v790
        %v1861 = vpop.f32.mrf.mxu0
        %v1862 = vadd.f32 %v613, %v1861
        %v1863 = vpop.f32.mrf.mxu0
        %1864 = vdwg.mxu0
        %1865 = vmatpush.bf16.msra.mxu0 %v1528
        %1866 = vmatpush.bf16.msra.mxu0 %v1520
        %1867 = vmatpush.bf16.msra.mxu0 %v1512
        %1868 = vmatpush.bf16.msra.mxu0 %v1504
        %1869 = vmatpush.bf16.msra.mxu0 %v1496
        %1870 = vmatpush.bf16.msra.mxu0 %v1488
        %1871 = vmatpush.bf16.msra.mxu0 %v1480
        %1872 = vmatpush.bf16.msra.mxu0 %v1472
        %1873 = vmatmul.bf16.gmra.mxu0 %v755
        %v1874 = vpop.f32.mrf.mxu0
        %v1875 = vadd.f32 %v1802, %v1874
        %v1876 = vpop.f32.mrf.mxu0
        %v1877 = vadd.f32 %v1804, %v1876
        %1878 = vmatmul.bf16.gmra.mxu0 %v758
        %v1879 = vpop.f32.mrf.mxu0
        %v1880 = vadd.f32 %v1807, %v1879
        %v1881 = vpop.f32.mrf.mxu0
        %v1882 = vadd.f32 %v1809, %v1881
        %1883 = vmatmul.bf16.gmra.mxu0 %v761
        %v1884 = vpop.f32.mrf.mxu0
        %v1885 = vadd.f32 %v1812, %v1884
        %v1886 = vpop.f32.mrf.mxu0
        %v1887 = vadd.f32 %v1814, %v1886
        %1888 = vmatmul.bf16.gmra.mxu0 %v764
        %v1889 = vpop.f32.mrf.mxu0
        %v1890 = vadd.f32 %v1817, %v1889
        %v1891 = vpop.f32.mrf.mxu0
        %v1892 = vadd.f32 %v1819, %v1891
        %1893 = vmatmul.bf16.gmra.mxu0 %v767
        %v1894 = vpop.f32.mrf.mxu0
        %v1895 = vadd.f32 %v1822, %v1894
        %v1896 = vpop.f32.mrf.mxu0
        %v1897 = vadd.f32 %v1824, %v1896
        %1898 = vmatmul.bf16.gmra.mxu0 %v770
        %v1899 = vpop.f32.mrf.mxu0
        %v1900 = vadd.f32 %v1827, %v1899
        %v1901 = vpop.f32.mrf.mxu0
        %v1902 = vadd.f32 %v1829, %v1901
        %1903 = vmatmul.bf16.gmra.mxu0 %v773
        %v1904 = vpop.f32.mrf.mxu0
        %v1905 = vadd.f32 %v1832, %v1904
        %v1906 = vpop.f32.mrf.mxu0
        %v1907 = vadd.f32 %v1834, %v1906
        %1908 = vmatmul.bf16.gmra.mxu0 %v776
        %v1909 = vpop.f32.mrf.mxu0
        %v1910 = vadd.f32 %v1837, %v1909
        %v1911 = vpop.f32.mrf.mxu0
        %v1912 = vadd.f32 %v1839, %v1911
        %1913 = vmatmul.bf16.gmra.mxu0 %v779
        %v1914 = vpop.f32.mrf.mxu0
        %v1915 = vadd.f32 %v1842, %v1914
        %v1916 = vpop.f32.mrf.mxu0
        %v1917 = vadd.f32 %v1844, %v1916
        %1918 = vmatmul.bf16.gmra.mxu0 %v782
        %v1919 = vpop.f32.mrf.mxu0
        %v1920 = vadd.f32 %v1847, %v1919
        %v1921 = vpop.f32.mrf.mxu0
        %v1922 = vadd.f32 %v1849, %v1921
        %1923 = vmatmul.bf16.gmra.mxu0 %v785
        %v1924 = vpop.f32.mrf.mxu0
        %v1925 = vadd.f32 %v1852, %v1924
        %v1926 = vpop.f32.mrf.mxu0
        %v1927 = vadd.f32 %v1854, %v1926
        %1928 = vmatmul.bf16.gmra.mxu0 %v788
        %v1929 = vpop.f32.mrf.mxu0
        %v1930 = vadd.f32 %v1857, %v1929
        %v1931 = vpop.f32.mrf.mxu0
        %v1932 = vadd.f32 %v1859, %v1931
        %1933 = vmatmul.bf16.gmra.mxu0 %v791
        %v1934 = vpop.f32.mrf.mxu0
        %v1935 = vadd.f32 %v1862, %v1934
        %v1936 = vpop.f32.mrf.mxu0
        %1937 = vdwg.mxu0
        %1938 = vmatpush.bf16.msra.mxu0 %v1592
        %1939 = vmatpush.bf16.msra.mxu0 %v1584
        %1940 = vmatpush.bf16.msra.mxu0 %v1576
        %1941 = vmatpush.bf16.msra.mxu0 %v1568
        %1942 = vmatpush.bf16.msra.mxu0 %v1560
        %1943 = vmatpush.bf16.msra.mxu0 %v1552
        %1944 = vmatpush.bf16.msra.mxu0 %v1544
        %1945 = vmatpush.bf16.msra.mxu0 %v1536
        %1946 = vmatmul.bf16.gmra.mxu0 %v756
        %v1947 = vpop.f32.mrf.mxu0
        %v1948 = vadd.f32 %v1875, %v1947
        %v1949 = vpop.f32.mrf.mxu0
        %v1950 = vadd.f32 %v1877, %v1949
        %1951 = vmatmul.bf16.gmra.mxu0 %v759
        %v1952 = vpop.f32.mrf.mxu0
        %v1953 = vadd.f32 %v1880, %v1952
        %v1954 = vpop.f32.mrf.mxu0
        %v1955 = vadd.f32 %v1882, %v1954
        %1956 = vmatmul.bf16.gmra.mxu0 %v762
        %v1957 = vpop.f32.mrf.mxu0
        %v1958 = vadd.f32 %v1885, %v1957
        %v1959 = vpop.f32.mrf.mxu0
        %v1960 = vadd.f32 %v1887, %v1959
        %1961 = vmatmul.bf16.gmra.mxu0 %v765
        %v1962 = vpop.f32.mrf.mxu0
        %v1963 = vadd.f32 %v1890, %v1962
        %v1964 = vpop.f32.mrf.mxu0
        %v1965 = vadd.f32 %v1892, %v1964
        %1966 = vmatmul.bf16.gmra.mxu0 %v768
        %v1967 = vpop.f32.mrf.mxu0
        %v1968 = vadd.f32 %v1895, %v1967
        %v1969 = vpop.f32.mrf.mxu0
        %v1970 = vadd.f32 %v1897, %v1969
        %1971 = vmatmul.bf16.gmra.mxu0 %v771
        %v1972 = vpop.f32.mrf.mxu0
        %v1973 = vadd.f32 %v1900, %v1972
        %v1974 = vpop.f32.mrf.mxu0
        %v1975 = vadd.f32 %v1902, %v1974
        %1976 = vmatmul.bf16.gmra.mxu0 %v774
        %v1977 = vpop.f32.mrf.mxu0
        %v1978 = vadd.f32 %v1905, %v1977
        %v1979 = vpop.f32.mrf.mxu0
        %v1980 = vadd.f32 %v1907, %v1979
        %1981 = vmatmul.bf16.gmra.mxu0 %v777
        %v1982 = vpop.f32.mrf.mxu0
        %v1983 = vadd.f32 %v1910, %v1982
        %v1984 = vpop.f32.mrf.mxu0
        %v1985 = vadd.f32 %v1912, %v1984
        %1986 = vmatmul.bf16.gmra.mxu0 %v780
        %v1987 = vpop.f32.mrf.mxu0
        %v1988 = vadd.f32 %v1915, %v1987
        %v1989 = vpop.f32.mrf.mxu0
        %v1990 = vadd.f32 %v1917, %v1989
        %1991 = vmatmul.bf16.gmra.mxu0 %v783
        %v1992 = vpop.f32.mrf.mxu0
        %v1993 = vadd.f32 %v1920, %v1992
        %v1994 = vpop.f32.mrf.mxu0
        %v1995 = vadd.f32 %v1922, %v1994
        %1996 = vmatmul.bf16.gmra.mxu0 %v786
        %v1997 = vpop.f32.mrf.mxu0
        %v1998 = vadd.f32 %v1925, %v1997
        %v1999 = vpop.f32.mrf.mxu0
        %v2000 = vadd.f32 %v1927, %v1999
        %2001 = vmatmul.bf16.gmra.mxu0 %v789
        %v2002 = vpop.f32.mrf.mxu0
        %v2003 = vadd.f32 %v1930, %v2002
        %v2004 = vpop.f32.mrf.mxu0
        %v2005 = vadd.f32 %v1932, %v2004
        %2006 = vmatmul.bf16.gmra.mxu0 %v792
        %v2007 = vpop.f32.mrf.mxu0
        %v2008 = vadd.f32 %v1935, %v2007
        %v2009 = vpop.f32.mrf.mxu0
        %2010 = vdwg.mxu0
        %2011 = vmatpush.bf16.msra.mxu0 %v1465
        %2012 = vmatpush.bf16.msra.mxu0 %v1457
        %2013 = vmatpush.bf16.msra.mxu0 %v1449
        %2014 = vmatpush.bf16.msra.mxu0 %v1441
        %2015 = vmatpush.bf16.msra.mxu0 %v1433
        %2016 = vmatpush.bf16.msra.mxu0 %v1425
        %2017 = vmatpush.bf16.msra.mxu0 %v1417
        %2018 = vmatpush.bf16.msra.mxu0 %v1409
        %2019 = vmatmul.bf16.gmra.mxu0 %v754
        %v2020 = vpop.f32.mrf.mxu0
        %v2021 = vadd.f32 %v614, %v2020
        %v2022 = vpop.f32.mrf.mxu0
        %v2023 = vadd.f32 %v614, %v2022
        %2024 = vmatmul.bf16.gmra.mxu0 %v757
        %v2025 = vpop.f32.mrf.mxu0
        %v2026 = vadd.f32 %v614, %v2025
        %v2027 = vpop.f32.mrf.mxu0
        %v2028 = vadd.f32 %v614, %v2027
        %2029 = vmatmul.bf16.gmra.mxu0 %v760
        %v2030 = vpop.f32.mrf.mxu0
        %v2031 = vadd.f32 %v614, %v2030
        %v2032 = vpop.f32.mrf.mxu0
        %v2033 = vadd.f32 %v614, %v2032
        %2034 = vmatmul.bf16.gmra.mxu0 %v763
        %v2035 = vpop.f32.mrf.mxu0
        %v2036 = vadd.f32 %v614, %v2035
        %v2037 = vpop.f32.mrf.mxu0
        %v2038 = vadd.f32 %v614, %v2037
        %2039 = vmatmul.bf16.gmra.mxu0 %v766
        %v2040 = vpop.f32.mrf.mxu0
        %v2041 = vadd.f32 %v614, %v2040
        %v2042 = vpop.f32.mrf.mxu0
        %v2043 = vadd.f32 %v614, %v2042
        %2044 = vmatmul.bf16.gmra.mxu0 %v769
        %v2045 = vpop.f32.mrf.mxu0
        %v2046 = vadd.f32 %v614, %v2045
        %v2047 = vpop.f32.mrf.mxu0
        %v2048 = vadd.f32 %v614, %v2047
        %2049 = vmatmul.bf16.gmra.mxu0 %v772
        %v2050 = vpop.f32.mrf.mxu0
        %v2051 = vadd.f32 %v614, %v2050
        %v2052 = vpop.f32.mrf.mxu0
        %v2053 = vadd.f32 %v614, %v2052
        %2054 = vmatmul.bf16.gmra.mxu0 %v775
        %v2055 = vpop.f32.mrf.mxu0
        %v2056 = vadd.f32 %v614, %v2055
        %v2057 = vpop.f32.mrf.mxu0
        %v2058 = vadd.f32 %v614, %v2057
        %2059 = vmatmul.bf16.gmra.mxu0 %v778
        %v2060 = vpop.f32.mrf.mxu0
        %v2061 = vadd.f32 %v614, %v2060
        %v2062 = vpop.f32.mrf.mxu0
        %v2063 = vadd.f32 %v614, %v2062
        %2064 = vmatmul.bf16.gmra.mxu0 %v781
        %v2065 = vpop.f32.mrf.mxu0
        %v2066 = vadd.f32 %v614, %v2065
        %v2067 = vpop.f32.mrf.mxu0
        %v2068 = vadd.f32 %v614, %v2067
        %2069 = vmatmul.bf16.gmra.mxu0 %v784
        %v2070 = vpop.f32.mrf.mxu0
        %v2071 = vadd.f32 %v614, %v2070
        %v2072 = vpop.f32.mrf.mxu0
        %v2073 = vadd.f32 %v614, %v2072
        %2074 = vmatmul.bf16.gmra.mxu0 %v787
        %v2075 = vpop.f32.mrf.mxu0
        %v2076 = vadd.f32 %v614, %v2075
        %v2077 = vpop.f32.mrf.mxu0
        %v2078 = vadd.f32 %v614, %v2077
        %2079 = vmatmul.bf16.gmra.mxu0 %v790
        %v2080 = vpop.f32.mrf.mxu0
        %v2081 = vadd.f32 %v614, %v2080
        %v2082 = vpop.f32.mrf.mxu0
        %2083 = vdwg.mxu0
        %2084 = vmatpush.bf16.msra.mxu0 %v1529
        %2085 = vmatpush.bf16.msra.mxu0 %v1521
        %2086 = vmatpush.bf16.msra.mxu0 %v1513
        %2087 = vmatpush.bf16.msra.mxu0 %v1505
        %2088 = vmatpush.bf16.msra.mxu0 %v1497
        %2089 = vmatpush.bf16.msra.mxu0 %v1489
        %2090 = vmatpush.bf16.msra.mxu0 %v1481
        %2091 = vmatpush.bf16.msra.mxu0 %v1473
        %2092 = vmatmul.bf16.gmra.mxu0 %v755
        %v2093 = vpop.f32.mrf.mxu0
        %v2094 = vadd.f32 %v2021, %v2093
        %v2095 = vpop.f32.mrf.mxu0
        %v2096 = vadd.f32 %v2023, %v2095
        %2097 = vmatmul.bf16.gmra.mxu0 %v758
        %v2098 = vpop.f32.mrf.mxu0
        %v2099 = vadd.f32 %v2026, %v2098
        %v2100 = vpop.f32.mrf.mxu0
        %v2101 = vadd.f32 %v2028, %v2100
        %2102 = vmatmul.bf16.gmra.mxu0 %v761
        %v2103 = vpop.f32.mrf.mxu0
        %v2104 = vadd.f32 %v2031, %v2103
        %v2105 = vpop.f32.mrf.mxu0
        %v2106 = vadd.f32 %v2033, %v2105
        %2107 = vmatmul.bf16.gmra.mxu0 %v764
        %v2108 = vpop.f32.mrf.mxu0
        %v2109 = vadd.f32 %v2036, %v2108
        %v2110 = vpop.f32.mrf.mxu0
        %v2111 = vadd.f32 %v2038, %v2110
        %2112 = vmatmul.bf16.gmra.mxu0 %v767
        %v2113 = vpop.f32.mrf.mxu0
        %v2114 = vadd.f32 %v2041, %v2113
        %v2115 = vpop.f32.mrf.mxu0
        %v2116 = vadd.f32 %v2043, %v2115
        %2117 = vmatmul.bf16.gmra.mxu0 %v770
        %v2118 = vpop.f32.mrf.mxu0
        %v2119 = vadd.f32 %v2046, %v2118
        %v2120 = vpop.f32.mrf.mxu0
        %v2121 = vadd.f32 %v2048, %v2120
        %2122 = vmatmul.bf16.gmra.mxu0 %v773
        %v2123 = vpop.f32.mrf.mxu0
        %v2124 = vadd.f32 %v2051, %v2123
        %v2125 = vpop.f32.mrf.mxu0
        %v2126 = vadd.f32 %v2053, %v2125
        %2127 = vmatmul.bf16.gmra.mxu0 %v776
        %v2128 = vpop.f32.mrf.mxu0
        %v2129 = vadd.f32 %v2056, %v2128
        %v2130 = vpop.f32.mrf.mxu0
        %v2131 = vadd.f32 %v2058, %v2130
        %2132 = vmatmul.bf16.gmra.mxu0 %v779
        %v2133 = vpop.f32.mrf.mxu0
        %v2134 = vadd.f32 %v2061, %v2133
        %v2135 = vpop.f32.mrf.mxu0
        %v2136 = vadd.f32 %v2063, %v2135
        %2137 = vmatmul.bf16.gmra.mxu0 %v782
        %v2138 = vpop.f32.mrf.mxu0
        %v2139 = vadd.f32 %v2066, %v2138
        %v2140 = vpop.f32.mrf.mxu0
        %v2141 = vadd.f32 %v2068, %v2140
        %2142 = vmatmul.bf16.gmra.mxu0 %v785
        %v2143 = vpop.f32.mrf.mxu0
        %v2144 = vadd.f32 %v2071, %v2143
        %v2145 = vpop.f32.mrf.mxu0
        %v2146 = vadd.f32 %v2073, %v2145
        %2147 = vmatmul.bf16.gmra.mxu0 %v788
        %v2148 = vpop.f32.mrf.mxu0
        %v2149 = vadd.f32 %v2076, %v2148
        %v2150 = vpop.f32.mrf.mxu0
        %v2151 = vadd.f32 %v2078, %v2150
        %2152 = vmatmul.bf16.gmra.mxu0 %v791
        %v2153 = vpop.f32.mrf.mxu0
        %v2154 = vadd.f32 %v2081, %v2153
        %v2155 = vpop.f32.mrf.mxu0
        %2156 = vdwg.mxu0
        %2157 = vmatpush.bf16.msra.mxu0 %v1593
        %2158 = vmatpush.bf16.msra.mxu0 %v1585
        %2159 = vmatpush.bf16.msra.mxu0 %v1577
        %2160 = vmatpush.bf16.msra.mxu0 %v1569
        %2161 = vmatpush.bf16.msra.mxu0 %v1561
        %2162 = vmatpush.bf16.msra.mxu0 %v1553
        %2163 = vmatpush.bf16.msra.mxu0 %v1545
        %2164 = vmatpush.bf16.msra.mxu0 %v1537
        %2165 = vmatmul.bf16.gmra.mxu0 %v756
        %v2166 = vpop.f32.mrf.mxu0
        %v2167 = vadd.f32 %v2094, %v2166
        %v2168 = vpop.f32.mrf.mxu0
        %v2169 = vadd.f32 %v2096, %v2168
        %2170 = vmatmul.bf16.gmra.mxu0 %v759
        %v2171 = vpop.f32.mrf.mxu0
        %v2172 = vadd.f32 %v2099, %v2171
        %v2173 = vpop.f32.mrf.mxu0
        %v2174 = vadd.f32 %v2101, %v2173
        %2175 = vmatmul.bf16.gmra.mxu0 %v762
        %v2176 = vpop.f32.mrf.mxu0
        %v2177 = vadd.f32 %v2104, %v2176
        %v2178 = vpop.f32.mrf.mxu0
        %v2179 = vadd.f32 %v2106, %v2178
        %2180 = vmatmul.bf16.gmra.mxu0 %v765
        %v2181 = vpop.f32.mrf.mxu0
        %v2182 = vadd.f32 %v2109, %v2181
        %v2183 = vpop.f32.mrf.mxu0
        %v2184 = vadd.f32 %v2111, %v2183
        %2185 = vmatmul.bf16.gmra.mxu0 %v768
        %v2186 = vpop.f32.mrf.mxu0
        %v2187 = vadd.f32 %v2114, %v2186
        %v2188 = vpop.f32.mrf.mxu0
        %v2189 = vadd.f32 %v2116, %v2188
        %2190 = vmatmul.bf16.gmra.mxu0 %v771
        %v2191 = vpop.f32.mrf.mxu0
        %v2192 = vadd.f32 %v2119, %v2191
        %v2193 = vpop.f32.mrf.mxu0
        %v2194 = vadd.f32 %v2121, %v2193
        %2195 = vmatmul.bf16.gmra.mxu0 %v774
        %v2196 = vpop.f32.mrf.mxu0
        %v2197 = vadd.f32 %v2124, %v2196
        %v2198 = vpop.f32.mrf.mxu0
        %v2199 = vadd.f32 %v2126, %v2198
        %2200 = vmatmul.bf16.gmra.mxu0 %v777
        %v2201 = vpop.f32.mrf.mxu0
        %v2202 = vadd.f32 %v2129, %v2201
        %v2203 = vpop.f32.mrf.mxu0
        %v2204 = vadd.f32 %v2131, %v2203
        %2205 = vmatmul.bf16.gmra.mxu0 %v780
        %v2206 = vpop.f32.mrf.mxu0
        %v2207 = vadd.f32 %v2134, %v2206
        %v2208 = vpop.f32.mrf.mxu0
        %v2209 = vadd.f32 %v2136, %v2208
        %2210 = vmatmul.bf16.gmra.mxu0 %v783
        %v2211 = vpop.f32.mrf.mxu0
        %v2212 = vadd.f32 %v2139, %v2211
        %v2213 = vpop.f32.mrf.mxu0
        %v2214 = vadd.f32 %v2141, %v2213
        %2215 = vmatmul.bf16.gmra.mxu0 %v786
        %v2216 = vpop.f32.mrf.mxu0
        %v2217 = vadd.f32 %v2144, %v2216
        %v2218 = vpop.f32.mrf.mxu0
        %v2219 = vadd.f32 %v2146, %v2218
        %2220 = vmatmul.bf16.gmra.mxu0 %v789
        %v2221 = vpop.f32.mrf.mxu0
        %v2222 = vadd.f32 %v2149, %v2221
        %v2223 = vpop.f32.mrf.mxu0
        %v2224 = vadd.f32 %v2151, %v2223
        %2225 = vmatmul.bf16.gmra.mxu0 %v792
        %v2226 = vpop.f32.mrf.mxu0
        %v2227 = vadd.f32 %v2154, %v2226
        %v2228 = vpop.f32.mrf.mxu0
        %2229 = vdwg.mxu0
        %2230 = vmatpush.bf16.msra.mxu0 %v1466
        %2231 = vmatpush.bf16.msra.mxu0 %v1458
        %2232 = vmatpush.bf16.msra.mxu0 %v1450
        %2233 = vmatpush.bf16.msra.mxu0 %v1442
        %2234 = vmatpush.bf16.msra.mxu0 %v1434
        %2235 = vmatpush.bf16.msra.mxu0 %v1426
        %2236 = vmatpush.bf16.msra.mxu0 %v1418
        %2237 = vmatpush.bf16.msra.mxu0 %v1410
        %2238 = vmatmul.bf16.gmra.mxu0 %v754
        %v2239 = vpop.f32.mrf.mxu0
        %v2240 = vadd.f32 %v615, %v2239
        %v2241 = vpop.f32.mrf.mxu0
        %v2242 = vadd.f32 %v615, %v2241
        %2243 = vmatmul.bf16.gmra.mxu0 %v757
        %v2244 = vpop.f32.mrf.mxu0
        %v2245 = vadd.f32 %v615, %v2244
        %v2246 = vpop.f32.mrf.mxu0
        %v2247 = vadd.f32 %v615, %v2246
        %2248 = vmatmul.bf16.gmra.mxu0 %v760
        %v2249 = vpop.f32.mrf.mxu0
        %v2250 = vadd.f32 %v615, %v2249
        %v2251 = vpop.f32.mrf.mxu0
        %v2252 = vadd.f32 %v615, %v2251
        %2253 = vmatmul.bf16.gmra.mxu0 %v763
        %v2254 = vpop.f32.mrf.mxu0
        %v2255 = vadd.f32 %v615, %v2254
        %v2256 = vpop.f32.mrf.mxu0
        %v2257 = vadd.f32 %v615, %v2256
        %2258 = vmatmul.bf16.gmra.mxu0 %v766
        %v2259 = vpop.f32.mrf.mxu0
        %v2260 = vadd.f32 %v615, %v2259
        %v2261 = vpop.f32.mrf.mxu0
        %v2262 = vadd.f32 %v615, %v2261
        %2263 = vmatmul.bf16.gmra.mxu0 %v769
        %v2264 = vpop.f32.mrf.mxu0
        %v2265 = vadd.f32 %v615, %v2264
        %v2266 = vpop.f32.mrf.mxu0
        %v2267 = vadd.f32 %v615, %v2266
        %2268 = vmatmul.bf16.gmra.mxu0 %v772
        %v2269 = vpop.f32.mrf.mxu0
        %v2270 = vadd.f32 %v615, %v2269
        %v2271 = vpop.f32.mrf.mxu0
        %v2272 = vadd.f32 %v615, %v2271
        %2273 = vmatmul.bf16.gmra.mxu0 %v775
        %v2274 = vpop.f32.mrf.mxu0
        %v2275 = vadd.f32 %v615, %v2274
        %v2276 = vpop.f32.mrf.mxu0
        %v2277 = vadd.f32 %v615, %v2276
        %2278 = vmatmul.bf16.gmra.mxu0 %v778
        %v2279 = vpop.f32.mrf.mxu0
        %v2280 = vadd.f32 %v615, %v2279
        %v2281 = vpop.f32.mrf.mxu0
        %v2282 = vadd.f32 %v615, %v2281
        %2283 = vmatmul.bf16.gmra.mxu0 %v781
        %v2284 = vpop.f32.mrf.mxu0
        %v2285 = vadd.f32 %v615, %v2284
        %v2286 = vpop.f32.mrf.mxu0
        %v2287 = vadd.f32 %v615, %v2286
        %2288 = vmatmul.bf16.gmra.mxu0 %v784
        %v2289 = vpop.f32.mrf.mxu0
        %v2290 = vadd.f32 %v615, %v2289
        %v2291 = vpop.f32.mrf.mxu0
        %v2292 = vadd.f32 %v615, %v2291
        %2293 = vmatmul.bf16.gmra.mxu0 %v787
        %v2294 = vpop.f32.mrf.mxu0
        %v2295 = vadd.f32 %v615, %v2294
        %v2296 = vpop.f32.mrf.mxu0
        %v2297 = vadd.f32 %v615, %v2296
        %2298 = vmatmul.bf16.gmra.mxu0 %v790
        %v2299 = vpop.f32.mrf.mxu0
        %v2300 = vadd.f32 %v615, %v2299
        %v2301 = vpop.f32.mrf.mxu0
        %2302 = vdwg.mxu0
        %2303 = vmatpush.bf16.msra.mxu0 %v1530
        %2304 = vmatpush.bf16.msra.mxu0 %v1522
        %2305 = vmatpush.bf16.msra.mxu0 %v1514
        %2306 = vmatpush.bf16.msra.mxu0 %v1506
        %2307 = vmatpush.bf16.msra.mxu0 %v1498
        %2308 = vmatpush.bf16.msra.mxu0 %v1490
        %2309 = vmatpush.bf16.msra.mxu0 %v1482
        %2310 = vmatpush.bf16.msra.mxu0 %v1474
        %2311 = vmatmul.bf16.gmra.mxu0 %v755
        %v2312 = vpop.f32.mrf.mxu0
        %v2313 = vadd.f32 %v2240, %v2312
        %v2314 = vpop.f32.mrf.mxu0
        %v2315 = vadd.f32 %v2242, %v2314
        %2316 = vmatmul.bf16.gmra.mxu0 %v758
        %v2317 = vpop.f32.mrf.mxu0
        %v2318 = vadd.f32 %v2245, %v2317
        %v2319 = vpop.f32.mrf.mxu0
        %v2320 = vadd.f32 %v2247, %v2319
        %2321 = vmatmul.bf16.gmra.mxu0 %v761
        %v2322 = vpop.f32.mrf.mxu0
        %v2323 = vadd.f32 %v2250, %v2322
        %v2324 = vpop.f32.mrf.mxu0
        %v2325 = vadd.f32 %v2252, %v2324
        %2326 = vmatmul.bf16.gmra.mxu0 %v764
        %v2327 = vpop.f32.mrf.mxu0
        %v2328 = vadd.f32 %v2255, %v2327
        %v2329 = vpop.f32.mrf.mxu0
        %v2330 = vadd.f32 %v2257, %v2329
        %2331 = vmatmul.bf16.gmra.mxu0 %v767
        %v2332 = vpop.f32.mrf.mxu0
        %v2333 = vadd.f32 %v2260, %v2332
        %v2334 = vpop.f32.mrf.mxu0
        %v2335 = vadd.f32 %v2262, %v2334
        %2336 = vmatmul.bf16.gmra.mxu0 %v770
        %v2337 = vpop.f32.mrf.mxu0
        %v2338 = vadd.f32 %v2265, %v2337
        %v2339 = vpop.f32.mrf.mxu0
        %v2340 = vadd.f32 %v2267, %v2339
        %2341 = vmatmul.bf16.gmra.mxu0 %v773
        %v2342 = vpop.f32.mrf.mxu0
        %v2343 = vadd.f32 %v2270, %v2342
        %v2344 = vpop.f32.mrf.mxu0
        %v2345 = vadd.f32 %v2272, %v2344
        %2346 = vmatmul.bf16.gmra.mxu0 %v776
        %v2347 = vpop.f32.mrf.mxu0
        %v2348 = vadd.f32 %v2275, %v2347
        %v2349 = vpop.f32.mrf.mxu0
        %v2350 = vadd.f32 %v2277, %v2349
        %2351 = vmatmul.bf16.gmra.mxu0 %v779
        %v2352 = vpop.f32.mrf.mxu0
        %v2353 = vadd.f32 %v2280, %v2352
        %v2354 = vpop.f32.mrf.mxu0
        %v2355 = vadd.f32 %v2282, %v2354
        %2356 = vmatmul.bf16.gmra.mxu0 %v782
        %v2357 = vpop.f32.mrf.mxu0
        %v2358 = vadd.f32 %v2285, %v2357
        %v2359 = vpop.f32.mrf.mxu0
        %v2360 = vadd.f32 %v2287, %v2359
        %2361 = vmatmul.bf16.gmra.mxu0 %v785
        %v2362 = vpop.f32.mrf.mxu0
        %v2363 = vadd.f32 %v2290, %v2362
        %v2364 = vpop.f32.mrf.mxu0
        %v2365 = vadd.f32 %v2292, %v2364
        %2366 = vmatmul.bf16.gmra.mxu0 %v788
        %v2367 = vpop.f32.mrf.mxu0
        %v2368 = vadd.f32 %v2295, %v2367
        %v2369 = vpop.f32.mrf.mxu0
        %v2370 = vadd.f32 %v2297, %v2369
        %2371 = vmatmul.bf16.gmra.mxu0 %v791
        %v2372 = vpop.f32.mrf.mxu0
        %v2373 = vadd.f32 %v2300, %v2372
        %v2374 = vpop.f32.mrf.mxu0
        %2375 = vdwg.mxu0
        %2376 = vmatpush.bf16.msra.mxu0 %v1594
        %2377 = vmatpush.bf16.msra.mxu0 %v1586
        %2378 = vmatpush.bf16.msra.mxu0 %v1578
        %2379 = vmatpush.bf16.msra.mxu0 %v1570
        %2380 = vmatpush.bf16.msra.mxu0 %v1562
        %2381 = vmatpush.bf16.msra.mxu0 %v1554
        %2382 = vmatpush.bf16.msra.mxu0 %v1546
        %2383 = vmatpush.bf16.msra.mxu0 %v1538
        %2384 = vmatmul.bf16.gmra.mxu0 %v756
        %v2385 = vpop.f32.mrf.mxu0
        %v2386 = vadd.f32 %v2313, %v2385
        %v2387 = vpop.f32.mrf.mxu0
        %v2388 = vadd.f32 %v2315, %v2387
        %2389 = vmatmul.bf16.gmra.mxu0 %v759
        %v2390 = vpop.f32.mrf.mxu0
        %v2391 = vadd.f32 %v2318, %v2390
        %v2392 = vpop.f32.mrf.mxu0
        %v2393 = vadd.f32 %v2320, %v2392
        %2394 = vmatmul.bf16.gmra.mxu0 %v762
        %v2395 = vpop.f32.mrf.mxu0
        %v2396 = vadd.f32 %v2323, %v2395
        %v2397 = vpop.f32.mrf.mxu0
        %v2398 = vadd.f32 %v2325, %v2397
        %2399 = vmatmul.bf16.gmra.mxu0 %v765
        %v2400 = vpop.f32.mrf.mxu0
        %v2401 = vadd.f32 %v2328, %v2400
        %v2402 = vpop.f32.mrf.mxu0
        %v2403 = vadd.f32 %v2330, %v2402
        %2404 = vmatmul.bf16.gmra.mxu0 %v768
        %v2405 = vpop.f32.mrf.mxu0
        %v2406 = vadd.f32 %v2333, %v2405
        %v2407 = vpop.f32.mrf.mxu0
        %v2408 = vadd.f32 %v2335, %v2407
        %2409 = vmatmul.bf16.gmra.mxu0 %v771
        %v2410 = vpop.f32.mrf.mxu0
        %v2411 = vadd.f32 %v2338, %v2410
        %v2412 = vpop.f32.mrf.mxu0
        %v2413 = vadd.f32 %v2340, %v2412
        %2414 = vmatmul.bf16.gmra.mxu0 %v774
        %v2415 = vpop.f32.mrf.mxu0
        %v2416 = vadd.f32 %v2343, %v2415
        %v2417 = vpop.f32.mrf.mxu0
        %v2418 = vadd.f32 %v2345, %v2417
        %2419 = vmatmul.bf16.gmra.mxu0 %v777
        %v2420 = vpop.f32.mrf.mxu0
        %v2421 = vadd.f32 %v2348, %v2420
        %v2422 = vpop.f32.mrf.mxu0
        %v2423 = vadd.f32 %v2350, %v2422
        %2424 = vmatmul.bf16.gmra.mxu0 %v780
        %v2425 = vpop.f32.mrf.mxu0
        %v2426 = vadd.f32 %v2353, %v2425
        %v2427 = vpop.f32.mrf.mxu0
        %v2428 = vadd.f32 %v2355, %v2427
        %2429 = vmatmul.bf16.gmra.mxu0 %v783
        %v2430 = vpop.f32.mrf.mxu0
        %v2431 = vadd.f32 %v2358, %v2430
        %v2432 = vpop.f32.mrf.mxu0
        %v2433 = vadd.f32 %v2360, %v2432
        %2434 = vmatmul.bf16.gmra.mxu0 %v786
        %v2435 = vpop.f32.mrf.mxu0
        %v2436 = vadd.f32 %v2363, %v2435
        %v2437 = vpop.f32.mrf.mxu0
        %v2438 = vadd.f32 %v2365, %v2437
        %2439 = vmatmul.bf16.gmra.mxu0 %v789
        %v2440 = vpop.f32.mrf.mxu0
        %v2441 = vadd.f32 %v2368, %v2440
        %v2442 = vpop.f32.mrf.mxu0
        %v2443 = vadd.f32 %v2370, %v2442
        %2444 = vmatmul.bf16.gmra.mxu0 %v792
        %v2445 = vpop.f32.mrf.mxu0
        %v2446 = vadd.f32 %v2373, %v2445
        %v2447 = vpop.f32.mrf.mxu0
        %2448 = vdwg.mxu0
        %2449 = vmatpush.bf16.msra.mxu0 %v1467
        %2450 = vmatpush.bf16.msra.mxu0 %v1459
        %2451 = vmatpush.bf16.msra.mxu0 %v1451
        %2452 = vmatpush.bf16.msra.mxu0 %v1443
        %2453 = vmatpush.bf16.msra.mxu0 %v1435
        %2454 = vmatpush.bf16.msra.mxu0 %v1427
        %2455 = vmatpush.bf16.msra.mxu0 %v1419
        %2456 = vmatpush.bf16.msra.mxu0 %v1411
        %2457 = vmatmul.bf16.gmra.mxu0 %v754
        %v2458 = vpop.f32.mrf.mxu0
        %v2459 = vadd.f32 %v616, %v2458
        %v2460 = vpop.f32.mrf.mxu0
        %v2461 = vadd.f32 %v616, %v2460
        %2462 = vmatmul.bf16.gmra.mxu0 %v757
        %v2463 = vpop.f32.mrf.mxu0
        %v2464 = vadd.f32 %v616, %v2463
        %v2465 = vpop.f32.mrf.mxu0
        %v2466 = vadd.f32 %v616, %v2465
        %2467 = vmatmul.bf16.gmra.mxu0 %v760
        %v2468 = vpop.f32.mrf.mxu0
        %v2469 = vadd.f32 %v616, %v2468
        %v2470 = vpop.f32.mrf.mxu0
        %v2471 = vadd.f32 %v616, %v2470
        %2472 = vmatmul.bf16.gmra.mxu0 %v763
        %v2473 = vpop.f32.mrf.mxu0
        %v2474 = vadd.f32 %v616, %v2473
        %v2475 = vpop.f32.mrf.mxu0
        %v2476 = vadd.f32 %v616, %v2475
        %2477 = vmatmul.bf16.gmra.mxu0 %v766
        %v2478 = vpop.f32.mrf.mxu0
        %v2479 = vadd.f32 %v616, %v2478
        %v2480 = vpop.f32.mrf.mxu0
        %v2481 = vadd.f32 %v616, %v2480
        %2482 = vmatmul.bf16.gmra.mxu0 %v769
        %v2483 = vpop.f32.mrf.mxu0
        %v2484 = vadd.f32 %v616, %v2483
        %v2485 = vpop.f32.mrf.mxu0
        %v2486 = vadd.f32 %v616, %v2485
        %2487 = vmatmul.bf16.gmra.mxu0 %v772
        %v2488 = vpop.f32.mrf.mxu0
        %v2489 = vadd.f32 %v616, %v2488
        %v2490 = vpop.f32.mrf.mxu0
        %v2491 = vadd.f32 %v616, %v2490
        %2492 = vmatmul.bf16.gmra.mxu0 %v775
        %v2493 = vpop.f32.mrf.mxu0
        %v2494 = vadd.f32 %v616, %v2493
        %v2495 = vpop.f32.mrf.mxu0
        %v2496 = vadd.f32 %v616, %v2495
        %2497 = vmatmul.bf16.gmra.mxu0 %v778
        %v2498 = vpop.f32.mrf.mxu0
        %v2499 = vadd.f32 %v616, %v2498
        %v2500 = vpop.f32.mrf.mxu0
        %v2501 = vadd.f32 %v616, %v2500
        %2502 = vmatmul.bf16.gmra.mxu0 %v781
        %v2503 = vpop.f32.mrf.mxu0
        %v2504 = vadd.f32 %v616, %v2503
        %v2505 = vpop.f32.mrf.mxu0
        %v2506 = vadd.f32 %v616, %v2505
        %2507 = vmatmul.bf16.gmra.mxu0 %v784
        %v2508 = vpop.f32.mrf.mxu0
        %v2509 = vadd.f32 %v616, %v2508
        %v2510 = vpop.f32.mrf.mxu0
        %v2511 = vadd.f32 %v616, %v2510
        %2512 = vmatmul.bf16.gmra.mxu0 %v787
        %v2513 = vpop.f32.mrf.mxu0
        %v2514 = vadd.f32 %v616, %v2513
        %v2515 = vpop.f32.mrf.mxu0
        %v2516 = vadd.f32 %v616, %v2515
        %2517 = vmatmul.bf16.gmra.mxu0 %v790
        %v2518 = vpop.f32.mrf.mxu0
        %v2519 = vadd.f32 %v616, %v2518
        %v2520 = vpop.f32.mrf.mxu0
        %2521 = vdwg.mxu0
        %2522 = vmatpush.bf16.msra.mxu0 %v1531
        %2523 = vmatpush.bf16.msra.mxu0 %v1523
        %2524 = vmatpush.bf16.msra.mxu0 %v1515
        %2525 = vmatpush.bf16.msra.mxu0 %v1507
        %2526 = vmatpush.bf16.msra.mxu0 %v1499
        %2527 = vmatpush.bf16.msra.mxu0 %v1491
        %2528 = vmatpush.bf16.msra.mxu0 %v1483
        %2529 = vmatpush.bf16.msra.mxu0 %v1475
        %2530 = vmatmul.bf16.gmra.mxu0 %v755
        %v2531 = vpop.f32.mrf.mxu0
        %v2532 = vadd.f32 %v2459, %v2531
        %v2533 = vpop.f32.mrf.mxu0
        %v2534 = vadd.f32 %v2461, %v2533
        %2535 = vmatmul.bf16.gmra.mxu0 %v758
        %v2536 = vpop.f32.mrf.mxu0
        %v2537 = vadd.f32 %v2464, %v2536
        %v2538 = vpop.f32.mrf.mxu0
        %v2539 = vadd.f32 %v2466, %v2538
        %2540 = vmatmul.bf16.gmra.mxu0 %v761
        %v2541 = vpop.f32.mrf.mxu0
        %v2542 = vadd.f32 %v2469, %v2541
        %v2543 = vpop.f32.mrf.mxu0
        %v2544 = vadd.f32 %v2471, %v2543
        %2545 = vmatmul.bf16.gmra.mxu0 %v764
        %v2546 = vpop.f32.mrf.mxu0
        %v2547 = vadd.f32 %v2474, %v2546
        %v2548 = vpop.f32.mrf.mxu0
        %v2549 = vadd.f32 %v2476, %v2548
        %2550 = vmatmul.bf16.gmra.mxu0 %v767
        %v2551 = vpop.f32.mrf.mxu0
        %v2552 = vadd.f32 %v2479, %v2551
        %v2553 = vpop.f32.mrf.mxu0
        %v2554 = vadd.f32 %v2481, %v2553
        %2555 = vmatmul.bf16.gmra.mxu0 %v770
        %v2556 = vpop.f32.mrf.mxu0
        %v2557 = vadd.f32 %v2484, %v2556
        %v2558 = vpop.f32.mrf.mxu0
        %v2559 = vadd.f32 %v2486, %v2558
        %2560 = vmatmul.bf16.gmra.mxu0 %v773
        %v2561 = vpop.f32.mrf.mxu0
        %v2562 = vadd.f32 %v2489, %v2561
        %v2563 = vpop.f32.mrf.mxu0
        %v2564 = vadd.f32 %v2491, %v2563
        %2565 = vmatmul.bf16.gmra.mxu0 %v776
        %v2566 = vpop.f32.mrf.mxu0
        %v2567 = vadd.f32 %v2494, %v2566
        %v2568 = vpop.f32.mrf.mxu0
        %v2569 = vadd.f32 %v2496, %v2568
        %2570 = vmatmul.bf16.gmra.mxu0 %v779
        %v2571 = vpop.f32.mrf.mxu0
        %v2572 = vadd.f32 %v2499, %v2571
        %v2573 = vpop.f32.mrf.mxu0
        %v2574 = vadd.f32 %v2501, %v2573
        %2575 = vmatmul.bf16.gmra.mxu0 %v782
        %v2576 = vpop.f32.mrf.mxu0
        %v2577 = vadd.f32 %v2504, %v2576
        %v2578 = vpop.f32.mrf.mxu0
        %v2579 = vadd.f32 %v2506, %v2578
        %2580 = vmatmul.bf16.gmra.mxu0 %v785
        %v2581 = vpop.f32.mrf.mxu0
        %v2582 = vadd.f32 %v2509, %v2581
        %v2583 = vpop.f32.mrf.mxu0
        %v2584 = vadd.f32 %v2511, %v2583
        %2585 = vmatmul.bf16.gmra.mxu0 %v788
        %v2586 = vpop.f32.mrf.mxu0
        %v2587 = vadd.f32 %v2514, %v2586
        %v2588 = vpop.f32.mrf.mxu0
        %v2589 = vadd.f32 %v2516, %v2588
        %2590 = vmatmul.bf16.gmra.mxu0 %v791
        %v2591 = vpop.f32.mrf.mxu0
        %v2592 = vadd.f32 %v2519, %v2591
        %v2593 = vpop.f32.mrf.mxu0
        %2594 = vdwg.mxu0
        %2595 = vmatpush.bf16.msra.mxu0 %v1595
        %2596 = vmatpush.bf16.msra.mxu0 %v1587
        %2597 = vmatpush.bf16.msra.mxu0 %v1579
        %2598 = vmatpush.bf16.msra.mxu0 %v1571
        %2599 = vmatpush.bf16.msra.mxu0 %v1563
        %2600 = vmatpush.bf16.msra.mxu0 %v1555
        %2601 = vmatpush.bf16.msra.mxu0 %v1547
        %2602 = vmatpush.bf16.msra.mxu0 %v1539
        %2603 = vmatmul.bf16.gmra.mxu0 %v756
        %v2604 = vpop.f32.mrf.mxu0
        %v2605 = vadd.f32 %v2532, %v2604
        %v2606 = vpop.f32.mrf.mxu0
        %v2607 = vadd.f32 %v2534, %v2606
        %2608 = vmatmul.bf16.gmra.mxu0 %v759
        %v2609 = vpop.f32.mrf.mxu0
        %v2610 = vadd.f32 %v2537, %v2609
        %v2611 = vpop.f32.mrf.mxu0
        %v2612 = vadd.f32 %v2539, %v2611
        %2613 = vmatmul.bf16.gmra.mxu0 %v762
        %v2614 = vpop.f32.mrf.mxu0
        %v2615 = vadd.f32 %v2542, %v2614
        %v2616 = vpop.f32.mrf.mxu0
        %v2617 = vadd.f32 %v2544, %v2616
        %2618 = vmatmul.bf16.gmra.mxu0 %v765
        %v2619 = vpop.f32.mrf.mxu0
        %v2620 = vadd.f32 %v2547, %v2619
        %v2621 = vpop.f32.mrf.mxu0
        %v2622 = vadd.f32 %v2549, %v2621
        %2623 = vmatmul.bf16.gmra.mxu0 %v768
        %v2624 = vpop.f32.mrf.mxu0
        %v2625 = vadd.f32 %v2552, %v2624
        %v2626 = vpop.f32.mrf.mxu0
        %v2627 = vadd.f32 %v2554, %v2626
        %2628 = vmatmul.bf16.gmra.mxu0 %v771
        %v2629 = vpop.f32.mrf.mxu0
        %v2630 = vadd.f32 %v2557, %v2629
        %v2631 = vpop.f32.mrf.mxu0
        %v2632 = vadd.f32 %v2559, %v2631
        %2633 = vmatmul.bf16.gmra.mxu0 %v774
        %v2634 = vpop.f32.mrf.mxu0
        %v2635 = vadd.f32 %v2562, %v2634
        %v2636 = vpop.f32.mrf.mxu0
        %v2637 = vadd.f32 %v2564, %v2636
        %2638 = vmatmul.bf16.gmra.mxu0 %v777
        %v2639 = vpop.f32.mrf.mxu0
        %v2640 = vadd.f32 %v2567, %v2639
        %v2641 = vpop.f32.mrf.mxu0
        %v2642 = vadd.f32 %v2569, %v2641
        %2643 = vmatmul.bf16.gmra.mxu0 %v780
        %v2644 = vpop.f32.mrf.mxu0
        %v2645 = vadd.f32 %v2572, %v2644
        %v2646 = vpop.f32.mrf.mxu0
        %v2647 = vadd.f32 %v2574, %v2646
        %2648 = vmatmul.bf16.gmra.mxu0 %v783
        %v2649 = vpop.f32.mrf.mxu0
        %v2650 = vadd.f32 %v2577, %v2649
        %v2651 = vpop.f32.mrf.mxu0
        %v2652 = vadd.f32 %v2579, %v2651
        %2653 = vmatmul.bf16.gmra.mxu0 %v786
        %v2654 = vpop.f32.mrf.mxu0
        %v2655 = vadd.f32 %v2582, %v2654
        %v2656 = vpop.f32.mrf.mxu0
        %v2657 = vadd.f32 %v2584, %v2656
        %2658 = vmatmul.bf16.gmra.mxu0 %v789
        %v2659 = vpop.f32.mrf.mxu0
        %v2660 = vadd.f32 %v2587, %v2659
        %v2661 = vpop.f32.mrf.mxu0
        %v2662 = vadd.f32 %v2589, %v2661
        %2663 = vmatmul.bf16.gmra.mxu0 %v792
        %v2664 = vpop.f32.mrf.mxu0
        %v2665 = vadd.f32 %v2592, %v2664
        %v2666 = vpop.f32.mrf.mxu0
        %2667 = vdwg.mxu0
        %2668 = vmatpush.bf16.msra.mxu0 %v1468
        %2669 = vmatpush.bf16.msra.mxu0 %v1460
        %2670 = vmatpush.bf16.msra.mxu0 %v1452
        %2671 = vmatpush.bf16.msra.mxu0 %v1444
        %2672 = vmatpush.bf16.msra.mxu0 %v1436
        %2673 = vmatpush.bf16.msra.mxu0 %v1428
        %2674 = vmatpush.bf16.msra.mxu0 %v1420
        %2675 = vmatpush.bf16.msra.mxu0 %v1412
        %2676 = vmatmul.bf16.gmra.mxu0 %v754
        %v2677 = vpop.f32.mrf.mxu0
        %v2678 = vadd.f32 %v617, %v2677
        %v2679 = vpop.f32.mrf.mxu0
        %v2680 = vadd.f32 %v617, %v2679
        %2681 = vmatmul.bf16.gmra.mxu0 %v757
        %v2682 = vpop.f32.mrf.mxu0
        %v2683 = vadd.f32 %v617, %v2682
        %v2684 = vpop.f32.mrf.mxu0
        %v2685 = vadd.f32 %v617, %v2684
        %2686 = vmatmul.bf16.gmra.mxu0 %v760
        %v2687 = vpop.f32.mrf.mxu0
        %v2688 = vadd.f32 %v617, %v2687
        %v2689 = vpop.f32.mrf.mxu0
        %v2690 = vadd.f32 %v617, %v2689
        %2691 = vmatmul.bf16.gmra.mxu0 %v763
        %v2692 = vpop.f32.mrf.mxu0
        %v2693 = vadd.f32 %v617, %v2692
        %v2694 = vpop.f32.mrf.mxu0
        %v2695 = vadd.f32 %v617, %v2694
        %2696 = vmatmul.bf16.gmra.mxu0 %v766
        %v2697 = vpop.f32.mrf.mxu0
        %v2698 = vadd.f32 %v617, %v2697
        %v2699 = vpop.f32.mrf.mxu0
        %v2700 = vadd.f32 %v617, %v2699
        %2701 = vmatmul.bf16.gmra.mxu0 %v769
        %v2702 = vpop.f32.mrf.mxu0
        %v2703 = vadd.f32 %v617, %v2702
        %v2704 = vpop.f32.mrf.mxu0
        %v2705 = vadd.f32 %v617, %v2704
        %2706 = vmatmul.bf16.gmra.mxu0 %v772
        %v2707 = vpop.f32.mrf.mxu0
        %v2708 = vadd.f32 %v617, %v2707
        %v2709 = vpop.f32.mrf.mxu0
        %v2710 = vadd.f32 %v617, %v2709
        %2711 = vmatmul.bf16.gmra.mxu0 %v775
        %v2712 = vpop.f32.mrf.mxu0
        %v2713 = vadd.f32 %v617, %v2712
        %v2714 = vpop.f32.mrf.mxu0
        %v2715 = vadd.f32 %v617, %v2714
        %2716 = vmatmul.bf16.gmra.mxu0 %v778
        %v2717 = vpop.f32.mrf.mxu0
        %v2718 = vadd.f32 %v617, %v2717
        %v2719 = vpop.f32.mrf.mxu0
        %v2720 = vadd.f32 %v617, %v2719
        %2721 = vmatmul.bf16.gmra.mxu0 %v781
        %v2722 = vpop.f32.mrf.mxu0
        %v2723 = vadd.f32 %v617, %v2722
        %v2724 = vpop.f32.mrf.mxu0
        %v2725 = vadd.f32 %v617, %v2724
        %2726 = vmatmul.bf16.gmra.mxu0 %v784
        %v2727 = vpop.f32.mrf.mxu0
        %v2728 = vadd.f32 %v617, %v2727
        %v2729 = vpop.f32.mrf.mxu0
        %v2730 = vadd.f32 %v617, %v2729
        %2731 = vmatmul.bf16.gmra.mxu0 %v787
        %v2732 = vpop.f32.mrf.mxu0
        %v2733 = vadd.f32 %v617, %v2732
        %v2734 = vpop.f32.mrf.mxu0
        %v2735 = vadd.f32 %v617, %v2734
        %2736 = vmatmul.bf16.gmra.mxu0 %v790
        %v2737 = vpop.f32.mrf.mxu0
        %v2738 = vadd.f32 %v617, %v2737
        %v2739 = vpop.f32.mrf.mxu0
        %2740 = vdwg.mxu0
        %2741 = vmatpush.bf16.msra.mxu0 %v1532
        %2742 = vmatpush.bf16.msra.mxu0 %v1524
        %2743 = vmatpush.bf16.msra.mxu0 %v1516
        %2744 = vmatpush.bf16.msra.mxu0 %v1508
        %2745 = vmatpush.bf16.msra.mxu0 %v1500
        %2746 = vmatpush.bf16.msra.mxu0 %v1492
        %2747 = vmatpush.bf16.msra.mxu0 %v1484
        %2748 = vmatpush.bf16.msra.mxu0 %v1476
        %2749 = vmatmul.bf16.gmra.mxu0 %v755
        %v2750 = vpop.f32.mrf.mxu0
        %v2751 = vadd.f32 %v2678, %v2750
        %v2752 = vpop.f32.mrf.mxu0
        %v2753 = vadd.f32 %v2680, %v2752
        %2754 = vmatmul.bf16.gmra.mxu0 %v758
        %v2755 = vpop.f32.mrf.mxu0
        %v2756 = vadd.f32 %v2683, %v2755
        %v2757 = vpop.f32.mrf.mxu0
        %v2758 = vadd.f32 %v2685, %v2757
        %2759 = vmatmul.bf16.gmra.mxu0 %v761
        %v2760 = vpop.f32.mrf.mxu0
        %v2761 = vadd.f32 %v2688, %v2760
        %v2762 = vpop.f32.mrf.mxu0
        %v2763 = vadd.f32 %v2690, %v2762
        %2764 = vmatmul.bf16.gmra.mxu0 %v764
        %v2765 = vpop.f32.mrf.mxu0
        %v2766 = vadd.f32 %v2693, %v2765
        %v2767 = vpop.f32.mrf.mxu0
        %v2768 = vadd.f32 %v2695, %v2767
        %2769 = vmatmul.bf16.gmra.mxu0 %v767
        %v2770 = vpop.f32.mrf.mxu0
        %v2771 = vadd.f32 %v2698, %v2770
        %v2772 = vpop.f32.mrf.mxu0
        %v2773 = vadd.f32 %v2700, %v2772
        %2774 = vmatmul.bf16.gmra.mxu0 %v770
        %v2775 = vpop.f32.mrf.mxu0
        %v2776 = vadd.f32 %v2703, %v2775
        %v2777 = vpop.f32.mrf.mxu0
        %v2778 = vadd.f32 %v2705, %v2777
        %2779 = vmatmul.bf16.gmra.mxu0 %v773
        %v2780 = vpop.f32.mrf.mxu0
        %v2781 = vadd.f32 %v2708, %v2780
        %v2782 = vpop.f32.mrf.mxu0
        %v2783 = vadd.f32 %v2710, %v2782
        %2784 = vmatmul.bf16.gmra.mxu0 %v776
        %v2785 = vpop.f32.mrf.mxu0
        %v2786 = vadd.f32 %v2713, %v2785
        %v2787 = vpop.f32.mrf.mxu0
        %v2788 = vadd.f32 %v2715, %v2787
        %2789 = vmatmul.bf16.gmra.mxu0 %v779
        %v2790 = vpop.f32.mrf.mxu0
        %v2791 = vadd.f32 %v2718, %v2790
        %v2792 = vpop.f32.mrf.mxu0
        %v2793 = vadd.f32 %v2720, %v2792
        %2794 = vmatmul.bf16.gmra.mxu0 %v782
        %v2795 = vpop.f32.mrf.mxu0
        %v2796 = vadd.f32 %v2723, %v2795
        %v2797 = vpop.f32.mrf.mxu0
        %v2798 = vadd.f32 %v2725, %v2797
        %2799 = vmatmul.bf16.gmra.mxu0 %v785
        %v2800 = vpop.f32.mrf.mxu0
        %v2801 = vadd.f32 %v2728, %v2800
        %v2802 = vpop.f32.mrf.mxu0
        %v2803 = vadd.f32 %v2730, %v2802
        %2804 = vmatmul.bf16.gmra.mxu0 %v788
        %v2805 = vpop.f32.mrf.mxu0
        %v2806 = vadd.f32 %v2733, %v2805
        %v2807 = vpop.f32.mrf.mxu0
        %v2808 = vadd.f32 %v2735, %v2807
        %2809 = vmatmul.bf16.gmra.mxu0 %v791
        %v2810 = vpop.f32.mrf.mxu0
        %v2811 = vadd.f32 %v2738, %v2810
        %v2812 = vpop.f32.mrf.mxu0
        %2813 = vdwg.mxu0
        %2814 = vmatpush.bf16.msra.mxu0 %v1596
        %2815 = vmatpush.bf16.msra.mxu0 %v1588
        %2816 = vmatpush.bf16.msra.mxu0 %v1580
        %2817 = vmatpush.bf16.msra.mxu0 %v1572
        %2818 = vmatpush.bf16.msra.mxu0 %v1564
        %2819 = vmatpush.bf16.msra.mxu0 %v1556
        %2820 = vmatpush.bf16.msra.mxu0 %v1548
        %2821 = vmatpush.bf16.msra.mxu0 %v1540
        %2822 = vmatmul.bf16.gmra.mxu0 %v756
        %v2823 = vpop.f32.mrf.mxu0
        %v2824 = vadd.f32 %v2751, %v2823
        %v2825 = vpop.f32.mrf.mxu0
        %v2826 = vadd.f32 %v2753, %v2825
        %2827 = vmatmul.bf16.gmra.mxu0 %v759
        %v2828 = vpop.f32.mrf.mxu0
        %v2829 = vadd.f32 %v2756, %v2828
        %v2830 = vpop.f32.mrf.mxu0
        %v2831 = vadd.f32 %v2758, %v2830
        %2832 = vmatmul.bf16.gmra.mxu0 %v762
        %v2833 = vpop.f32.mrf.mxu0
        %v2834 = vadd.f32 %v2761, %v2833
        %v2835 = vpop.f32.mrf.mxu0
        %v2836 = vadd.f32 %v2763, %v2835
        %2837 = vmatmul.bf16.gmra.mxu0 %v765
        %v2838 = vpop.f32.mrf.mxu0
        %v2839 = vadd.f32 %v2766, %v2838
        %v2840 = vpop.f32.mrf.mxu0
        %v2841 = vadd.f32 %v2768, %v2840
        %2842 = vmatmul.bf16.gmra.mxu0 %v768
        %v2843 = vpop.f32.mrf.mxu0
        %v2844 = vadd.f32 %v2771, %v2843
        %v2845 = vpop.f32.mrf.mxu0
        %v2846 = vadd.f32 %v2773, %v2845
        %2847 = vmatmul.bf16.gmra.mxu0 %v771
        %v2848 = vpop.f32.mrf.mxu0
        %v2849 = vadd.f32 %v2776, %v2848
        %v2850 = vpop.f32.mrf.mxu0
        %v2851 = vadd.f32 %v2778, %v2850
        %2852 = vmatmul.bf16.gmra.mxu0 %v774
        %v2853 = vpop.f32.mrf.mxu0
        %v2854 = vadd.f32 %v2781, %v2853
        %v2855 = vpop.f32.mrf.mxu0
        %v2856 = vadd.f32 %v2783, %v2855
        %2857 = vmatmul.bf16.gmra.mxu0 %v777
        %v2858 = vpop.f32.mrf.mxu0
        %v2859 = vadd.f32 %v2786, %v2858
        %v2860 = vpop.f32.mrf.mxu0
        %v2861 = vadd.f32 %v2788, %v2860
        %2862 = vmatmul.bf16.gmra.mxu0 %v780
        %v2863 = vpop.f32.mrf.mxu0
        %v2864 = vadd.f32 %v2791, %v2863
        %v2865 = vpop.f32.mrf.mxu0
        %v2866 = vadd.f32 %v2793, %v2865
        %2867 = vmatmul.bf16.gmra.mxu0 %v783
        %v2868 = vpop.f32.mrf.mxu0
        %v2869 = vadd.f32 %v2796, %v2868
        %v2870 = vpop.f32.mrf.mxu0
        %v2871 = vadd.f32 %v2798, %v2870
        %2872 = vmatmul.bf16.gmra.mxu0 %v786
        %v2873 = vpop.f32.mrf.mxu0
        %v2874 = vadd.f32 %v2801, %v2873
        %v2875 = vpop.f32.mrf.mxu0
        %v2876 = vadd.f32 %v2803, %v2875
        %2877 = vmatmul.bf16.gmra.mxu0 %v789
        %v2878 = vpop.f32.mrf.mxu0
        %v2879 = vadd.f32 %v2806, %v2878
        %v2880 = vpop.f32.mrf.mxu0
        %v2881 = vadd.f32 %v2808, %v2880
        %2882 = vmatmul.bf16.gmra.mxu0 %v792
        %v2883 = vpop.f32.mrf.mxu0
        %v2884 = vadd.f32 %v2811, %v2883
        %v2885 = vpop.f32.mrf.mxu0
        %2886 = vdwg.mxu0
        %2887 = vmatpush.bf16.msra.mxu0 %v1469
        %2888 = vmatpush.bf16.msra.mxu0 %v1461
        %2889 = vmatpush.bf16.msra.mxu0 %v1453
        %2890 = vmatpush.bf16.msra.mxu0 %v1445
        %2891 = vmatpush.bf16.msra.mxu0 %v1437
        %2892 = vmatpush.bf16.msra.mxu0 %v1429
        %2893 = vmatpush.bf16.msra.mxu0 %v1421
        %2894 = vmatpush.bf16.msra.mxu0 %v1413
        %2895 = vmatmul.bf16.gmra.mxu0 %v754
        %v2896 = vpop.f32.mrf.mxu0
        %v2897 = vadd.f32 %v618, %v2896
        %v2898 = vpop.f32.mrf.mxu0
        %v2899 = vadd.f32 %v618, %v2898
        %2900 = vmatmul.bf16.gmra.mxu0 %v757
        %v2901 = vpop.f32.mrf.mxu0
        %v2902 = vadd.f32 %v618, %v2901
        %v2903 = vpop.f32.mrf.mxu0
        %v2904 = vadd.f32 %v618, %v2903
        %2905 = vmatmul.bf16.gmra.mxu0 %v760
        %v2906 = vpop.f32.mrf.mxu0
        %v2907 = vadd.f32 %v618, %v2906
        %v2908 = vpop.f32.mrf.mxu0
        %v2909 = vadd.f32 %v618, %v2908
        %2910 = vmatmul.bf16.gmra.mxu0 %v763
        %v2911 = vpop.f32.mrf.mxu0
        %v2912 = vadd.f32 %v618, %v2911
        %v2913 = vpop.f32.mrf.mxu0
        %v2914 = vadd.f32 %v618, %v2913
        %2915 = vmatmul.bf16.gmra.mxu0 %v766
        %v2916 = vpop.f32.mrf.mxu0
        %v2917 = vadd.f32 %v618, %v2916
        %v2918 = vpop.f32.mrf.mxu0
        %v2919 = vadd.f32 %v618, %v2918
        %2920 = vmatmul.bf16.gmra.mxu0 %v769
        %v2921 = vpop.f32.mrf.mxu0
        %v2922 = vadd.f32 %v618, %v2921
        %v2923 = vpop.f32.mrf.mxu0
        %v2924 = vadd.f32 %v618, %v2923
        %2925 = vmatmul.bf16.gmra.mxu0 %v772
        %v2926 = vpop.f32.mrf.mxu0
        %v2927 = vadd.f32 %v618, %v2926
        %v2928 = vpop.f32.mrf.mxu0
        %v2929 = vadd.f32 %v618, %v2928
        %2930 = vmatmul.bf16.gmra.mxu0 %v775
        %v2931 = vpop.f32.mrf.mxu0
        %v2932 = vadd.f32 %v618, %v2931
        %v2933 = vpop.f32.mrf.mxu0
        %v2934 = vadd.f32 %v618, %v2933
        %2935 = vmatmul.bf16.gmra.mxu0 %v778
        %v2936 = vpop.f32.mrf.mxu0
        %v2937 = vadd.f32 %v618, %v2936
        %v2938 = vpop.f32.mrf.mxu0
        %v2939 = vadd.f32 %v618, %v2938
        %2940 = vmatmul.bf16.gmra.mxu0 %v781
        %v2941 = vpop.f32.mrf.mxu0
        %v2942 = vadd.f32 %v618, %v2941
        %v2943 = vpop.f32.mrf.mxu0
        %v2944 = vadd.f32 %v618, %v2943
        %2945 = vmatmul.bf16.gmra.mxu0 %v784
        %v2946 = vpop.f32.mrf.mxu0
        %v2947 = vadd.f32 %v618, %v2946
        %v2948 = vpop.f32.mrf.mxu0
        %v2949 = vadd.f32 %v618, %v2948
        %2950 = vmatmul.bf16.gmra.mxu0 %v787
        %v2951 = vpop.f32.mrf.mxu0
        %v2952 = vadd.f32 %v618, %v2951
        %v2953 = vpop.f32.mrf.mxu0
        %v2954 = vadd.f32 %v618, %v2953
        %2955 = vmatmul.bf16.gmra.mxu0 %v790
        %v2956 = vpop.f32.mrf.mxu0
        %v2957 = vadd.f32 %v618, %v2956
        %v2958 = vpop.f32.mrf.mxu0
        %2959 = vdwg.mxu0
        %2960 = vmatpush.bf16.msra.mxu0 %v1533
        %2961 = vmatpush.bf16.msra.mxu0 %v1525
        %2962 = vmatpush.bf16.msra.mxu0 %v1517
        %2963 = vmatpush.bf16.msra.mxu0 %v1509
        %2964 = vmatpush.bf16.msra.mxu0 %v1501
        %2965 = vmatpush.bf16.msra.mxu0 %v1493
        %2966 = vmatpush.bf16.msra.mxu0 %v1485
        %2967 = vmatpush.bf16.msra.mxu0 %v1477
        %2968 = vmatmul.bf16.gmra.mxu0 %v755
        %v2969 = vpop.f32.mrf.mxu0
        %v2970 = vadd.f32 %v2897, %v2969
        %v2971 = vpop.f32.mrf.mxu0
        %v2972 = vadd.f32 %v2899, %v2971
        %2973 = vmatmul.bf16.gmra.mxu0 %v758
        %v2974 = vpop.f32.mrf.mxu0
        %v2975 = vadd.f32 %v2902, %v2974
        %v2976 = vpop.f32.mrf.mxu0
        %v2977 = vadd.f32 %v2904, %v2976
        %2978 = vmatmul.bf16.gmra.mxu0 %v761
        %v2979 = vpop.f32.mrf.mxu0
        %v2980 = vadd.f32 %v2907, %v2979
        %v2981 = vpop.f32.mrf.mxu0
        %v2982 = vadd.f32 %v2909, %v2981
        %2983 = vmatmul.bf16.gmra.mxu0 %v764
        %v2984 = vpop.f32.mrf.mxu0
        %v2985 = vadd.f32 %v2912, %v2984
        %v2986 = vpop.f32.mrf.mxu0
        %v2987 = vadd.f32 %v2914, %v2986
        %2988 = vmatmul.bf16.gmra.mxu0 %v767
        %v2989 = vpop.f32.mrf.mxu0
        %v2990 = vadd.f32 %v2917, %v2989
        %v2991 = vpop.f32.mrf.mxu0
        %v2992 = vadd.f32 %v2919, %v2991
        %2993 = vmatmul.bf16.gmra.mxu0 %v770
        %v2994 = vpop.f32.mrf.mxu0
        %v2995 = vadd.f32 %v2922, %v2994
        %v2996 = vpop.f32.mrf.mxu0
        %v2997 = vadd.f32 %v2924, %v2996
        %2998 = vmatmul.bf16.gmra.mxu0 %v773
        %v2999 = vpop.f32.mrf.mxu0
        %v3000 = vadd.f32 %v2927, %v2999
        %v3001 = vpop.f32.mrf.mxu0
        %v3002 = vadd.f32 %v2929, %v3001
        %3003 = vmatmul.bf16.gmra.mxu0 %v776
        %v3004 = vpop.f32.mrf.mxu0
        %v3005 = vadd.f32 %v2932, %v3004
        %v3006 = vpop.f32.mrf.mxu0
        %v3007 = vadd.f32 %v2934, %v3006
        %3008 = vmatmul.bf16.gmra.mxu0 %v779
        %v3009 = vpop.f32.mrf.mxu0
        %v3010 = vadd.f32 %v2937, %v3009
        %v3011 = vpop.f32.mrf.mxu0
        %v3012 = vadd.f32 %v2939, %v3011
        %3013 = vmatmul.bf16.gmra.mxu0 %v782
        %v3014 = vpop.f32.mrf.mxu0
        %v3015 = vadd.f32 %v2942, %v3014
        %v3016 = vpop.f32.mrf.mxu0
        %v3017 = vadd.f32 %v2944, %v3016
        %3018 = vmatmul.bf16.gmra.mxu0 %v785
        %v3019 = vpop.f32.mrf.mxu0
        %v3020 = vadd.f32 %v2947, %v3019
        %v3021 = vpop.f32.mrf.mxu0
        %v3022 = vadd.f32 %v2949, %v3021
        %3023 = vmatmul.bf16.gmra.mxu0 %v788
        %v3024 = vpop.f32.mrf.mxu0
        %v3025 = vadd.f32 %v2952, %v3024
        %v3026 = vpop.f32.mrf.mxu0
        %v3027 = vadd.f32 %v2954, %v3026
        %3028 = vmatmul.bf16.gmra.mxu0 %v791
        %v3029 = vpop.f32.mrf.mxu0
        %v3030 = vadd.f32 %v2957, %v3029
        %v3031 = vpop.f32.mrf.mxu0
        %3032 = vdwg.mxu0
        %3033 = vmatpush.bf16.msra.mxu0 %v1597
        %3034 = vmatpush.bf16.msra.mxu0 %v1589
        %3035 = vmatpush.bf16.msra.mxu0 %v1581
        %3036 = vmatpush.bf16.msra.mxu0 %v1573
        %3037 = vmatpush.bf16.msra.mxu0 %v1565
        %3038 = vmatpush.bf16.msra.mxu0 %v1557
        %3039 = vmatpush.bf16.msra.mxu0 %v1549
        %3040 = vmatpush.bf16.msra.mxu0 %v1541
        %3041 = vmatmul.bf16.gmra.mxu0 %v756
        %v3042 = vpop.f32.mrf.mxu0
        %v3043 = vadd.f32 %v2970, %v3042
        %v3044 = vpop.f32.mrf.mxu0
        %v3045 = vadd.f32 %v2972, %v3044
        %3046 = vmatmul.bf16.gmra.mxu0 %v759
        %v3047 = vpop.f32.mrf.mxu0
        %v3048 = vadd.f32 %v2975, %v3047
        %v3049 = vpop.f32.mrf.mxu0
        %v3050 = vadd.f32 %v2977, %v3049
        %3051 = vmatmul.bf16.gmra.mxu0 %v762
        %v3052 = vpop.f32.mrf.mxu0
        %v3053 = vadd.f32 %v2980, %v3052
        %v3054 = vpop.f32.mrf.mxu0
        %v3055 = vadd.f32 %v2982, %v3054
        %3056 = vmatmul.bf16.gmra.mxu0 %v765
        %v3057 = vpop.f32.mrf.mxu0
        %v3058 = vadd.f32 %v2985, %v3057
        %v3059 = vpop.f32.mrf.mxu0
        %v3060 = vadd.f32 %v2987, %v3059
        %3061 = vmatmul.bf16.gmra.mxu0 %v768
        %v3062 = vpop.f32.mrf.mxu0
        %v3063 = vadd.f32 %v2990, %v3062
        %v3064 = vpop.f32.mrf.mxu0
        %v3065 = vadd.f32 %v2992, %v3064
        %3066 = vmatmul.bf16.gmra.mxu0 %v771
        %v3067 = vpop.f32.mrf.mxu0
        %v3068 = vadd.f32 %v2995, %v3067
        %v3069 = vpop.f32.mrf.mxu0
        %v3070 = vadd.f32 %v2997, %v3069
        %3071 = vmatmul.bf16.gmra.mxu0 %v774
        %v3072 = vpop.f32.mrf.mxu0
        %v3073 = vadd.f32 %v3000, %v3072
        %v3074 = vpop.f32.mrf.mxu0
        %v3075 = vadd.f32 %v3002, %v3074
        %3076 = vmatmul.bf16.gmra.mxu0 %v777
        %v3077 = vpop.f32.mrf.mxu0
        %v3078 = vadd.f32 %v3005, %v3077
        %v3079 = vpop.f32.mrf.mxu0
        %v3080 = vadd.f32 %v3007, %v3079
        %3081 = vmatmul.bf16.gmra.mxu0 %v780
        %v3082 = vpop.f32.mrf.mxu0
        %v3083 = vadd.f32 %v3010, %v3082
        %v3084 = vpop.f32.mrf.mxu0
        %v3085 = vadd.f32 %v3012, %v3084
        %3086 = vmatmul.bf16.gmra.mxu0 %v783
        %v3087 = vpop.f32.mrf.mxu0
        %v3088 = vadd.f32 %v3015, %v3087
        %v3089 = vpop.f32.mrf.mxu0
        %v3090 = vadd.f32 %v3017, %v3089
        %3091 = vmatmul.bf16.gmra.mxu0 %v786
        %v3092 = vpop.f32.mrf.mxu0
        %v3093 = vadd.f32 %v3020, %v3092
        %v3094 = vpop.f32.mrf.mxu0
        %v3095 = vadd.f32 %v3022, %v3094
        %3096 = vmatmul.bf16.gmra.mxu0 %v789
        %v3097 = vpop.f32.mrf.mxu0
        %v3098 = vadd.f32 %v3025, %v3097
        %v3099 = vpop.f32.mrf.mxu0
        %v3100 = vadd.f32 %v3027, %v3099
        %3101 = vmatmul.bf16.gmra.mxu0 %v792
        %v3102 = vpop.f32.mrf.mxu0
        %v3103 = vadd.f32 %v3030, %v3102
        %v3104 = vpop.f32.mrf.mxu0
        %3105 = vdwg.mxu0
        %3106 = vmatpush.bf16.msra.mxu0 %v1470
        %3107 = vmatpush.bf16.msra.mxu0 %v1462
        %3108 = vmatpush.bf16.msra.mxu0 %v1454
        %3109 = vmatpush.bf16.msra.mxu0 %v1446
        %3110 = vmatpush.bf16.msra.mxu0 %v1438
        %3111 = vmatpush.bf16.msra.mxu0 %v1430
        %3112 = vmatpush.bf16.msra.mxu0 %v1422
        %3113 = vmatpush.bf16.msra.mxu0 %v1414
        %3114 = vmatmul.bf16.gmra.mxu0 %v754
        %v3115 = vpop.f32.mrf.mxu0
        %v3116 = vadd.f32 %v619, %v3115
        %v3117 = vpop.f32.mrf.mxu0
        %v3118 = vadd.f32 %v619, %v3117
        %3119 = vmatmul.bf16.gmra.mxu0 %v757
        %v3120 = vpop.f32.mrf.mxu0
        %v3121 = vadd.f32 %v619, %v3120
        %v3122 = vpop.f32.mrf.mxu0
        %v3123 = vadd.f32 %v619, %v3122
        %3124 = vmatmul.bf16.gmra.mxu0 %v760
        %v3125 = vpop.f32.mrf.mxu0
        %v3126 = vadd.f32 %v619, %v3125
        %v3127 = vpop.f32.mrf.mxu0
        %v3128 = vadd.f32 %v619, %v3127
        %3129 = vmatmul.bf16.gmra.mxu0 %v763
        %v3130 = vpop.f32.mrf.mxu0
        %v3131 = vadd.f32 %v619, %v3130
        %v3132 = vpop.f32.mrf.mxu0
        %v3133 = vadd.f32 %v619, %v3132
        %3134 = vmatmul.bf16.gmra.mxu0 %v766
        %v3135 = vpop.f32.mrf.mxu0
        %v3136 = vadd.f32 %v619, %v3135
        %v3137 = vpop.f32.mrf.mxu0
        %v3138 = vadd.f32 %v619, %v3137
        %3139 = vmatmul.bf16.gmra.mxu0 %v769
        %v3140 = vpop.f32.mrf.mxu0
        %v3141 = vadd.f32 %v619, %v3140
        %v3142 = vpop.f32.mrf.mxu0
        %v3143 = vadd.f32 %v619, %v3142
        %3144 = vmatmul.bf16.gmra.mxu0 %v772
        %v3145 = vpop.f32.mrf.mxu0
        %v3146 = vadd.f32 %v619, %v3145
        %v3147 = vpop.f32.mrf.mxu0
        %v3148 = vadd.f32 %v619, %v3147
        %3149 = vmatmul.bf16.gmra.mxu0 %v775
        %v3150 = vpop.f32.mrf.mxu0
        %v3151 = vadd.f32 %v619, %v3150
        %v3152 = vpop.f32.mrf.mxu0
        %v3153 = vadd.f32 %v619, %v3152
        %3154 = vmatmul.bf16.gmra.mxu0 %v778
        %v3155 = vpop.f32.mrf.mxu0
        %v3156 = vadd.f32 %v619, %v3155
        %v3157 = vpop.f32.mrf.mxu0
        %v3158 = vadd.f32 %v619, %v3157
        %3159 = vmatmul.bf16.gmra.mxu0 %v781
        %v3160 = vpop.f32.mrf.mxu0
        %v3161 = vadd.f32 %v619, %v3160
        %v3162 = vpop.f32.mrf.mxu0
        %v3163 = vadd.f32 %v619, %v3162
        %3164 = vmatmul.bf16.gmra.mxu0 %v784
        %v3165 = vpop.f32.mrf.mxu0
        %v3166 = vadd.f32 %v619, %v3165
        %v3167 = vpop.f32.mrf.mxu0
        %v3168 = vadd.f32 %v619, %v3167
        %3169 = vmatmul.bf16.gmra.mxu0 %v787
        %v3170 = vpop.f32.mrf.mxu0
        %v3171 = vadd.f32 %v619, %v3170
        %v3172 = vpop.f32.mrf.mxu0
        %v3173 = vadd.f32 %v619, %v3172
        %3174 = vmatmul.bf16.gmra.mxu0 %v790
        %v3175 = vpop.f32.mrf.mxu0
        %v3176 = vadd.f32 %v619, %v3175
        %v3177 = vpop.f32.mrf.mxu0
        %3178 = vdwg.mxu0
        %3179 = vmatpush.bf16.msra.mxu0 %v1534
        %3180 = vmatpush.bf16.msra.mxu0 %v1526
        %3181 = vmatpush.bf16.msra.mxu0 %v1518
        %3182 = vmatpush.bf16.msra.mxu0 %v1510
        %3183 = vmatpush.bf16.msra.mxu0 %v1502
        %3184 = vmatpush.bf16.msra.mxu0 %v1494
        %3185 = vmatpush.bf16.msra.mxu0 %v1486
        %3186 = vmatpush.bf16.msra.mxu0 %v1478
        %3187 = vmatmul.bf16.gmra.mxu0 %v755
        %v3188 = vpop.f32.mrf.mxu0
        %v3189 = vadd.f32 %v3116, %v3188
        %v3190 = vpop.f32.mrf.mxu0
        %v3191 = vadd.f32 %v3118, %v3190
        %3192 = vmatmul.bf16.gmra.mxu0 %v758
        %v3193 = vpop.f32.mrf.mxu0
        %v3194 = vadd.f32 %v3121, %v3193
        %v3195 = vpop.f32.mrf.mxu0
        %v3196 = vadd.f32 %v3123, %v3195
        %3197 = vmatmul.bf16.gmra.mxu0 %v761
        %v3198 = vpop.f32.mrf.mxu0
        %v3199 = vadd.f32 %v3126, %v3198
        %v3200 = vpop.f32.mrf.mxu0
        %v3201 = vadd.f32 %v3128, %v3200
        %3202 = vmatmul.bf16.gmra.mxu0 %v764
        %v3203 = vpop.f32.mrf.mxu0
        %v3204 = vadd.f32 %v3131, %v3203
        %v3205 = vpop.f32.mrf.mxu0
        %v3206 = vadd.f32 %v3133, %v3205
        %3207 = vmatmul.bf16.gmra.mxu0 %v767
        %v3208 = vpop.f32.mrf.mxu0
        %v3209 = vadd.f32 %v3136, %v3208
        %v3210 = vpop.f32.mrf.mxu0
        %v3211 = vadd.f32 %v3138, %v3210
        %3212 = vmatmul.bf16.gmra.mxu0 %v770
        %v3213 = vpop.f32.mrf.mxu0
        %v3214 = vadd.f32 %v3141, %v3213
        %v3215 = vpop.f32.mrf.mxu0
        %v3216 = vadd.f32 %v3143, %v3215
        %3217 = vmatmul.bf16.gmra.mxu0 %v773
        %v3218 = vpop.f32.mrf.mxu0
        %v3219 = vadd.f32 %v3146, %v3218
        %v3220 = vpop.f32.mrf.mxu0
        %v3221 = vadd.f32 %v3148, %v3220
        %3222 = vmatmul.bf16.gmra.mxu0 %v776
        %v3223 = vpop.f32.mrf.mxu0
        %v3224 = vadd.f32 %v3151, %v3223
        %v3225 = vpop.f32.mrf.mxu0
        %v3226 = vadd.f32 %v3153, %v3225
        %3227 = vmatmul.bf16.gmra.mxu0 %v779
        %v3228 = vpop.f32.mrf.mxu0
        %v3229 = vadd.f32 %v3156, %v3228
        %v3230 = vpop.f32.mrf.mxu0
        %v3231 = vadd.f32 %v3158, %v3230
        %3232 = vmatmul.bf16.gmra.mxu0 %v782
        %v3233 = vpop.f32.mrf.mxu0
        %v3234 = vadd.f32 %v3161, %v3233
        %v3235 = vpop.f32.mrf.mxu0
        %v3236 = vadd.f32 %v3163, %v3235
        %3237 = vmatmul.bf16.gmra.mxu0 %v785
        %v3238 = vpop.f32.mrf.mxu0
        %v3239 = vadd.f32 %v3166, %v3238
        %v3240 = vpop.f32.mrf.mxu0
        %v3241 = vadd.f32 %v3168, %v3240
        %3242 = vmatmul.bf16.gmra.mxu0 %v788
        %v3243 = vpop.f32.mrf.mxu0
        %v3244 = vadd.f32 %v3171, %v3243
        %v3245 = vpop.f32.mrf.mxu0
        %v3246 = vadd.f32 %v3173, %v3245
        %3247 = vmatmul.bf16.gmra.mxu0 %v791
        %v3248 = vpop.f32.mrf.mxu0
        %v3249 = vadd.f32 %v3176, %v3248
        %v3250 = vpop.f32.mrf.mxu0
        %3251 = vdwg.mxu0
        %3252 = vmatpush.bf16.msra.mxu0 %v1598
        %3253 = vmatpush.bf16.msra.mxu0 %v1590
        %3254 = vmatpush.bf16.msra.mxu0 %v1582
        %3255 = vmatpush.bf16.msra.mxu0 %v1574
        %3256 = vmatpush.bf16.msra.mxu0 %v1566
        %3257 = vmatpush.bf16.msra.mxu0 %v1558
        %3258 = vmatpush.bf16.msra.mxu0 %v1550
        %3259 = vmatpush.bf16.msra.mxu0 %v1542
        %3260 = vmatmul.bf16.gmra.mxu0 %v756
        %v3261 = vpop.f32.mrf.mxu0
        %v3262 = vadd.f32 %v3189, %v3261
        %v3263 = vpop.f32.mrf.mxu0
        %v3264 = vadd.f32 %v3191, %v3263
        %3265 = vmatmul.bf16.gmra.mxu0 %v759
        %v3266 = vpop.f32.mrf.mxu0
        %v3267 = vadd.f32 %v3194, %v3266
        %v3268 = vpop.f32.mrf.mxu0
        %v3269 = vadd.f32 %v3196, %v3268
        %3270 = vmatmul.bf16.gmra.mxu0 %v762
        %v3271 = vpop.f32.mrf.mxu0
        %v3272 = vadd.f32 %v3199, %v3271
        %v3273 = vpop.f32.mrf.mxu0
        %v3274 = vadd.f32 %v3201, %v3273
        %3275 = vmatmul.bf16.gmra.mxu0 %v765
        %v3276 = vpop.f32.mrf.mxu0
        %v3277 = vadd.f32 %v3204, %v3276
        %v3278 = vpop.f32.mrf.mxu0
        %v3279 = vadd.f32 %v3206, %v3278
        %3280 = vmatmul.bf16.gmra.mxu0 %v768
        %v3281 = vpop.f32.mrf.mxu0
        %v3282 = vadd.f32 %v3209, %v3281
        %v3283 = vpop.f32.mrf.mxu0
        %v3284 = vadd.f32 %v3211, %v3283
        %3285 = vmatmul.bf16.gmra.mxu0 %v771
        %v3286 = vpop.f32.mrf.mxu0
        %v3287 = vadd.f32 %v3214, %v3286
        %v3288 = vpop.f32.mrf.mxu0
        %v3289 = vadd.f32 %v3216, %v3288
        %3290 = vmatmul.bf16.gmra.mxu0 %v774
        %v3291 = vpop.f32.mrf.mxu0
        %v3292 = vadd.f32 %v3219, %v3291
        %v3293 = vpop.f32.mrf.mxu0
        %v3294 = vadd.f32 %v3221, %v3293
        %3295 = vmatmul.bf16.gmra.mxu0 %v777
        %v3296 = vpop.f32.mrf.mxu0
        %v3297 = vadd.f32 %v3224, %v3296
        %v3298 = vpop.f32.mrf.mxu0
        %v3299 = vadd.f32 %v3226, %v3298
        %3300 = vmatmul.bf16.gmra.mxu0 %v780
        %v3301 = vpop.f32.mrf.mxu0
        %v3302 = vadd.f32 %v3229, %v3301
        %v3303 = vpop.f32.mrf.mxu0
        %v3304 = vadd.f32 %v3231, %v3303
        %3305 = vmatmul.bf16.gmra.mxu0 %v783
        %v3306 = vpop.f32.mrf.mxu0
        %v3307 = vadd.f32 %v3234, %v3306
        %v3308 = vpop.f32.mrf.mxu0
        %v3309 = vadd.f32 %v3236, %v3308
        %3310 = vmatmul.bf16.gmra.mxu0 %v786
        %v3311 = vpop.f32.mrf.mxu0
        %v3312 = vadd.f32 %v3239, %v3311
        %v3313 = vpop.f32.mrf.mxu0
        %v3314 = vadd.f32 %v3241, %v3313
        %3315 = vmatmul.bf16.gmra.mxu0 %v789
        %v3316 = vpop.f32.mrf.mxu0
        %v3317 = vadd.f32 %v3244, %v3316
        %v3318 = vpop.f32.mrf.mxu0
        %v3319 = vadd.f32 %v3246, %v3318
        %3320 = vmatmul.bf16.gmra.mxu0 %v792
        %v3321 = vpop.f32.mrf.mxu0
        %v3322 = vadd.f32 %v3249, %v3321
        %v3323 = vpop.f32.mrf.mxu0
        %3324 = vdwg.mxu0
        %3325 = vmatpush.bf16.msra.mxu0 %v1471
        %3326 = vmatpush.bf16.msra.mxu0 %v1463
        %3327 = vmatpush.bf16.msra.mxu0 %v1455
        %3328 = vmatpush.bf16.msra.mxu0 %v1447
        %3329 = vmatpush.bf16.msra.mxu0 %v1439
        %3330 = vmatpush.bf16.msra.mxu0 %v1431
        %3331 = vmatpush.bf16.msra.mxu0 %v1423
        %3332 = vmatpush.bf16.msra.mxu0 %v1415
        %3333 = vmatmul.bf16.gmra.mxu0 %v754
        %v3334 = vpop.f32.mrf.mxu0
        %v3335 = vadd.f32 %v620, %v3334
        %v3336 = vpop.f32.mrf.mxu0
        %v3337 = vadd.f32 %v620, %v3336
        %3338 = vmatmul.bf16.gmra.mxu0 %v757
        %v3339 = vpop.f32.mrf.mxu0
        %v3340 = vadd.f32 %v620, %v3339
        %v3341 = vpop.f32.mrf.mxu0
        %v3342 = vadd.f32 %v620, %v3341
        %3343 = vmatmul.bf16.gmra.mxu0 %v760
        %v3344 = vpop.f32.mrf.mxu0
        %v3345 = vadd.f32 %v620, %v3344
        %v3346 = vpop.f32.mrf.mxu0
        %v3347 = vadd.f32 %v620, %v3346
        %3348 = vmatmul.bf16.gmra.mxu0 %v763
        %v3349 = vpop.f32.mrf.mxu0
        %v3350 = vadd.f32 %v620, %v3349
        %v3351 = vpop.f32.mrf.mxu0
        %v3352 = vadd.f32 %v620, %v3351
        %3353 = vmatmul.bf16.gmra.mxu0 %v766
        %v3354 = vpop.f32.mrf.mxu0
        %v3355 = vadd.f32 %v620, %v3354
        %v3356 = vpop.f32.mrf.mxu0
        %v3357 = vadd.f32 %v620, %v3356
        %3358 = vmatmul.bf16.gmra.mxu0 %v769
        %v3359 = vpop.f32.mrf.mxu0
        %v3360 = vadd.f32 %v620, %v3359
        %v3361 = vpop.f32.mrf.mxu0
        %v3362 = vadd.f32 %v620, %v3361
        %3363 = vmatmul.bf16.gmra.mxu0 %v772
        %v3364 = vpop.f32.mrf.mxu0
        %v3365 = vadd.f32 %v620, %v3364
        %v3366 = vpop.f32.mrf.mxu0
        %v3367 = vadd.f32 %v620, %v3366
        %3368 = vmatmul.bf16.gmra.mxu0 %v775
        %v3369 = vpop.f32.mrf.mxu0
        %v3370 = vadd.f32 %v620, %v3369
        %v3371 = vpop.f32.mrf.mxu0
        %v3372 = vadd.f32 %v620, %v3371
        %3373 = vmatmul.bf16.gmra.mxu0 %v778
        %v3374 = vpop.f32.mrf.mxu0
        %v3375 = vadd.f32 %v620, %v3374
        %v3376 = vpop.f32.mrf.mxu0
        %v3377 = vadd.f32 %v620, %v3376
        %3378 = vmatmul.bf16.gmra.mxu0 %v781
        %v3379 = vpop.f32.mrf.mxu0
        %v3380 = vadd.f32 %v620, %v3379
        %v3381 = vpop.f32.mrf.mxu0
        %v3382 = vadd.f32 %v620, %v3381
        %3383 = vmatmul.bf16.gmra.mxu0 %v784
        %v3384 = vpop.f32.mrf.mxu0
        %v3385 = vadd.f32 %v620, %v3384
        %v3386 = vpop.f32.mrf.mxu0
        %v3387 = vadd.f32 %v620, %v3386
        %3388 = vmatmul.bf16.gmra.mxu0 %v787
        %v3389 = vpop.f32.mrf.mxu0
        %v3390 = vadd.f32 %v620, %v3389
        %v3391 = vpop.f32.mrf.mxu0
        %v3392 = vadd.f32 %v620, %v3391
        %3393 = vmatmul.bf16.gmra.mxu0 %v790
        %v3394 = vpop.f32.mrf.mxu0
        %v3395 = vadd.f32 %v620, %v3394
        %v3396 = vpop.f32.mrf.mxu0
        %3397 = vdwg.mxu0
        %3398 = vmatpush.bf16.msra.mxu0 %v1535
        %3399 = vmatpush.bf16.msra.mxu0 %v1527
        %3400 = vmatpush.bf16.msra.mxu0 %v1519
        %3401 = vmatpush.bf16.msra.mxu0 %v1511
        %3402 = vmatpush.bf16.msra.mxu0 %v1503
        %3403 = vmatpush.bf16.msra.mxu0 %v1495
        %3404 = vmatpush.bf16.msra.mxu0 %v1487
        %3405 = vmatpush.bf16.msra.mxu0 %v1479
        %3406 = vmatmul.bf16.gmra.mxu0 %v755
        %v3407 = vpop.f32.mrf.mxu0
        %v3408 = vadd.f32 %v3335, %v3407
        %v3409 = vpop.f32.mrf.mxu0
        %v3410 = vadd.f32 %v3337, %v3409
        %3411 = vmatmul.bf16.gmra.mxu0 %v758
        %v3412 = vpop.f32.mrf.mxu0
        %v3413 = vadd.f32 %v3340, %v3412
        %v3414 = vpop.f32.mrf.mxu0
        %v3415 = vadd.f32 %v3342, %v3414
        %3416 = vmatmul.bf16.gmra.mxu0 %v761
        %v3417 = vpop.f32.mrf.mxu0
        %v3418 = vadd.f32 %v3345, %v3417
        %v3419 = vpop.f32.mrf.mxu0
        %v3420 = vadd.f32 %v3347, %v3419
        %3421 = vmatmul.bf16.gmra.mxu0 %v764
        %v3422 = vpop.f32.mrf.mxu0
        %v3423 = vadd.f32 %v3350, %v3422
        %v3424 = vpop.f32.mrf.mxu0
        %v3425 = vadd.f32 %v3352, %v3424
        %3426 = vmatmul.bf16.gmra.mxu0 %v767
        %v3427 = vpop.f32.mrf.mxu0
        %v3428 = vadd.f32 %v3355, %v3427
        %v3429 = vpop.f32.mrf.mxu0
        %v3430 = vadd.f32 %v3357, %v3429
        %3431 = vmatmul.bf16.gmra.mxu0 %v770
        %v3432 = vpop.f32.mrf.mxu0
        %v3433 = vadd.f32 %v3360, %v3432
        %v3434 = vpop.f32.mrf.mxu0
        %v3435 = vadd.f32 %v3362, %v3434
        %3436 = vmatmul.bf16.gmra.mxu0 %v773
        %v3437 = vpop.f32.mrf.mxu0
        %v3438 = vadd.f32 %v3365, %v3437
        %v3439 = vpop.f32.mrf.mxu0
        %v3440 = vadd.f32 %v3367, %v3439
        %3441 = vmatmul.bf16.gmra.mxu0 %v776
        %v3442 = vpop.f32.mrf.mxu0
        %v3443 = vadd.f32 %v3370, %v3442
        %v3444 = vpop.f32.mrf.mxu0
        %v3445 = vadd.f32 %v3372, %v3444
        %3446 = vmatmul.bf16.gmra.mxu0 %v779
        %v3447 = vpop.f32.mrf.mxu0
        %v3448 = vadd.f32 %v3375, %v3447
        %v3449 = vpop.f32.mrf.mxu0
        %v3450 = vadd.f32 %v3377, %v3449
        %3451 = vmatmul.bf16.gmra.mxu0 %v782
        %v3452 = vpop.f32.mrf.mxu0
        %v3453 = vadd.f32 %v3380, %v3452
        %v3454 = vpop.f32.mrf.mxu0
        %v3455 = vadd.f32 %v3382, %v3454
        %3456 = vmatmul.bf16.gmra.mxu0 %v785
        %v3457 = vpop.f32.mrf.mxu0
        %v3458 = vadd.f32 %v3385, %v3457
        %v3459 = vpop.f32.mrf.mxu0
        %v3460 = vadd.f32 %v3387, %v3459
        %3461 = vmatmul.bf16.gmra.mxu0 %v788
        %v3462 = vpop.f32.mrf.mxu0
        %v3463 = vadd.f32 %v3390, %v3462
        %v3464 = vpop.f32.mrf.mxu0
        %v3465 = vadd.f32 %v3392, %v3464
        %3466 = vmatmul.bf16.gmra.mxu0 %v791
        %v3467 = vpop.f32.mrf.mxu0
        %v3468 = vadd.f32 %v3395, %v3467
        %v3469 = vpop.f32.mrf.mxu0
        %3470 = vdwg.mxu0
        %3471 = vmatpush.bf16.msra.mxu0 %v1599
        %3472 = vmatpush.bf16.msra.mxu0 %v1591
        %3473 = vmatpush.bf16.msra.mxu0 %v1583
        %3474 = vmatpush.bf16.msra.mxu0 %v1575
        %3475 = vmatpush.bf16.msra.mxu0 %v1567
        %3476 = vmatpush.bf16.msra.mxu0 %v1559
        %3477 = vmatpush.bf16.msra.mxu0 %v1551
        %3478 = vmatpush.bf16.msra.mxu0 %v1543
        %3479 = vmatmul.bf16.gmra.mxu0 %v756
        %v3480 = vpop.f32.mrf.mxu0
        %v3481 = vadd.f32 %v3408, %v3480
        %v3482 = vpop.f32.mrf.mxu0
        %v3483 = vadd.f32 %v3410, %v3482
        %3484 = vmatmul.bf16.gmra.mxu0 %v759
        %v3485 = vpop.f32.mrf.mxu0
        %v3486 = vadd.f32 %v3413, %v3485
        %v3487 = vpop.f32.mrf.mxu0
        %v3488 = vadd.f32 %v3415, %v3487
        %3489 = vmatmul.bf16.gmra.mxu0 %v762
        %v3490 = vpop.f32.mrf.mxu0
        %v3491 = vadd.f32 %v3418, %v3490
        %v3492 = vpop.f32.mrf.mxu0
        %v3493 = vadd.f32 %v3420, %v3492
        %3494 = vmatmul.bf16.gmra.mxu0 %v765
        %v3495 = vpop.f32.mrf.mxu0
        %v3496 = vadd.f32 %v3423, %v3495
        %v3497 = vpop.f32.mrf.mxu0
        %v3498 = vadd.f32 %v3425, %v3497
        %3499 = vmatmul.bf16.gmra.mxu0 %v768
        %v3500 = vpop.f32.mrf.mxu0
        %v3501 = vadd.f32 %v3428, %v3500
        %v3502 = vpop.f32.mrf.mxu0
        %v3503 = vadd.f32 %v3430, %v3502
        %3504 = vmatmul.bf16.gmra.mxu0 %v771
        %v3505 = vpop.f32.mrf.mxu0
        %v3506 = vadd.f32 %v3433, %v3505
        %v3507 = vpop.f32.mrf.mxu0
        %v3508 = vadd.f32 %v3435, %v3507
        %3509 = vmatmul.bf16.gmra.mxu0 %v774
        %v3510 = vpop.f32.mrf.mxu0
        %v3511 = vadd.f32 %v3438, %v3510
        %v3512 = vpop.f32.mrf.mxu0
        %v3513 = vadd.f32 %v3440, %v3512
        %3514 = vmatmul.bf16.gmra.mxu0 %v777
        %v3515 = vpop.f32.mrf.mxu0
        %v3516 = vadd.f32 %v3443, %v3515
        %v3517 = vpop.f32.mrf.mxu0
        %v3518 = vadd.f32 %v3445, %v3517
        %3519 = vmatmul.bf16.gmra.mxu0 %v780
        %v3520 = vpop.f32.mrf.mxu0
        %v3521 = vadd.f32 %v3448, %v3520
        %v3522 = vpop.f32.mrf.mxu0
        %v3523 = vadd.f32 %v3450, %v3522
        %3524 = vmatmul.bf16.gmra.mxu0 %v783
        %v3525 = vpop.f32.mrf.mxu0
        %v3526 = vadd.f32 %v3453, %v3525
        %v3527 = vpop.f32.mrf.mxu0
        %v3528 = vadd.f32 %v3455, %v3527
        %3529 = vmatmul.bf16.gmra.mxu0 %v786
        %v3530 = vpop.f32.mrf.mxu0
        %v3531 = vadd.f32 %v3458, %v3530
        %v3532 = vpop.f32.mrf.mxu0
        %v3533 = vadd.f32 %v3460, %v3532
        %3534 = vmatmul.bf16.gmra.mxu0 %v789
        %v3535 = vpop.f32.mrf.mxu0
        %v3536 = vadd.f32 %v3463, %v3535
        %v3537 = vpop.f32.mrf.mxu0
        %v3538 = vadd.f32 %v3465, %v3537
        %3539 = vmatmul.bf16.gmra.mxu0 %v792
        %v3540 = vpop.f32.mrf.mxu0
        %v3541 = vadd.f32 %v3468, %v3540
        %v3542 = vpop.f32.mrf.mxu0
        %3543 = vdwg.mxu0
        %v3544 = vmax.f32 %v1948, 0.0
        %v3545 = vmax.f32 %v2167, 0.0
        %v3546 = vmax.f32 %v2386, 0.0
        %v3547 = vmax.f32 %v2605, 0.0
        %v3548 = vmax.f32 %v2824, 0.0
        %v3549 = vmax.f32 %v3043, 0.0
        %v3550 = vmax.f32 %v3262, 0.0
        %v3551 = vmax.f32 %v3481, 0.0
        %v3552 = vmax.f32 %v1950, 0.0
        %v3553 = vmax.f32 %v2169, 0.0
        %v3554 = vmax.f32 %v2388, 0.0
        %v3555 = vmax.f32 %v2607, 0.0
        %v3556 = vmax.f32 %v2826, 0.0
        %v3557 = vmax.f32 %v3045, 0.0
        %v3558 = vmax.f32 %v3264, 0.0
        %v3559 = vmax.f32 %v3483, 0.0
        %v3560 = vmax.f32 %v1953, 0.0
        %v3561 = vmax.f32 %v2172, 0.0
        %v3562 = vmax.f32 %v2391, 0.0
        %v3563 = vmax.f32 %v2610, 0.0
        %v3564 = vmax.f32 %v2829, 0.0
        %v3565 = vmax.f32 %v3048, 0.0
        %v3566 = vmax.f32 %v3267, 0.0
        %v3567 = vmax.f32 %v3486, 0.0
        %v3568 = vmax.f32 %v1955, 0.0
        %v3569 = vmax.f32 %v2174, 0.0
        %v3570 = vmax.f32 %v2393, 0.0
        %v3571 = vmax.f32 %v2612, 0.0
        %v3572 = vmax.f32 %v2831, 0.0
        %v3573 = vmax.f32 %v3050, 0.0
        %v3574 = vmax.f32 %v3269, 0.0
        %v3575 = vmax.f32 %v3488, 0.0
        %v3576 = vmax.f32 %v1958, 0.0
        %v3577 = vmax.f32 %v2177, 0.0
        %v3578 = vmax.f32 %v2396, 0.0
        %v3579 = vmax.f32 %v2615, 0.0
        %v3580 = vmax.f32 %v2834, 0.0
        %v3581 = vmax.f32 %v3053, 0.0
        %v3582 = vmax.f32 %v3272, 0.0
        %v3583 = vmax.f32 %v3491, 0.0
        %v3584 = vmax.f32 %v1960, 0.0
        %v3585 = vmax.f32 %v2179, 0.0
        %v3586 = vmax.f32 %v2398, 0.0
        %v3587 = vmax.f32 %v2617, 0.0
        %v3588 = vmax.f32 %v2836, 0.0
        %v3589 = vmax.f32 %v3055, 0.0
        %v3590 = vmax.f32 %v3274, 0.0
        %v3591 = vmax.f32 %v3493, 0.0
        %v3592 = vmax.f32 %v1963, 0.0
        %v3593 = vmax.f32 %v2182, 0.0
        %v3594 = vmax.f32 %v2401, 0.0
        %v3595 = vmax.f32 %v2620, 0.0
        %v3596 = vmax.f32 %v2839, 0.0
        %v3597 = vmax.f32 %v3058, 0.0
        %v3598 = vmax.f32 %v3277, 0.0
        %v3599 = vmax.f32 %v3496, 0.0
        %v3600 = vmax.f32 %v1965, 0.0
        %v3601 = vmax.f32 %v2184, 0.0
        %v3602 = vmax.f32 %v2403, 0.0
        %v3603 = vmax.f32 %v2622, 0.0
        %v3604 = vmax.f32 %v2841, 0.0
        %v3605 = vmax.f32 %v3060, 0.0
        %v3606 = vmax.f32 %v3279, 0.0
        %v3607 = vmax.f32 %v3498, 0.0
        %v3608 = vmax.f32 %v1968, 0.0
        %v3609 = vmax.f32 %v2187, 0.0
        %v3610 = vmax.f32 %v2406, 0.0
        %v3611 = vmax.f32 %v2625, 0.0
        %v3612 = vmax.f32 %v2844, 0.0
        %v3613 = vmax.f32 %v3063, 0.0
        %v3614 = vmax.f32 %v3282, 0.0
        %v3615 = vmax.f32 %v3501, 0.0
        %v3616 = vmax.f32 %v1970, 0.0
        %v3617 = vmax.f32 %v2189, 0.0
        %v3618 = vmax.f32 %v2408, 0.0
        %v3619 = vmax.f32 %v2627, 0.0
        %v3620 = vmax.f32 %v2846, 0.0
        %v3621 = vmax.f32 %v3065, 0.0
        %v3622 = vmax.f32 %v3284, 0.0
        %v3623 = vmax.f32 %v3503, 0.0
        %v3624 = vmax.f32 %v1973, 0.0
        %v3625 = vmax.f32 %v2192, 0.0
        %v3626 = vmax.f32 %v2411, 0.0
        %v3627 = vmax.f32 %v2630, 0.0
        %v3628 = vmax.f32 %v2849, 0.0
        %v3629 = vmax.f32 %v3068, 0.0
        %v3630 = vmax.f32 %v3287, 0.0
        %v3631 = vmax.f32 %v3506, 0.0
        %v3632 = vmax.f32 %v1975, 0.0
        %v3633 = vmax.f32 %v2194, 0.0
        %v3634 = vmax.f32 %v2413, 0.0
        %v3635 = vmax.f32 %v2632, 0.0
        %v3636 = vmax.f32 %v2851, 0.0
        %v3637 = vmax.f32 %v3070, 0.0
        %v3638 = vmax.f32 %v3289, 0.0
        %v3639 = vmax.f32 %v3508, 0.0
        %v3640 = vmax.f32 %v1978, 0.0
        %v3641 = vmax.f32 %v2197, 0.0
        %v3642 = vmax.f32 %v2416, 0.0
        %v3643 = vmax.f32 %v2635, 0.0
        %v3644 = vmax.f32 %v2854, 0.0
        %v3645 = vmax.f32 %v3073, 0.0
        %v3646 = vmax.f32 %v3292, 0.0
        %v3647 = vmax.f32 %v3511, 0.0
        %v3648 = vmax.f32 %v1980, 0.0
        %v3649 = vmax.f32 %v2199, 0.0
        %v3650 = vmax.f32 %v2418, 0.0
        %v3651 = vmax.f32 %v2637, 0.0
        %v3652 = vmax.f32 %v2856, 0.0
        %v3653 = vmax.f32 %v3075, 0.0
        %v3654 = vmax.f32 %v3294, 0.0
        %v3655 = vmax.f32 %v3513, 0.0
        %v3656 = vmax.f32 %v1983, 0.0
        %v3657 = vmax.f32 %v2202, 0.0
        %v3658 = vmax.f32 %v2421, 0.0
        %v3659 = vmax.f32 %v2640, 0.0
        %v3660 = vmax.f32 %v2859, 0.0
        %v3661 = vmax.f32 %v3078, 0.0
        %v3662 = vmax.f32 %v3297, 0.0
        %v3663 = vmax.f32 %v3516, 0.0
        %v3664 = vmax.f32 %v1985, 0.0
        %v3665 = vmax.f32 %v2204, 0.0
        %v3666 = vmax.f32 %v2423, 0.0
        %v3667 = vmax.f32 %v2642, 0.0
        %v3668 = vmax.f32 %v2861, 0.0
        %v3669 = vmax.f32 %v3080, 0.0
        %v3670 = vmax.f32 %v3299, 0.0
        %v3671 = vmax.f32 %v3518, 0.0
        %v3672 = vmax.f32 %v1988, 0.0
        %v3673 = vmax.f32 %v2207, 0.0
        %v3674 = vmax.f32 %v2426, 0.0
        %v3675 = vmax.f32 %v2645, 0.0
        %v3676 = vmax.f32 %v2864, 0.0
        %v3677 = vmax.f32 %v3083, 0.0
        %v3678 = vmax.f32 %v3302, 0.0
        %v3679 = vmax.f32 %v3521, 0.0
        %v3680 = vmax.f32 %v1990, 0.0
        %v3681 = vmax.f32 %v2209, 0.0
        %v3682 = vmax.f32 %v2428, 0.0
        %v3683 = vmax.f32 %v2647, 0.0
        %v3684 = vmax.f32 %v2866, 0.0
        %v3685 = vmax.f32 %v3085, 0.0
        %v3686 = vmax.f32 %v3304, 0.0
        %v3687 = vmax.f32 %v3523, 0.0
        %v3688 = vmax.f32 %v1993, 0.0
        %v3689 = vmax.f32 %v2212, 0.0
        %v3690 = vmax.f32 %v2431, 0.0
        %v3691 = vmax.f32 %v2650, 0.0
        %v3692 = vmax.f32 %v2869, 0.0
        %v3693 = vmax.f32 %v3088, 0.0
        %v3694 = vmax.f32 %v3307, 0.0
        %v3695 = vmax.f32 %v3526, 0.0
        %v3696 = vmax.f32 %v1995, 0.0
        %v3697 = vmax.f32 %v2214, 0.0
        %v3698 = vmax.f32 %v2433, 0.0
        %v3699 = vmax.f32 %v2652, 0.0
        %v3700 = vmax.f32 %v2871, 0.0
        %v3701 = vmax.f32 %v3090, 0.0
        %v3702 = vmax.f32 %v3309, 0.0
        %v3703 = vmax.f32 %v3528, 0.0
        %v3704 = vmax.f32 %v1998, 0.0
        %v3705 = vmax.f32 %v2217, 0.0
        %v3706 = vmax.f32 %v2436, 0.0
        %v3707 = vmax.f32 %v2655, 0.0
        %v3708 = vmax.f32 %v2874, 0.0
        %v3709 = vmax.f32 %v3093, 0.0
        %v3710 = vmax.f32 %v3312, 0.0
        %v3711 = vmax.f32 %v3531, 0.0
        %v3712 = vmax.f32 %v2000, 0.0
        %v3713 = vmax.f32 %v2219, 0.0
        %v3714 = vmax.f32 %v2438, 0.0
        %v3715 = vmax.f32 %v2657, 0.0
        %v3716 = vmax.f32 %v2876, 0.0
        %v3717 = vmax.f32 %v3095, 0.0
        %v3718 = vmax.f32 %v3314, 0.0
        %v3719 = vmax.f32 %v3533, 0.0
        %v3720 = vmax.f32 %v2003, 0.0
        %v3721 = vmax.f32 %v2222, 0.0
        %v3722 = vmax.f32 %v2441, 0.0
        %v3723 = vmax.f32 %v2660, 0.0
        %v3724 = vmax.f32 %v2879, 0.0
        %v3725 = vmax.f32 %v3098, 0.0
        %v3726 = vmax.f32 %v3317, 0.0
        %v3727 = vmax.f32 %v3536, 0.0
        %v3728 = vmax.f32 %v2005, 0.0
        %v3729 = vmax.f32 %v2224, 0.0
        %v3730 = vmax.f32 %v2443, 0.0
        %v3731 = vmax.f32 %v2662, 0.0
        %v3732 = vmax.f32 %v2881, 0.0
        %v3733 = vmax.f32 %v3100, 0.0
        %v3734 = vmax.f32 %v3319, 0.0
        %v3735 = vmax.f32 %v3538, 0.0
        %v3736 = vmax.f32 %v2008, 0.0
        %v3737 = vmax.f32 %v2227, 0.0
        %v3738 = vmax.f32 %v2446, 0.0
        %v3739 = vmax.f32 %v2665, 0.0
        %v3740 = vmax.f32 %v2884, 0.0
        %v3741 = vmax.f32 %v3103, 0.0
        %v3742 = vmax.f32 %v3322, 0.0
        %v3743 = vmax.f32 %v3541, 0.0
        %v3744 = vld [vmem:[%s1] sm:$0x3]
        %v3745 = vpack.c.bf16 %v3552, %v3544
        %v3746 = vpack.c.bf16 %v3553, %v3545
        %v3747 = vpack.c.bf16 %v3554, %v3546
        %v3748 = vpack.c.bf16 %v3555, %v3547
        %v3749 = vpack.c.bf16 %v3556, %v3548
        %v3750 = vpack.c.bf16 %v3557, %v3549
        %v3751 = vpack.c.bf16 %v3558, %v3550
        %v3752 = vpack.c.bf16 %v3559, %v3551
        %v3753 = vpack.c.bf16 %v3568, %v3560
        %v3754 = vpack.c.bf16 %v3569, %v3561
        %v3755 = vpack.c.bf16 %v3570, %v3562
        %v3756 = vpack.c.bf16 %v3571, %v3563
        %v3757 = vpack.c.bf16 %v3572, %v3564
        %v3758 = vpack.c.bf16 %v3573, %v3565
        %v3759 = vpack.c.bf16 %v3574, %v3566
        %v3760 = vpack.c.bf16 %v3575, %v3567
        %v3761 = vpack.c.bf16 %v3584, %v3576
        %v3762 = vpack.c.bf16 %v3585, %v3577
        %v3763 = vpack.c.bf16 %v3586, %v3578
        %v3764 = vpack.c.bf16 %v3587, %v3579
        %v3765 = vpack.c.bf16 %v3588, %v3580
        %v3766 = vpack.c.bf16 %v3589, %v3581
        %v3767 = vpack.c.bf16 %v3590, %v3582
        %v3768 = vpack.c.bf16 %v3591, %v3583
        %v3769 = vpack.c.bf16 %v3600, %v3592
        %v3770 = vpack.c.bf16 %v3601, %v3593
        %v3771 = vpack.c.bf16 %v3602, %v3594
        %v3772 = vpack.c.bf16 %v3603, %v3595
        %v3773 = vpack.c.bf16 %v3604, %v3596
        %v3774 = vpack.c.bf16 %v3605, %v3597
        %v3775 = vpack.c.bf16 %v3606, %v3598
        %v3776 = vpack.c.bf16 %v3607, %v3599
        %v3777 = vpack.c.bf16 %v3616, %v3608
        %v3778 = vpack.c.bf16 %v3617, %v3609
        %v3779 = vpack.c.bf16 %v3618, %v3610
        %v3780 = vpack.c.bf16 %v3619, %v3611
        %v3781 = vpack.c.bf16 %v3620, %v3612
        %v3782 = vpack.c.bf16 %v3621, %v3613
        %v3783 = vpack.c.bf16 %v3622, %v3614
        %v3784 = vpack.c.bf16 %v3623, %v3615
        %v3785 = vpack.c.bf16 %v3632, %v3624
        %v3786 = vpack.c.bf16 %v3633, %v3625
        %v3787 = vpack.c.bf16 %v3634, %v3626
        %v3788 = vpack.c.bf16 %v3635, %v3627
        %v3789 = vpack.c.bf16 %v3636, %v3628
        %v3790 = vpack.c.bf16 %v3637, %v3629
        %v3791 = vpack.c.bf16 %v3638, %v3630
        %v3792 = vpack.c.bf16 %v3639, %v3631
        %v3793 = vpack.c.bf16 %v3648, %v3640
        %v3794 = vpack.c.bf16 %v3649, %v3641
        %v3795 = vpack.c.bf16 %v3650, %v3642
        %v3796 = vpack.c.bf16 %v3651, %v3643
        %v3797 = vpack.c.bf16 %v3652, %v3644
        %v3798 = vpack.c.bf16 %v3653, %v3645
        %v3799 = vpack.c.bf16 %v3654, %v3646
        %v3800 = vpack.c.bf16 %v3655, %v3647
        %v3801 = vpack.c.bf16 %v3664, %v3656
        %v3802 = vpack.c.bf16 %v3665, %v3657
        %v3803 = vpack.c.bf16 %v3666, %v3658
        %v3804 = vpack.c.bf16 %v3667, %v3659
        %v3805 = vpack.c.bf16 %v3668, %v3660
        %v3806 = vpack.c.bf16 %v3669, %v3661
        %v3807 = vpack.c.bf16 %v3670, %v3662
        %v3808 = vpack.c.bf16 %v3671, %v3663
        %v3809 = vpack.c.bf16 %v3680, %v3672
        %v3810 = vpack.c.bf16 %v3681, %v3673
        %v3811 = vpack.c.bf16 %v3682, %v3674
        %v3812 = vpack.c.bf16 %v3683, %v3675
        %v3813 = vpack.c.bf16 %v3684, %v3676
        %v3814 = vpack.c.bf16 %v3685, %v3677
        %v3815 = vpack.c.bf16 %v3686, %v3678
        %v3816 = vpack.c.bf16 %v3687, %v3679
        %v3817 = vpack.c.bf16 %v3696, %v3688
        %v3818 = vpack.c.bf16 %v3697, %v3689
        %v3819 = vpack.c.bf16 %v3698, %v3690
        %v3820 = vpack.c.bf16 %v3699, %v3691
        %v3821 = vpack.c.bf16 %v3700, %v3692
        %v3822 = vpack.c.bf16 %v3701, %v3693
        %v3823 = vpack.c.bf16 %v3702, %v3694
        %v3824 = vpack.c.bf16 %v3703, %v3695
        %v3825 = vpack.c.bf16 %v3712, %v3704
        %v3826 = vpack.c.bf16 %v3713, %v3705
        %v3827 = vpack.c.bf16 %v3714, %v3706
        %v3828 = vpack.c.bf16 %v3715, %v3707
        %v3829 = vpack.c.bf16 %v3716, %v3708
        %v3830 = vpack.c.bf16 %v3717, %v3709
        %v3831 = vpack.c.bf16 %v3718, %v3710
        %v3832 = vpack.c.bf16 %v3719, %v3711
        %v3833 = vpack.c.bf16 %v3728, %v3720
        %v3834 = vpack.c.bf16 %v3729, %v3721
        %v3835 = vpack.c.bf16 %v3730, %v3722
        %v3836 = vpack.c.bf16 %v3731, %v3723
        %v3837 = vpack.c.bf16 %v3732, %v3724
        %v3838 = vpack.c.bf16 %v3733, %v3725
        %v3839 = vpack.c.bf16 %v3734, %v3726
        %v3840 = vpack.c.bf16 %v3735, %v3727
        %v3841 = vpack.c.bf16 %v3736, %v3736
        %v3842 = vpack.c.bf16 %v3737, %v3737
        %v3843 = vpack.c.bf16 %v3738, %v3738
        %v3844 = vpack.c.bf16 %v3739, %v3739
        %v3845 = vpack.c.bf16 %v3740, %v3740
        %v3846 = vpack.c.bf16 %v3741, %v3741
        %v3847 = vpack.c.bf16 %v3742, %v3742
        %v3848 = vpack.c.bf16 %v3743, %v3743
        %3850 = vst [vmem:[#allocation1] ss:$9 sm:$0xff] %v3744
        %v3851 = vld [vmem:[#allocation1] sm:$0xff]
        %v3852 = vld [vmem:[#allocation1 + $0x9] sm:$0xff]
        %vm3854 = vcmask 588800
        %v3855 = vsel %vm3854, %v3852, 0
        %vm3857 = vcmask 1043456
        %v3859 = vsel %vm3857, %v3841, 0
        %v3862 = vsel %vm3857, %v3842, 0
        %v3865 = vsel %vm3857, %v3843, 0
        %v3868 = vsel %vm3857, %v3844, 0
        %v3871 = vsel %vm3857, %v3845, 0
        %v3874 = vsel %vm3857, %v3846, 0
        %v3877 = vsel %vm3857, %v3847, 0
        %v3880 = vsel %vm3857, %v3848, 0
        %3882 = vmatpush.bf16.msra.mxu0 %v3801
        %3883 = vmatpush.bf16.msra.mxu0 %v3793
        %3884 = vmatpush.bf16.msra.mxu0 %v3785
        %3885 = vmatpush.bf16.msra.mxu0 %v3777
        %3886 = vmatpush.bf16.msra.mxu0 %v3769
        %3887 = vmatpush.bf16.msra.mxu0 %v3761
        %3888 = vmatpush.bf16.msra.mxu0 %v3753
        %3889 = vmatpush.bf16.msra.mxu0 %v3745
        %3890 = vmatmul.bf16.gmra.mxu0 %v3851
        %v3891 = vpop.f32.mrf.mxu0
        %v3892 = vadd.f32 0.0, %v3891
        %v3893 = vpop.f32.mrf.mxu0
        %3894 = vdwg.mxu0
        %3895 = vmatpush.bf16.msra.mxu0 0
        %3896 = vmatpush.bf16.msra.mxu0 0
        %3897 = vmatpush.bf16.msra.mxu0 0
        %3898 = vmatpush.bf16.msra.mxu0 %v3859
        %3899 = vmatpush.bf16.msra.mxu0 %v3833
        %3900 = vmatpush.bf16.msra.mxu0 %v3825
        %3901 = vmatpush.bf16.msra.mxu0 %v3817
        %3902 = vmatpush.bf16.msra.mxu0 %v3809
        %3903 = vmatmul.bf16.gmra.mxu0 %v3855
        %v3904 = vpop.f32.mrf.mxu0
        %v3905 = vadd.f32 %v3892, %v3904
        %v3906 = vpop.f32.mrf.mxu0
        %3907 = vdwg.mxu0
        %3908 = vmatpush.bf16.msra.mxu0 %v3802
        %3909 = vmatpush.bf16.msra.mxu0 %v3794
        %3910 = vmatpush.bf16.msra.mxu0 %v3786
        %3911 = vmatpush.bf16.msra.mxu0 %v3778
        %3912 = vmatpush.bf16.msra.mxu0 %v3770
        %3913 = vmatpush.bf16.msra.mxu0 %v3762
        %3914 = vmatpush.bf16.msra.mxu0 %v3754
        %3915 = vmatpush.bf16.msra.mxu0 %v3746
        %3916 = vmatmul.bf16.gmra.mxu0 %v3851
        %v3917 = vpop.f32.mrf.mxu0
        %v3918 = vadd.f32 0.0, %v3917
        %v3919 = vpop.f32.mrf.mxu0
        %3920 = vdwg.mxu0
        %3921 = vmatpush.bf16.msra.mxu0 0
        %3922 = vmatpush.bf16.msra.mxu0 0
        %3923 = vmatpush.bf16.msra.mxu0 0
        %3924 = vmatpush.bf16.msra.mxu0 %v3862
        %3925 = vmatpush.bf16.msra.mxu0 %v3834
        %3926 = vmatpush.bf16.msra.mxu0 %v3826
        %3927 = vmatpush.bf16.msra.mxu0 %v3818
        %3928 = vmatpush.bf16.msra.mxu0 %v3810
        %3929 = vmatmul.bf16.gmra.mxu0 %v3855
        %v3930 = vpop.f32.mrf.mxu0
        %v3931 = vadd.f32 %v3918, %v3930
        %v3932 = vpop.f32.mrf.mxu0
        %3933 = vdwg.mxu0
        %3934 = vmatpush.bf16.msra.mxu0 %v3803
        %3935 = vmatpush.bf16.msra.mxu0 %v3795
        %3936 = vmatpush.bf16.msra.mxu0 %v3787
        %3937 = vmatpush.bf16.msra.mxu0 %v3779
        %3938 = vmatpush.bf16.msra.mxu0 %v3771
        %3939 = vmatpush.bf16.msra.mxu0 %v3763
        %3940 = vmatpush.bf16.msra.mxu0 %v3755
        %3941 = vmatpush.bf16.msra.mxu0 %v3747
        %3942 = vmatmul.bf16.gmra.mxu0 %v3851
        %v3943 = vpop.f32.mrf.mxu0
        %v3944 = vadd.f32 0.0, %v3943
        %v3945 = vpop.f32.mrf.mxu0
        %3946 = vdwg.mxu0
        %3947 = vmatpush.bf16.msra.mxu0 0
        %3948 = vmatpush.bf16.msra.mxu0 0
        %3949 = vmatpush.bf16.msra.mxu0 0
        %3950 = vmatpush.bf16.msra.mxu0 %v3865
        %3951 = vmatpush.bf16.msra.mxu0 %v3835
        %3952 = vmatpush.bf16.msra.mxu0 %v3827
        %3953 = vmatpush.bf16.msra.mxu0 %v3819
        %3954 = vmatpush.bf16.msra.mxu0 %v3811
        %3955 = vmatmul.bf16.gmra.mxu0 %v3855
        %v3956 = vpop.f32.mrf.mxu0
        %v3957 = vadd.f32 %v3944, %v3956
        %v3958 = vpop.f32.mrf.mxu0
        %3959 = vdwg.mxu0
        %3960 = vmatpush.bf16.msra.mxu0 %v3804
        %3961 = vmatpush.bf16.msra.mxu0 %v3796
        %3962 = vmatpush.bf16.msra.mxu0 %v3788
        %3963 = vmatpush.bf16.msra.mxu0 %v3780
        %3964 = vmatpush.bf16.msra.mxu0 %v3772
        %3965 = vmatpush.bf16.msra.mxu0 %v3764
        %3966 = vmatpush.bf16.msra.mxu0 %v3756
        %3967 = vmatpush.bf16.msra.mxu0 %v3748
        %3968 = vmatmul.bf16.gmra.mxu0 %v3851
        %v3969 = vpop.f32.mrf.mxu0
        %v3970 = vadd.f32 0.0, %v3969
        %v3971 = vpop.f32.mrf.mxu0
        %3972 = vdwg.mxu0
        %3973 = vmatpush.bf16.msra.mxu0 0
        %3974 = vmatpush.bf16.msra.mxu0 0
        %3975 = vmatpush.bf16.msra.mxu0 0
        %3976 = vmatpush.bf16.msra.mxu0 %v3868
        %3977 = vmatpush.bf16.msra.mxu0 %v3836
        %3978 = vmatpush.bf16.msra.mxu0 %v3828
        %3979 = vmatpush.bf16.msra.mxu0 %v3820
        %3980 = vmatpush.bf16.msra.mxu0 %v3812
        %3981 = vmatmul.bf16.gmra.mxu0 %v3855
        %v3982 = vpop.f32.mrf.mxu0
        %v3983 = vadd.f32 %v3970, %v3982
        %v3984 = vpop.f32.mrf.mxu0
        %3985 = vdwg.mxu0
        %3986 = vmatpush.bf16.msra.mxu0 %v3805
        %3987 = vmatpush.bf16.msra.mxu0 %v3797
        %3988 = vmatpush.bf16.msra.mxu0 %v3789
        %3989 = vmatpush.bf16.msra.mxu0 %v3781
        %3990 = vmatpush.bf16.msra.mxu0 %v3773
        %3991 = vmatpush.bf16.msra.mxu0 %v3765
        %3992 = vmatpush.bf16.msra.mxu0 %v3757
        %3993 = vmatpush.bf16.msra.mxu0 %v3749
        %3994 = vmatmul.bf16.gmra.mxu0 %v3851
        %v3995 = vpop.f32.mrf.mxu0
        %v3996 = vadd.f32 0.0, %v3995
        %v3997 = vpop.f32.mrf.mxu0
        %3998 = vdwg.mxu0
        %3999 = vmatpush.bf16.msra.mxu0 0
        %4000 = vmatpush.bf16.msra.mxu0 0
        %4001 = vmatpush.bf16.msra.mxu0 0
        %4002 = vmatpush.bf16.msra.mxu0 %v3871
        %4003 = vmatpush.bf16.msra.mxu0 %v3837
        %4004 = vmatpush.bf16.msra.mxu0 %v3829
        %4005 = vmatpush.bf16.msra.mxu0 %v3821
        %4006 = vmatpush.bf16.msra.mxu0 %v3813
        %4007 = vmatmul.bf16.gmra.mxu0 %v3855
        %v4008 = vpop.f32.mrf.mxu0
        %v4009 = vadd.f32 %v3996, %v4008
        %v4010 = vpop.f32.mrf.mxu0
        %4011 = vdwg.mxu0
        %4012 = vmatpush.bf16.msra.mxu0 %v3806
        %4013 = vmatpush.bf16.msra.mxu0 %v3798
        %4014 = vmatpush.bf16.msra.mxu0 %v3790
        %4015 = vmatpush.bf16.msra.mxu0 %v3782
        %4016 = vmatpush.bf16.msra.mxu0 %v3774
        %4017 = vmatpush.bf16.msra.mxu0 %v3766
        %4018 = vmatpush.bf16.msra.mxu0 %v3758
        %4019 = vmatpush.bf16.msra.mxu0 %v3750
        %4020 = vmatmul.bf16.gmra.mxu0 %v3851
        %v4021 = vpop.f32.mrf.mxu0
        %v4022 = vadd.f32 0.0, %v4021
        %v4023 = vpop.f32.mrf.mxu0
        %4024 = vdwg.mxu0
        %4025 = vmatpush.bf16.msra.mxu0 0
        %4026 = vmatpush.bf16.msra.mxu0 0
        %4027 = vmatpush.bf16.msra.mxu0 0
        %4028 = vmatpush.bf16.msra.mxu0 %v3874
        %4029 = vmatpush.bf16.msra.mxu0 %v3838
        %4030 = vmatpush.bf16.msra.mxu0 %v3830
        %4031 = vmatpush.bf16.msra.mxu0 %v3822
        %4032 = vmatpush.bf16.msra.mxu0 %v3814
        %4033 = vmatmul.bf16.gmra.mxu0 %v3855
        %v4034 = vpop.f32.mrf.mxu0
        %v4035 = vadd.f32 %v4022, %v4034
        %v4036 = vpop.f32.mrf.mxu0
        %4037 = vdwg.mxu0
        %4038 = vmatpush.bf16.msra.mxu0 %v3807
        %4039 = vmatpush.bf16.msra.mxu0 %v3799
        %4040 = vmatpush.bf16.msra.mxu0 %v3791
        %4041 = vmatpush.bf16.msra.mxu0 %v3783
        %4042 = vmatpush.bf16.msra.mxu0 %v3775
        %4043 = vmatpush.bf16.msra.mxu0 %v3767
        %4044 = vmatpush.bf16.msra.mxu0 %v3759
        %4045 = vmatpush.bf16.msra.mxu0 %v3751
        %4046 = vmatmul.bf16.gmra.mxu0 %v3851
        %v4047 = vpop.f32.mrf.mxu0
        %v4048 = vadd.f32 0.0, %v4047
        %v4049 = vpop.f32.mrf.mxu0
        %4050 = vdwg.mxu0
        %4051 = vmatpush.bf16.msra.mxu0 0
        %4052 = vmatpush.bf16.msra.mxu0 0
        %4053 = vmatpush.bf16.msra.mxu0 0
        %4054 = vmatpush.bf16.msra.mxu0 %v3877
        %4055 = vmatpush.bf16.msra.mxu0 %v3839
        %4056 = vmatpush.bf16.msra.mxu0 %v3831
        %4057 = vmatpush.bf16.msra.mxu0 %v3823
        %4058 = vmatpush.bf16.msra.mxu0 %v3815
        %4059 = vmatmul.bf16.gmra.mxu0 %v3855
        %v4060 = vpop.f32.mrf.mxu0
        %v4061 = vadd.f32 %v4048, %v4060
        %v4062 = vpop.f32.mrf.mxu0
        %4063 = vdwg.mxu0
        %4064 = vmatpush.bf16.msra.mxu0 %v3808
        %4065 = vmatpush.bf16.msra.mxu0 %v3800
        %4066 = vmatpush.bf16.msra.mxu0 %v3792
        %4067 = vmatpush.bf16.msra.mxu0 %v3784
        %4068 = vmatpush.bf16.msra.mxu0 %v3776
        %4069 = vmatpush.bf16.msra.mxu0 %v3768
        %4070 = vmatpush.bf16.msra.mxu0 %v3760
        %4071 = vmatpush.bf16.msra.mxu0 %v3752
        %4072 = vmatmul.bf16.gmra.mxu0 %v3851
        %v4073 = vpop.f32.mrf.mxu0
        %v4074 = vadd.f32 0.0, %v4073
        %v4075 = vpop.f32.mrf.mxu0
        %4076 = vdwg.mxu0
        %4077 = vmatpush.bf16.msra.mxu0 0
        %4078 = vmatpush.bf16.msra.mxu0 0
        %4079 = vmatpush.bf16.msra.mxu0 0
        %4080 = vmatpush.bf16.msra.mxu0 %v3880
        %4081 = vmatpush.bf16.msra.mxu0 %v3840
        %4082 = vmatpush.bf16.msra.mxu0 %v3832
        %4083 = vmatpush.bf16.msra.mxu0 %v3824
        %4084 = vmatpush.bf16.msra.mxu0 %v3816
        %4085 = vmatmul.bf16.gmra.mxu0 %v3855
        %v4086 = vpop.f32.mrf.mxu0
        %v4087 = vadd.f32 %v4074, %v4086
        %v4088 = vpop.f32.mrf.mxu0
        %4089 = vdwg.mxu0
        %v4090 = vld [vmem:[%s305] sm:$0xff]
        %v4092 = vperm.slane %v4090, 0
        %v4093 = vperm.slane %v4090, 1
        %v4094 = vperm.slane %v4090, 2
        %v4095 = vperm.slane %v4090, 3
        %v4096 = vperm.slane %v4090, 4
        %v4097 = vperm.slane %v4090, 5
        %v4098 = vperm.slane %v4090, 6
        %v4099 = vperm.slane %v4090, 7
        %v4108 = vmul.f32 %v3905, %v4092
        %v4109 = vmul.f32 %v3931, %v4093
        %v4110 = vmul.f32 %v3957, %v4094
        %v4111 = vmul.f32 %v3983, %v4095
        %v4112 = vmul.f32 %v4009, %v4096
        %v4113 = vmul.f32 %v4035, %v4097
        %v4114 = vmul.f32 %v4061, %v4098
        %v4115 = vmul.f32 %v4087, %v4099
        %vm4116 = vcmask 1041408
        %v4117 = vsel %vm4116, %v4108, 0.0
        %v4118 = vsel %vm4116, %v4109, 0.0
        %v4119 = vadd.f32 %v4117, %v4118
        %v4120 = vsel %vm4116, %v4110, 0.0
        %v4121 = vadd.f32 %v4119, %v4120
        %v4122 = vsel %vm4116, %v4111, 0.0
        %v4123 = vadd.f32 %v4121, %v4122
        %v4124 = vsel %vm4116, %v4112, 0.0
        %v4125 = vadd.f32 %v4123, %v4124
        %v4126 = vsel %vm4116, %v4113, 0.0
        %v4127 = vadd.f32 %v4125, %v4126
        %v4128 = vsel %vm4116, %v4114, 0.0
        %v4129 = vadd.f32 %v4127, %v4128
        %v4130 = vsel %vm4116, %v4115, 0.0
        %v4131 = vadd.f32 %v4129, %v4130
        %4132 = vadd.xlane.f32.xlu0 %v4131
        %v4133 = vpop.xlane.xlu0 %4132
        %vm4134 = vcmask 1024
        %4135 = vst.msk [vmem:[%s367] sm:$0x3] %vm4134, %v4133
        %p4136 = scmp.lt.s32.totalorder %s26, 1
        %s4137 = scalar_select %p4136, %s26, 1
        %p4138 = scmp.lt.s32.totalorder %s27, 0
        %s4139 = scalar_select %p4138, %s27, 0
        %s4140 = sadd.s32 %s4139, %s4137
        %s4141 = smul.addr %s4140, 2
        %s4142 = scalar_lea.vmem %s5, %s4141
        // Predicated region
        $region53: #{mlp_forward.1} parent=39 // pred_check
          %p4143 = pneg %p179
        $region54: #{mlp_forward.1} parent=39 // pred_check_branch
          %4145 = sbr.rel (%p4143) target = $region56
        $region55: #{mlp_forward.1} parent=39 // pred_region
          _
        $region56: #{mlp_forward.1} parent=39 // pred_fallthru
          _
      $region40: #{mlp_forward.1} parent=5 // pred_fallthru
        _
      %p4146 = scmp.le.s32.totalorder 2, %s17
      // Predicated region
      $region57: #{mlp_forward.1} parent=5 // pred_check
        %p4147 = pneg %p4146
      $region58: #{mlp_forward.1} parent=5 // pred_check_branch
        %4149 = sbr.rel (%p4147) target = $region60
      $region59: #{mlp_forward.1} parent=5 // pred_region
        %s4150 = ssub.s32 %s17, 2
        // Predicated region
        $region61: #{mlp_forward.1} parent=59 // pred_check
          %p4151 = pneg %p185
        $region62: #{mlp_forward.1} parent=59 // pred_check_branch
          %4153 = sbr.rel (%p4151) target = $region64
        $region63: #{mlp_forward.1} parent=59 // pred_region
          %p4154 = scmp.lt.s32.totalorder %s28, 1
          %s4155 = scalar_select %p4154, %s28, 1
          %p4156 = scmp.lt.s32.totalorder %s29, 0
          %s4157 = scalar_select %p4156, %s29, 0
          %s4158 = sadd.s32 %s4157, %s4155
          %s4159 = smul.addr %s4158, 2
          %s4160 = scalar_lea.vmem %s5, %s4159
        $region64: #{mlp_forward.1} parent=59 // pred_fallthru
          _
      $region60: #{mlp_forward.1} parent=5 // pred_fallthru
        _
    $region6: #{mlp_forward.1} parent=1 // loop_footer
      %s21 = sadd.s32 1, %s17
    $region7: #{mlp_forward.1} parent=1 // loop_footer_branch
      %16 = sbr.rel target = $region3
    $region8: #{mlp_forward.1} parent=1 // loop_exit
      _
    %4161 = vsyncpa [#allocation3], 1
    %s4162 = scalar_lea.sflag [#allocation3], 1
    %4163 = vsyncpa %s4162, 1
    %4164 = vsyncpa [#allocation5], 1
    %s4165 = scalar_lea.sflag [#allocation5], 1
    %4166 = vsyncpa %s4165, 1

</llo_original>
